<compile_context>
chip_gen: v5e
topology: v5e:2x2
jax: 0.10.0
libtpu: 0.0.40
codegen_flags: <defaults>
</compile_context>

<pallas_src>
import functools
import math

import jax
import jax.numpy as jnp
from jax import lax
from jax.experimental import pallas as pl
from jax.experimental.pallas import tpu as pltpu

_TAPS = 27  # 3x3x3


def _group_geometry(C):
    """Aligned row-group geometry for tap-major (TAPS*C, L) slabs."""
    tpg = 8 // math.gcd(8, C)          # taps per 8-row-aligned group
    grows = tpg * C                    # rows per group (= lcm(8, C))
    ngroups = -(-_TAPS // tpg)         # ceil(27 / tpg)
    return tpg, grows, ngroups, ngroups * grows


def _tap_offsets(H, W):
    """Flat lane offset of each 3x3x3 tap (tap = kd*9 + kh*3 + kw)."""
    HW = H * W
    offs = []
    for kd in range(3):
        for kh in range(3):
            for kw in range(3):
                offs.append((kd - 1) * HW + (kh - 1) * W + (kw - 1))
    return tuple(offs)


def _resblock2_kernel(x_ref, w1_ref, w2_ref, mask_ref, o_ref, y_ref, *, offsets):
    """Fused ResBlock2 forward on the whole (batch-folded) volume.

    x_ref    : (C, L)    input, channels on sublanes, L = N*D*H*W on lanes.
    w1_ref   : (TP, C)   conv1 weights, row tap*C+co = w[co, :, tap] (zero-padded).
    w2_ref   : (TP, C)   conv2 weights, same layout.
    mask_ref : (TP, L)   bf16 {0,1} boundary masks, PRE-SHIFTED by +off(tap) and
                         replicated over the C output rows of each tap.
    o_ref    : (C, L)    output.
    y_ref    : (TP, L)   f32 VMEM scratch holding the tap-major matmul result.
    """
    C, L = x_ref.shape
    TP = y_ref.shape[0]
    tpg = 8 // math.gcd(8, C)
    grows = tpg * C
    ngroups = TP // grows

    x = x_ref[...].astype(jnp.float32)          # also the residual branch

    def conv3d(w_ref, src):
        # 1) Channel contraction for ALL 27 taps in ONE MXU matmul.  Result rows
        #    are tap-major and the store into y_ref is dense / fully aligned
        #    (no im2col, no masked stores).
        y_ref[...] = jnp.dot(w_ref[...], src, preferred_element_type=jnp.float32)

        # 2) Per tap: mask (pre-shifted, applied to the aligned group) ->
        #    lane roll (XLU) -> accumulate (VPU).
        acc = jnp.zeros((C, L), jnp.float32)
        for g in range(ngroups):
            r0 = g * grows
            blk = (y_ref[r0:r0 + grows, :]
                   * mask_ref[r0:r0 + grows, :].astype(jnp.float32))
            for j in range(tpg):
                tap = g * tpg + j
                if tap >= len(offsets):
                    break
                y_t = blk[j * C:(j + 1) * C, :]
                off = offsets[tap]
                if off:
                    y_t = pltpu.roll(y_t, shift=(-off) % L, axis=1)
                acc = acc + y_t
        return acc

    h = jnp.maximum(conv3d(w1_ref, x), 0.0)           # conv1 + ReLU (stays in VMEM/vregs)
    out = jnp.maximum(conv3d(w2_ref, h) + x, 0.0)     # conv2 + residual + ReLU
    o_ref[...] = out.astype(o_ref.dtype)


def _pack_weights(w_oidhw, TP):
    """(Cout, Cin, 3,3,3) -> (TP, Cin) with row tap*Cout+co = w[co, :, tap]."""
    C_out, C_in = w_oidhw.shape[0], w_oidhw.shape[1]
    wt = jnp.transpose(w_oidhw, (2, 3, 4, 0, 1)).reshape(_TAPS * C_out, C_in)
    return jnp.pad(wt, ((0, TP - _TAPS * C_out), (0, 0))).astype(jnp.float32)


def _pack_masks(N, C, D, H, W, TP):
    """(TP, N*DHW) bf16 {0,1} masks, pre-shifted by +off(tap), replicated x C."""
    HW, DHW = H * W, D * H * W

    def axis_valid(n):
        i = jnp.arange(n)
        return jnp.stack([i >= 1, jnp.ones((n,), bool), i <= n - 2], axis=0)

    dv, hv, wv = axis_valid(D), axis_valid(H), axis_valid(W)
    m = (dv[:, None, None, :, None, None]
         & hv[None, :, None, None, :, None]
         & wv[None, None, :, None, None, :]).reshape(_TAPS, DHW)
    m = jnp.tile(m.astype(jnp.float32), (1, N))                   # (27, L) folded batch
    offs = _tap_offsets(H, W)
    # Pre-shift so the kernel can mask BEFORE rolling:
    #   roll(y * roll(m, +off), -off) == roll(y, -off) * m
    m = jnp.stack([jnp.roll(m[t], offs[t]) for t in range(_TAPS)], axis=0)
    m = jnp.repeat(m, C, axis=0)                                   # rows tap*C + co
    m = jnp.pad(m, ((0, TP - _TAPS * C), (0, 0)))
    return m.astype(jnp.bfloat16)


def resblock2_prepare(w1_oidhw, w2_oidhw, x_shape):
    """One-off packing of weights + boundary masks (hoist out of the hot path)."""
    N, C, D, H, W = x_shape
    assert w1_oidhw.shape == (C, C, 3, 3, 3) and w2_oidhw.shape == (C, C, 3, 3, 3)
    _, _, _, TP = _group_geometry(C)
    return (_pack_weights(w1_oidhw, TP),
            _pack_weights(w2_oidhw, TP),
            _pack_masks(N, C, D, H, W, TP))


def resblock2_apply(x_ncdhw, w1p, w2p, masks):
    """ResBlock2.forward (stride=1, downsample=None, bias-free convs)."""
    N, C, D, H, W = x_ncdhw.shape
    DHW = D * H * W
    L = N * DHW
    TP = w1p.shape[0]

    # Fold the batch onto the lane axis: (N, C, DHW) -> (C, N*DHW).
    # Tiny relayout at these sizes; gives a single grid step (no per-step
    # overhead on single-TC v5e/v6e) and a wide lane-dense output store.
    x_cl = jnp.transpose(x_ncdhw.reshape(N, C, DHW), (1, 0, 2)).reshape(C, L)

    # Guard scratch/block scaling explicitly (review): everything must fit one
    # VMEM-resident block.  Tile D (with a 1-plane halo) before calling if not.
    est_vmem = (TP * L * 4                 # y scratch (f32)
                + 2 * (TP * L * 2)         # mask block (bf16), double-buffered
                + 4 * (C * L * 4)          # x + out blocks, double-buffered
                + 4 * (TP * C * 4))        # weight blocks
    assert est_vmem <= 24 * 1024 * 1024, (
        "ResBlock2 volume too large for the single-block kernel; tile D with a "
        "1-plane halo")

    kernel = functools.partial(_resblock2_kernel, offsets=_tap_offsets(H, W))

    out_cl = pl.pallas_call(
        kernel,
        out_shape=jax.ShapeDtypeStruct((C, L), x_ncdhw.dtype),
        grid_spec=pltpu.PrefetchScalarGridSpec(
            num_scalar_prefetch=0,
            grid=(1,),
            in_specs=[
                pl.BlockSpec((C, L), lambda i: (0, 0)),
                pl.BlockSpec((TP, C), lambda i: (0, 0)),
                pl.BlockSpec((TP, C), lambda i: (0, 0)),
                pl.BlockSpec((TP, L), lambda i: (0, 0)),
            ],
            out_specs=pl.BlockSpec((C, L), lambda i: (0, 0)),
            scratch_shapes=[pltpu.VMEM((TP, L), jnp.float32)],
        ),
        compiler_params=pltpu.CompilerParams(
            dimension_semantics=("arbitrary",),
            vmem_limit_bytes=32 * 1024 * 1024),
    )(x_cl, w1p, w2p, masks)

    out = jnp.transpose(out_cl.reshape(C, N, DHW), (1, 0, 2))
    return out.reshape(N, C, D, H, W)


def resblock2_forward(x_ncdhw, w1_oidhw, w2_oidhw):
    """Convenience wrapper mirroring the PyTorch module's forward()."""
    w1p, w2p, masks = resblock2_prepare(w1_oidhw, w2_oidhw, x_ncdhw.shape)
    return resblock2_apply(x_ncdhw, w1p, w2p, masks)


def _reference_forward(x_ncdhw, w1, w2):
    """Pure-JAX reference (lax.conv) mirroring the PyTorch module."""
    dn = ("NCDHW", "OIDHW", "NCDHW")
    conv = lambda x, w: lax.conv_general_dilated(
        x, w, window_strides=(1, 1, 1), padding=[(1, 1)] * 3,
        dimension_numbers=dn)
    out = jnp.maximum(conv(x_ncdhw, w1), 0.0)
    out = conv(out, w2) + x_ncdhw
    return jnp.maximum(out, 0.0)


if __name__ == "__main__":
    key = jax.random.PRNGKey(0)
    k_x, k_w1, k_w2 = jax.random.split(key, 3)

    N, C, D, H, W = 2, 4, 8, 8, 8          # inplanes = planes = 4, stride = 1
    x = jax.random.normal(k_x, (N, C, D, H, W), jnp.float32)

    fan_in = C * 3 * 3 * 3
    scale = (2.0 / fan_in) ** 0.5          # kaiming-like deterministic init
    w1 = scale * jax.random.normal(k_w1, (C, C, 3, 3, 3), jnp.float32)
    w2 = scale * jax.random.normal(k_w2, (C, C, 3, 3, 3), jnp.float32)

    # Hoisted one-off packing (weights/masks reused across calls).
    w1p, w2p, masks = resblock2_prepare(w1, w2, x.shape)
    fwd = jax.jit(resblock2_apply)
    out = jax.block_until_ready(fwd(x, w1p, w2p, masks))

    ref = _reference_forward(x, w1, w2)
    assert out.shape == (N, C, D, H, W)
    assert jnp.allclose(out, ref, atol=1e-4, rtol=1e-4), "mismatch vs reference"

    print("KERNEL_OK")
</pallas_src>

<mosaic_0001>
module attributes {stable_mosaic.version = 11 : i64} {
  func.func @_resblock2_kernel(%arg0: i32, %arg1: memref<4x1024xf32, #tpu.memory_space<vmem>>, %arg2: memref<112x4xf32, #tpu.memory_space<vmem>>, %arg3: memref<112x4xf32, #tpu.memory_space<vmem>>, %arg4: memref<112x1024xbf16, #tpu.memory_space<vmem>>, %arg5: memref<4x1024xf32, #tpu.memory_space<vmem>>, %arg6: memref<112x1024xf32, #tpu.memory_space<vmem>>) attributes {dimension_semantics = [#tpu.dimension_semantics<arbitrary>], iteration_bounds = array<i64: 1>, scalar_prefetch = 0 : i64, scratch_operands = 1 : i64, tpu.core_type = #tpu.core_type<tc>, window_params = [{pipeline_mode = #tpu.pipeline_mode<synchronous>, transform_indices = @transform_0, window_bounds = array<i64: 4, 1024>}, {pipeline_mode = #tpu.pipeline_mode<synchronous>, transform_indices = @transform_1, window_bounds = array<i64: 112, 4>}, {pipeline_mode = #tpu.pipeline_mode<synchronous>, transform_indices = @transform_2, window_bounds = array<i64: 112, 4>}, {pipeline_mode = #tpu.pipeline_mode<synchronous>, transform_indices = @transform_3, window_bounds = array<i64: 112, 1024>}, {pipeline_mode = #tpu.pipeline_mode<synchronous>, transform_indices = @transform_4, window_bounds = array<i64: 4, 1024>}]} {
    %c0 = arith.constant 0 : index
    %c0_0 = arith.constant 0 : index
    %0 = vector.load %arg1[%c0, %c0_0] : memref<4x1024xf32, #tpu.memory_space<vmem>>, vector<4x1024xf32>
    %c0_1 = arith.constant 0 : index
    %c0_2 = arith.constant 0 : index
    %1 = vector.load %arg2[%c0_1, %c0_2] : memref<112x4xf32, #tpu.memory_space<vmem>>, vector<112x4xf32>
    %cst = arith.constant dense<0.000000e+00> : vector<112x1024xf32>
    %2 = tpu.matmul %1, %0, %cst {dimension_numbers = #tpu.dot_dimension_numbers<[1], [0], [0], [1], [0, 0, 1, 1], [], []>} : vector<112x4xf32>, vector<4x1024xf32>, vector<112x1024xf32> -> vector<112x1024xf32>
    %c0_3 = arith.constant 0 : index
    %c0_4 = arith.constant 0 : index
    %3 = vector.load %arg6[%c0_3, %c0_4] : memref<112x1024xf32, #tpu.memory_space<vmem>>, vector<112x1024xf32>
    tpu.vector_store %arg6[%c0_3, %c0_4], %2 {strides = array<i32>} : memref<112x1024xf32, #tpu.memory_space<vmem>>, vector<112x1024xf32>,
    %cst_5 = arith.constant 0.000000e+00 : f32
    %4 = vector.broadcast %cst_5 : f32 to vector<4x1024xf32>
    %c0_6 = arith.constant 0 : index
    %c0_7 = arith.constant 0 : index
    %5 = vector.load %arg6[%c0_6, %c0_7] : memref<112x1024xf32, #tpu.memory_space<vmem>>, vector<8x1024xf32>
    %c0_8 = arith.constant 0 : index
    %c0_9 = arith.constant 0 : index
    %6 = vector.load %arg4[%c0_8, %c0_9] : memref<112x1024xbf16, #tpu.memory_space<vmem>>, vector<8x1024xbf16>
    %7 = arith.extf %6 : vector<8x1024xbf16> to vector<8x1024xf32>
    %8 = arith.mulf %5, %7 : vector<8x1024xf32>
    %9 = vector.extract_strided_slice %8 {offsets = [0, 0], sizes = [4, 1024], strides = [1, 1]} : vector<8x1024xf32> to vector<4x1024xf32>
    %c73_i32 = arith.constant 73 : i32
    %10 = tpu.dynamic_rotate %9 by %c73_i32 dim 1 : vector<4x1024xf32>, i32 -> vector<4x1024xf32>
    %11 = arith.addf %4, %10 : vector<4x1024xf32>
    %12 = vector.extract_strided_slice %8 {offsets = [4, 0], sizes = [4, 1024], strides = [1, 1]} : vector<8x1024xf32> to vector<4x1024xf32>
    %c72_i32 = arith.constant 72 : i32
    %13 = tpu.dynamic_rotate %12 by %c72_i32 dim 1 : vector<4x1024xf32>, i32 -> vector<4x1024xf32>
    %14 = arith.addf %11, %13 : vector<4x1024xf32>
    %c8 = arith.constant 8 : index
    %c0_10 = arith.constant 0 : index
    %15 = vector.load %arg6[%c8, %c0_10] : memref<112x1024xf32, #tpu.memory_space<vmem>>, vector<8x1024xf32>
    %c8_11 = arith.constant 8 : index
    %c0_12 = arith.constant 0 : index
    %16 = vector.load %arg4[%c8_11, %c0_12] : memref<112x1024xbf16, #tpu.memory_space<vmem>>, vector<8x1024xbf16>
    %17 = arith.extf %16 : vector<8x1024xbf16> to vector<8x1024xf32>
    %18 = arith.mulf %15, %17 : vector<8x1024xf32>
    %19 = vector.extract_strided_slice %18 {offsets = [0, 0], sizes = [4, 1024], strides = [1, 1]} : vector<8x1024xf32> to vector<4x1024xf32>
    %c71_i32 = arith.constant 71 : i32
    %20 = tpu.dynamic_rotate %19 by %c71_i32 dim 1 : vector<4x1024xf32>, i32 -> vector<4x1024xf32>
    %21 = arith.addf %14, %20 : vector<4x1024xf32>
    %22 = vector.extract_strided_slice %18 {offsets = [4, 0], sizes = [4, 1024], strides = [1, 1]} : vector<8x1024xf32> to vector<4x1024xf32>
    %c65_i32 = arith.constant 65 : i32
    %23 = tpu.dynamic_rotate %22 by %c65_i32 dim 1 : vector<4x1024xf32>, i32 -> vector<4x1024xf32>
    %24 = arith.addf %21, %23 : vector<4x1024xf32>
    %c16 = arith.constant 16 : index
    %c0_13 = arith.constant 0 : index
    %25 = vector.load %arg6[%c16, %c0_13] : memref<112x1024xf32, #tpu.memory_space<vmem>>, vector<8x1024xf32>
    %c16_14 = arith.constant 16 : index
    %c0_15 = arith.constant 0 : index
    %26 = vector.load %arg4[%c16_14, %c0_15] : memref<112x1024xbf16, #tpu.memory_space<vmem>>, vector<8x1024xbf16>
    %27 = arith.extf %26 : vector<8x1024xbf16> to vector<8x1024xf32>
    %28 = arith.mulf %25, %27 : vector<8x1024xf32>
    %29 = vector.extract_strided_slice %28 {offsets = [0, 0], sizes = [4, 1024], strides = [1, 1]} : vector<8x1024xf32> to vector<4x1024xf32>
    %c64_i32 = arith.constant 64 : i32
    %30 = tpu.dynamic_rotate %29 by %c64_i32 dim 1 : vector<4x1024xf32>, i32 -> vector<4x1024xf32>
    %31 = arith.addf %24, %30 : vector<4x1024xf32>
    %32 = vector.extract_strided_slice %28 {offsets = [4, 0], sizes = [4, 1024], strides = [1, 1]} : vector<8x1024xf32> to vector<4x1024xf32>
    %c63_i32 = arith.constant 63 : i32
    %33 = tpu.dynamic_rotate %32 by %c63_i32 dim 1 : vector<4x1024xf32>, i32 -> vector<4x1024xf32>
    %34 = arith.addf %31, %33 : vector<4x1024xf32>
    %c24 = arith.constant 24 : index
    %c0_16 = arith.constant 0 : index
    %35 = vector.load %arg6[%c24, %c0_16] : memref<112x1024xf32, #tpu.memory_space<vmem>>, vector<8x1024xf32>
    %c24_17 = arith.constant 24 : index
    %c0_18 = arith.constant 0 : index
    %36 = vector.load %arg4[%c24_17, %c0_18] : memref<112x1024xbf16, #tpu.memory_space<vmem>>, vector<8x1024xbf16>
    %37 = arith.extf %36 : vector<8x1024xbf16> to vector<8x1024xf32>
    %38 = arith.mulf %35, %37 : vector<8x1024xf32>
    %39 = vector.extract_strided_slice %38 {offsets = [0, 0], sizes = [4, 1024], strides = [1, 1]} : vector<8x1024xf32> to vector<4x1024xf32>
    %c57_i32 = arith.constant 57 : i32
    %40 = tpu.dynamic_rotate %39 by %c57_i32 dim 1 : vector<4x1024xf32>, i32 -> vector<4x1024xf32>
    %41 = arith.addf %34, %40 : vector<4x1024xf32>
    %42 = vector.extract_strided_slice %38 {offsets = [4, 0], sizes = [4, 1024], strides = [1, 1]} : vector<8x1024xf32> to vector<4x1024xf32>
    %c56_i32 = arith.constant 56 : i32
    %43 = tpu.dynamic_rotate %42 by %c56_i32 dim 1 : vector<4x1024xf32>, i32 -> vector<4x1024xf32>
    %44 = arith.addf %41, %43 : vector<4x1024xf32>
    %c32 = arith.constant 32 : index
    %c0_19 = arith.constant 0 : index
    %45 = vector.load %arg6[%c32, %c0_19] : memref<112x1024xf32, #tpu.memory_space<vmem>>, vector<8x1024xf32>
    %c32_20 = arith.constant 32 : index
    %c0_21 = arith.constant 0 : index
    %46 = vector.load %arg4[%c32_20, %c0_21] : memref<112x1024xbf16, #tpu.memory_space<vmem>>, vector<8x1024xbf16>
    %47 = arith.extf %46 : vector<8x1024xbf16> to vector<8x1024xf32>
    %48 = arith.mulf %45, %47 : vector<8x1024xf32>
    %49 = vector.extract_strided_slice %48 {offsets = [0, 0], sizes = [4, 1024], strides = [1, 1]} : vector<8x1024xf32> to vector<4x1024xf32>
    %c55_i32 = arith.constant 55 : i32
    %50 = tpu.dynamic_rotate %49 by %c55_i32 dim 1 : vector<4x1024xf32>, i32 -> vector<4x1024xf32>
    %51 = arith.addf %44, %50 : vector<4x1024xf32>
    %52 = vector.extract_strided_slice %48 {offsets = [4, 0], sizes = [4, 1024], strides = [1, 1]} : vector<8x1024xf32> to vector<4x1024xf32>
    %c9_i32 = arith.constant 9 : i32
    %53 = tpu.dynamic_rotate %52 by %c9_i32 dim 1 : vector<4x1024xf32>, i32 -> vector<4x1024xf32>
    %54 = arith.addf %51, %53 : vector<4x1024xf32>
    %c40 = arith.constant 40 : index
    %c0_22 = arith.constant 0 : index
    %55 = vector.load %arg6[%c40, %c0_22] : memref<112x1024xf32, #tpu.memory_space<vmem>>, vector<8x1024xf32>
    %c40_23 = arith.constant 40 : index
    %c0_24 = arith.constant 0 : index
    %56 = vector.load %arg4[%c40_23, %c0_24] : memref<112x1024xbf16, #tpu.memory_space<vmem>>, vector<8x1024xbf16>
    %57 = arith.extf %56 : vector<8x1024xbf16> to vector<8x1024xf32>
    %58 = arith.mulf %55, %57 : vector<8x1024xf32>
    %59 = vector.extract_strided_slice %58 {offsets = [0, 0], sizes = [4, 1024], strides = [1, 1]} : vector<8x1024xf32> to vector<4x1024xf32>
    %c8_i32 = arith.constant 8 : i32
    %60 = tpu.dynamic_rotate %59 by %c8_i32 dim 1 : vector<4x1024xf32>, i32 -> vector<4x1024xf32>
    %61 = arith.addf %54, %60 : vector<4x1024xf32>
    %62 = vector.extract_strided_slice %58 {offsets = [4, 0], sizes = [4, 1024], strides = [1, 1]} : vector<8x1024xf32> to vector<4x1024xf32>
    %c7_i32 = arith.constant 7 : i32
    %63 = tpu.dynamic_rotate %62 by %c7_i32 dim 1 : vector<4x1024xf32>, i32 -> vector<4x1024xf32>
    %64 = arith.addf %61, %63 : vector<4x1024xf32>
    %c48 = arith.constant 48 : index
    %c0_25 = arith.constant 0 : index
    %65 = vector.load %arg6[%c48, %c0_25] : memref<112x1024xf32, #tpu.memory_space<vmem>>, vector<8x1024xf32>
    %c48_26 = arith.constant 48 : index
    %c0_27 = arith.constant 0 : index
    %66 = vector.load %arg4[%c48_26, %c0_27] : memref<112x1024xbf16, #tpu.memory_space<vmem>>, vector<8x1024xbf16>
    %67 = arith.extf %66 : vector<8x1024xbf16> to vector<8x1024xf32>
    %68 = arith.mulf %65, %67 : vector<8x1024xf32>
    %69 = vector.extract_strided_slice %68 {offsets = [0, 0], sizes = [4, 1024], strides = [1, 1]} : vector<8x1024xf32> to vector<4x1024xf32>
    %c1_i32 = arith.constant 1 : i32
    %70 = tpu.dynamic_rotate %69 by %c1_i32 dim 1 : vector<4x1024xf32>, i32 -> vector<4x1024xf32>
    %71 = arith.addf %64, %70 : vector<4x1024xf32>
    %72 = vector.extract_strided_slice %68 {offsets = [4, 0], sizes = [4, 1024], strides = [1, 1]} : vector<8x1024xf32> to vector<4x1024xf32>
    %73 = arith.addf %71, %72 : vector<4x1024xf32>
    %c56 = arith.constant 56 : index
    %c0_28 = arith.constant 0 : index
    %74 = vector.load %arg6[%c56, %c0_28] : memref<112x1024xf32, #tpu.memory_space<vmem>>, vector<8x1024xf32>
    %c56_29 = arith.constant 56 : index
    %c0_30 = arith.constant 0 : index
    %75 = vector.load %arg4[%c56_29, %c0_30] : memref<112x1024xbf16, #tpu.memory_space<vmem>>, vector<8x1024xbf16>
    %76 = arith.extf %75 : vector<8x1024xbf16> to vector<8x1024xf32>
    %77 = arith.mulf %74, %76 : vector<8x1024xf32>
    %78 = vector.extract_strided_slice %77 {offsets = [0, 0], sizes = [4, 1024], strides = [1, 1]} : vector<8x1024xf32> to vector<4x1024xf32>
    %c1023_i32 = arith.constant 1023 : i32
    %79 = tpu.dynamic_rotate %78 by %c1023_i32 dim 1 : vector<4x1024xf32>, i32 -> vector<4x1024xf32>
    %80 = arith.addf %73, %79 : vector<4x1024xf32>
    %81 = vector.extract_strided_slice %77 {offsets = [4, 0], sizes = [4, 1024], strides = [1, 1]} : vector<8x1024xf32> to vector<4x1024xf32>
    %c1017_i32 = arith.constant 1017 : i32
    %82 = tpu.dynamic_rotate %81 by %c1017_i32 dim 1 : vector<4x1024xf32>, i32 -> vector<4x1024xf32>
    %83 = arith.addf %80, %82 : vector<4x1024xf32>
    %c64 = arith.constant 64 : index
    %c0_31 = arith.constant 0 : index
    %84 = vector.load %arg6[%c64, %c0_31] : memref<112x1024xf32, #tpu.memory_space<vmem>>, vector<8x1024xf32>
    %c64_32 = arith.constant 64 : index
    %c0_33 = arith.constant 0 : index
    %85 = vector.load %arg4[%c64_32, %c0_33] : memref<112x1024xbf16, #tpu.memory_space<vmem>>, vector<8x1024xbf16>
    %86 = arith.extf %85 : vector<8x1024xbf16> to vector<8x1024xf32>
    %87 = arith.mulf %84, %86 : vector<8x1024xf32>
    %88 = vector.extract_strided_slice %87 {offsets = [0, 0], sizes = [4, 1024], strides = [1, 1]} : vector<8x1024xf32> to vector<4x1024xf32>
    %c1016_i32 = arith.constant 1016 : i32
    %89 = tpu.dynamic_rotate %88 by %c1016_i32 dim 1 : vector<4x1024xf32>, i32 -> vector<4x1024xf32>
    %90 = arith.addf %83, %89 : vector<4x1024xf32>
    %91 = vector.extract_strided_slice %87 {offsets = [4, 0], sizes = [4, 1024], strides = [1, 1]} : vector<8x1024xf32> to vector<4x1024xf32>
    %c1015_i32 = arith.constant 1015 : i32
    %92 = tpu.dynamic_rotate %91 by %c1015_i32 dim 1 : vector<4x1024xf32>, i32 -> vector<4x1024xf32>
    %93 = arith.addf %90, %92 : vector<4x1024xf32>
    %c72 = arith.constant 72 : index
    %c0_34 = arith.constant 0 : index
    %94 = vector.load %arg6[%c72, %c0_34] : memref<112x1024xf32, #tpu.memory_space<vmem>>, vector<8x1024xf32>
    %c72_35 = arith.constant 72 : index
    %c0_36 = arith.constant 0 : index
    %95 = vector.load %arg4[%c72_35, %c0_36] : memref<112x1024xbf16, #tpu.memory_space<vmem>>, vector<8x1024xbf16>
    %96 = arith.extf %95 : vector<8x1024xbf16> to vector<8x1024xf32>
    %97 = arith.mulf %94, %96 : vector<8x1024xf32>
    %98 = vector.extract_strided_slice %97 {offsets = [0, 0], sizes = [4, 1024], strides = [1, 1]} : vector<8x1024xf32> to vector<4x1024xf32>
    %c969_i32 = arith.constant 969 : i32
    %99 = tpu.dynamic_rotate %98 by %c969_i32 dim 1 : vector<4x1024xf32>, i32 -> vector<4x1024xf32>
    %100 = arith.addf %93, %99 : vector<4x1024xf32>
    %101 = vector.extract_strided_slice %97 {offsets = [4, 0], sizes = [4, 1024], strides = [1, 1]} : vector<8x1024xf32> to vector<4x1024xf32>
    %c968_i32 = arith.constant 968 : i32
    %102 = tpu.dynamic_rotate %101 by %c968_i32 dim 1 : vector<4x1024xf32>, i32 -> vector<4x1024xf32>
    %103 = arith.addf %100, %102 : vector<4x1024xf32>
    %c80 = arith.constant 80 : index
    %c0_37 = arith.constant 0 : index
    %104 = vector.load %arg6[%c80, %c0_37] : memref<112x1024xf32, #tpu.memory_space<vmem>>, vector<8x1024xf32>
    %c80_38 = arith.constant 80 : index
    %c0_39 = arith.constant 0 : index
    %105 = vector.load %arg4[%c80_38, %c0_39] : memref<112x1024xbf16, #tpu.memory_space<vmem>>, vector<8x1024xbf16>
    %106 = arith.extf %105 : vector<8x1024xbf16> to vector<8x1024xf32>
    %107 = arith.mulf %104, %106 : vector<8x1024xf32>
    %108 = vector.extract_strided_slice %107 {offsets = [0, 0], sizes = [4, 1024], strides = [1, 1]} : vector<8x1024xf32> to vector<4x1024xf32>
    %c967_i32 = arith.constant 967 : i32
    %109 = tpu.dynamic_rotate %108 by %c967_i32 dim 1 : vector<4x1024xf32>, i32 -> vector<4x1024xf32>
    %110 = arith.addf %103, %109 : vector<4x1024xf32>
    %111 = vector.extract_strided_slice %107 {offsets = [4, 0], sizes = [4, 1024], strides = [1, 1]} : vector<8x1024xf32> to vector<4x1024xf32>
    %c961_i32 = arith.constant 961 : i32
    %112 = tpu.dynamic_rotate %111 by %c961_i32 dim 1 : vector<4x1024xf32>, i32 -> vector<4x1024xf32>
    %113 = arith.addf %110, %112 : vector<4x1024xf32>
    %c88 = arith.constant 88 : index
    %c0_40 = arith.constant 0 : index
    %114 = vector.load %arg6[%c88, %c0_40] : memref<112x1024xf32, #tpu.memory_space<vmem>>, vector<8x1024xf32>
    %c88_41 = arith.constant 88 : index
    %c0_42 = arith.constant 0 : index
    %115 = vector.load %arg4[%c88_41, %c0_42] : memref<112x1024xbf16, #tpu.memory_space<vmem>>, vector<8x1024xbf16>
    %116 = arith.extf %115 : vector<8x1024xbf16> to vector<8x1024xf32>
    %117 = arith.mulf %114, %116 : vector<8x1024xf32>
    %118 = vector.extract_strided_slice %117 {offsets = [0, 0], sizes = [4, 1024], strides = [1, 1]} : vector<8x1024xf32> to vector<4x1024xf32>
    %c960_i32 = arith.constant 960 : i32
    %119 = tpu.dynamic_rotate %118 by %c960_i32 dim 1 : vector<4x1024xf32>, i32 -> vector<4x1024xf32>
    %120 = arith.addf %113, %119 : vector<4x1024xf32>
    %121 = vector.extract_strided_slice %117 {offsets = [4, 0], sizes = [4, 1024], strides = [1, 1]} : vector<8x1024xf32> to vector<4x1024xf32>
    %c959_i32 = arith.constant 959 : i32
    %122 = tpu.dynamic_rotate %121 by %c959_i32 dim 1 : vector<4x1024xf32>, i32 -> vector<4x1024xf32>
    %123 = arith.addf %120, %122 : vector<4x1024xf32>
    %c96 = arith.constant 96 : index
    %c0_43 = arith.constant 0 : index
    %124 = vector.load %arg6[%c96, %c0_43] : memref<112x1024xf32, #tpu.memory_space<vmem>>, vector<8x1024xf32>
    %c96_44 = arith.constant 96 : index
    %c0_45 = arith.constant 0 : index
    %125 = vector.load %arg4[%c96_44, %c0_45] : memref<112x1024xbf16, #tpu.memory_space<vmem>>, vector<8x1024xbf16>
    %126 = arith.extf %125 : vector<8x1024xbf16> to vector<8x1024xf32>
    %127 = arith.mulf %124, %126 : vector<8x1024xf32>
    %128 = vector.extract_strided_slice %127 {offsets = [0, 0], sizes = [4, 1024], strides = [1, 1]} : vector<8x1024xf32> to vector<4x1024xf32>
    %c953_i32 = arith.constant 953 : i32
    %129 = tpu.dynamic_rotate %128 by %c953_i32 dim 1 : vector<4x1024xf32>, i32 -> vector<4x1024xf32>
    %130 = arith.addf %123, %129 : vector<4x1024xf32>
    %131 = vector.extract_strided_slice %127 {offsets = [4, 0], sizes = [4, 1024], strides = [1, 1]} : vector<8x1024xf32> to vector<4x1024xf32>
    %c952_i32 = arith.constant 952 : i32
    %132 = tpu.dynamic_rotate %131 by %c952_i32 dim 1 : vector<4x1024xf32>, i32 -> vector<4x1024xf32>
    %133 = arith.addf %130, %132 : vector<4x1024xf32>
    %c104 = arith.constant 104 : index
    %c0_46 = arith.constant 0 : index
    %134 = vector.load %arg6[%c104, %c0_46] : memref<112x1024xf32, #tpu.memory_space<vmem>>, vector<8x1024xf32>
    %c104_47 = arith.constant 104 : index
    %c0_48 = arith.constant 0 : index
    %135 = vector.load %arg4[%c104_47, %c0_48] : memref<112x1024xbf16, #tpu.memory_space<vmem>>, vector<8x1024xbf16>
    %136 = arith.extf %135 : vector<8x1024xbf16> to vector<8x1024xf32>
    %137 = arith.mulf %134, %136 : vector<8x1024xf32>
    %138 = vector.extract_strided_slice %137 {offsets = [0, 0], sizes = [4, 1024], strides = [1, 1]} : vector<8x1024xf32> to vector<4x1024xf32>
    %c951_i32 = arith.constant 951 : i32
    %139 = tpu.dynamic_rotate %138 by %c951_i32 dim 1 : vector<4x1024xf32>, i32 -> vector<4x1024xf32>
    %140 = arith.addf %133, %139 : vector<4x1024xf32>
    %cst_49 = arith.constant 0.000000e+00 : f32
    %141 = vector.broadcast %cst_49 : f32 to vector<4x1024xf32>
    %142 = arith.maximumf %140, %141 : vector<4x1024xf32>
    %c0_50 = arith.constant 0 : index
    %c0_51 = arith.constant 0 : index
    %143 = vector.load %arg3[%c0_50, %c0_51] : memref<112x4xf32, #tpu.memory_space<vmem>>, vector<112x4xf32>
    %cst_52 = arith.constant dense<0.000000e+00> : vector<112x1024xf32>
    %144 = tpu.matmul %143, %142, %cst_52 {dimension_numbers = #tpu.dot_dimension_numbers<[1], [0], [0], [1], [0, 0, 1, 1], [], []>} : vector<112x4xf32>, vector<4x1024xf32>, vector<112x1024xf32> -> vector<112x1024xf32>
    %c0_53 = arith.constant 0 : index
    %c0_54 = arith.constant 0 : index
    %145 = vector.load %arg6[%c0_53, %c0_54] : memref<112x1024xf32, #tpu.memory_space<vmem>>, vector<112x1024xf32>
    tpu.vector_store %arg6[%c0_53, %c0_54], %144 {strides = array<i32>} : memref<112x1024xf32, #tpu.memory_space<vmem>>, vector<112x1024xf32>,
    %cst_55 = arith.constant 0.000000e+00 : f32
    %146 = vector.broadcast %cst_55 : f32 to vector<4x1024xf32>
    %c0_56 = arith.constant 0 : index
    %c0_57 = arith.constant 0 : index
    %147 = vector.load %arg6[%c0_56, %c0_57] : memref<112x1024xf32, #tpu.memory_space<vmem>>, vector<8x1024xf32>
    %c0_58 = arith.constant 0 : index
    %c0_59 = arith.constant 0 : index
    %148 = vector.load %arg4[%c0_58, %c0_59] : memref<112x1024xbf16, #tpu.memory_space<vmem>>, vector<8x1024xbf16>
    %149 = arith.extf %148 : vector<8x1024xbf16> to vector<8x1024xf32>
    %150 = arith.mulf %147, %149 : vector<8x1024xf32>
    %151 = vector.extract_strided_slice %150 {offsets = [0, 0], sizes = [4, 1024], strides = [1, 1]} : vector<8x1024xf32> to vector<4x1024xf32>
    %c73_i32_60 = arith.constant 73 : i32
    %152 = tpu.dynamic_rotate %151 by %c73_i32_60 dim 1 : vector<4x1024xf32>, i32 -> vector<4x1024xf32>
    %153 = arith.addf %146, %152 : vector<4x1024xf32>
    %154 = vector.extract_strided_slice %150 {offsets = [4, 0], sizes = [4, 1024], strides = [1, 1]} : vector<8x1024xf32> to vector<4x1024xf32>
    %c72_i32_61 = arith.constant 72 : i32
    %155 = tpu.dynamic_rotate %154 by %c72_i32_61 dim 1 : vector<4x1024xf32>, i32 -> vector<4x1024xf32>
    %156 = arith.addf %153, %155 : vector<4x1024xf32>
    %c8_62 = arith.constant 8 : index
    %c0_63 = arith.constant 0 : index
    %157 = vector.load %arg6[%c8_62, %c0_63] : memref<112x1024xf32, #tpu.memory_space<vmem>>, vector<8x1024xf32>
    %c8_64 = arith.constant 8 : index
    %c0_65 = arith.constant 0 : index
    %158 = vector.load %arg4[%c8_64, %c0_65] : memref<112x1024xbf16, #tpu.memory_space<vmem>>, vector<8x1024xbf16>
    %159 = arith.extf %158 : vector<8x1024xbf16> to vector<8x1024xf32>
    %160 = arith.mulf %157, %159 : vector<8x1024xf32>
    %161 = vector.extract_strided_slice %160 {offsets = [0, 0], sizes = [4, 1024], strides = [1, 1]} : vector<8x1024xf32> to vector<4x1024xf32>
    %c71_i32_66 = arith.constant 71 : i32
    %162 = tpu.dynamic_rotate %161 by %c71_i32_66 dim 1 : vector<4x1024xf32>, i32 -> vector<4x1024xf32>
    %163 = arith.addf %156, %162 : vector<4x1024xf32>
    %164 = vector.extract_strided_slice %160 {offsets = [4, 0], sizes = [4, 1024], strides = [1, 1]} : vector<8x1024xf32> to vector<4x1024xf32>
    %c65_i32_67 = arith.constant 65 : i32
    %165 = tpu.dynamic_rotate %164 by %c65_i32_67 dim 1 : vector<4x1024xf32>, i32 -> vector<4x1024xf32>
    %166 = arith.addf %163, %165 : vector<4x1024xf32>
    %c16_68 = arith.constant 16 : index
    %c0_69 = arith.constant 0 : index
    %167 = vector.load %arg6[%c16_68, %c0_69] : memref<112x1024xf32, #tpu.memory_space<vmem>>, vector<8x1024xf32>
    %c16_70 = arith.constant 16 : index
    %c0_71 = arith.constant 0 : index
    %168 = vector.load %arg4[%c16_70, %c0_71] : memref<112x1024xbf16, #tpu.memory_space<vmem>>, vector<8x1024xbf16>
    %169 = arith.extf %168 : vector<8x1024xbf16> to vector<8x1024xf32>
    %170 = arith.mulf %167, %169 : vector<8x1024xf32>
    %171 = vector.extract_strided_slice %170 {offsets = [0, 0], sizes = [4, 1024], strides = [1, 1]} : vector<8x1024xf32> to vector<4x1024xf32>
    %c64_i32_72 = arith.constant 64 : i32
    %172 = tpu.dynamic_rotate %171 by %c64_i32_72 dim 1 : vector<4x1024xf32>, i32 -> vector<4x1024xf32>
    %173 = arith.addf %166, %172 : vector<4x1024xf32>
    %174 = vector.extract_strided_slice %170 {offsets = [4, 0], sizes = [4, 1024], strides = [1, 1]} : vector<8x1024xf32> to vector<4x1024xf32>
    %c63_i32_73 = arith.constant 63 : i32
    %175 = tpu.dynamic_rotate %174 by %c63_i32_73 dim 1 : vector<4x1024xf32>, i32 -> vector<4x1024xf32>
    %176 = arith.addf %173, %175 : vector<4x1024xf32>
    %c24_74 = arith.constant 24 : index
    %c0_75 = arith.constant 0 : index
    %177 = vector.load %arg6[%c24_74, %c0_75] : memref<112x1024xf32, #tpu.memory_space<vmem>>, vector<8x1024xf32>
    %c24_76 = arith.constant 24 : index
    %c0_77 = arith.constant 0 : index
    %178 = vector.load %arg4[%c24_76, %c0_77] : memref<112x1024xbf16, #tpu.memory_space<vmem>>, vector<8x1024xbf16>
    %179 = arith.extf %178 : vector<8x1024xbf16> to vector<8x1024xf32>
    %180 = arith.mulf %177, %179 : vector<8x1024xf32>
    %181 = vector.extract_strided_slice %180 {offsets = [0, 0], sizes = [4, 1024], strides = [1, 1]} : vector<8x1024xf32> to vector<4x1024xf32>
    %c57_i32_78 = arith.constant 57 : i32
    %182 = tpu.dynamic_rotate %181 by %c57_i32_78 dim 1 : vector<4x1024xf32>, i32 -> vector<4x1024xf32>
    %183 = arith.addf %176, %182 : vector<4x1024xf32>
    %184 = vector.extract_strided_slice %180 {offsets = [4, 0], sizes = [4, 1024], strides = [1, 1]} : vector<8x1024xf32> to vector<4x1024xf32>
    %c56_i32_79 = arith.constant 56 : i32
    %185 = tpu.dynamic_rotate %184 by %c56_i32_79 dim 1 : vector<4x1024xf32>, i32 -> vector<4x1024xf32>
    %186 = arith.addf %183, %185 : vector<4x1024xf32>
    %c32_80 = arith.constant 32 : index
    %c0_81 = arith.constant 0 : index
    %187 = vector.load %arg6[%c32_80, %c0_81] : memref<112x1024xf32, #tpu.memory_space<vmem>>, vector<8x1024xf32>
    %c32_82 = arith.constant 32 : index
    %c0_83 = arith.constant 0 : index
    %188 = vector.load %arg4[%c32_82, %c0_83] : memref<112x1024xbf16, #tpu.memory_space<vmem>>, vector<8x1024xbf16>
    %189 = arith.extf %188 : vector<8x1024xbf16> to vector<8x1024xf32>
    %190 = arith.mulf %187, %189 : vector<8x1024xf32>
    %191 = vector.extract_strided_slice %190 {offsets = [0, 0], sizes = [4, 1024], strides = [1, 1]} : vector<8x1024xf32> to vector<4x1024xf32>
    %c55_i32_84 = arith.constant 55 : i32
    %192 = tpu.dynamic_rotate %191 by %c55_i32_84 dim 1 : vector<4x1024xf32>, i32 -> vector<4x1024xf32>
    %193 = arith.addf %186, %192 : vector<4x1024xf32>
    %194 = vector.extract_strided_slice %190 {offsets = [4, 0], sizes = [4, 1024], strides = [1, 1]} : vector<8x1024xf32> to vector<4x1024xf32>
    %c9_i32_85 = arith.constant 9 : i32
    %195 = tpu.dynamic_rotate %194 by %c9_i32_85 dim 1 : vector<4x1024xf32>, i32 -> vector<4x1024xf32>
    %196 = arith.addf %193, %195 : vector<4x1024xf32>
    %c40_86 = arith.constant 40 : index
    %c0_87 = arith.constant 0 : index
    %197 = vector.load %arg6[%c40_86, %c0_87] : memref<112x1024xf32, #tpu.memory_space<vmem>>, vector<8x1024xf32>
    %c40_88 = arith.constant 40 : index
    %c0_89 = arith.constant 0 : index
    %198 = vector.load %arg4[%c40_88, %c0_89] : memref<112x1024xbf16, #tpu.memory_space<vmem>>, vector<8x1024xbf16>
    %199 = arith.extf %198 : vector<8x1024xbf16> to vector<8x1024xf32>
    %200 = arith.mulf %197, %199 : vector<8x1024xf32>
    %201 = vector.extract_strided_slice %200 {offsets = [0, 0], sizes = [4, 1024], strides = [1, 1]} : vector<8x1024xf32> to vector<4x1024xf32>
    %c8_i32_90 = arith.constant 8 : i32
    %202 = tpu.dynamic_rotate %201 by %c8_i32_90 dim 1 : vector<4x1024xf32>, i32 -> vector<4x1024xf32>
    %203 = arith.addf %196, %202 : vector<4x1024xf32>
    %204 = vector.extract_strided_slice %200 {offsets = [4, 0], sizes = [4, 1024], strides = [1, 1]} : vector<8x1024xf32> to vector<4x1024xf32>
    %c7_i32_91 = arith.constant 7 : i32
    %205 = tpu.dynamic_rotate %204 by %c7_i32_91 dim 1 : vector<4x1024xf32>, i32 -> vector<4x1024xf32>
    %206 = arith.addf %203, %205 : vector<4x1024xf32>
    %c48_92 = arith.constant 48 : index
    %c0_93 = arith.constant 0 : index
    %207 = vector.load %arg6[%c48_92, %c0_93] : memref<112x1024xf32, #tpu.memory_space<vmem>>, vector<8x1024xf32>
    %c48_94 = arith.constant 48 : index
    %c0_95 = arith.constant 0 : index
    %208 = vector.load %arg4[%c48_94, %c0_95] : memref<112x1024xbf16, #tpu.memory_space<vmem>>, vector<8x1024xbf16>
    %209 = arith.extf %208 : vector<8x1024xbf16> to vector<8x1024xf32>
    %210 = arith.mulf %207, %209 : vector<8x1024xf32>
    %211 = vector.extract_strided_slice %210 {offsets = [0, 0], sizes = [4, 1024], strides = [1, 1]} : vector<8x1024xf32> to vector<4x1024xf32>
    %c1_i32_96 = arith.constant 1 : i32
    %212 = tpu.dynamic_rotate %211 by %c1_i32_96 dim 1 : vector<4x1024xf32>, i32 -> vector<4x1024xf32>
    %213 = arith.addf %206, %212 : vector<4x1024xf32>
    %214 = vector.extract_strided_slice %210 {offsets = [4, 0], sizes = [4, 1024], strides = [1, 1]} : vector<8x1024xf32> to vector<4x1024xf32>
    %215 = arith.addf %213, %214 : vector<4x1024xf32>
    %c56_97 = arith.constant 56 : index
    %c0_98 = arith.constant 0 : index
    %216 = vector.load %arg6[%c56_97, %c0_98] : memref<112x1024xf32, #tpu.memory_space<vmem>>, vector<8x1024xf32>
    %c56_99 = arith.constant 56 : index
    %c0_100 = arith.constant 0 : index
    %217 = vector.load %arg4[%c56_99, %c0_100] : memref<112x1024xbf16, #tpu.memory_space<vmem>>, vector<8x1024xbf16>
    %218 = arith.extf %217 : vector<8x1024xbf16> to vector<8x1024xf32>
    %219 = arith.mulf %216, %218 : vector<8x1024xf32>
    %220 = vector.extract_strided_slice %219 {offsets = [0, 0], sizes = [4, 1024], strides = [1, 1]} : vector<8x1024xf32> to vector<4x1024xf32>
    %c1023_i32_101 = arith.constant 1023 : i32
    %221 = tpu.dynamic_rotate %220 by %c1023_i32_101 dim 1 : vector<4x1024xf32>, i32 -> vector<4x1024xf32>
    %222 = arith.addf %215, %221 : vector<4x1024xf32>
    %223 = vector.extract_strided_slice %219 {offsets = [4, 0], sizes = [4, 1024], strides = [1, 1]} : vector<8x1024xf32> to vector<4x1024xf32>
    %c1017_i32_102 = arith.constant 1017 : i32
    %224 = tpu.dynamic_rotate %223 by %c1017_i32_102 dim 1 : vector<4x1024xf32>, i32 -> vector<4x1024xf32>
    %225 = arith.addf %222, %224 : vector<4x1024xf32>
    %c64_103 = arith.constant 64 : index
    %c0_104 = arith.constant 0 : index
    %226 = vector.load %arg6[%c64_103, %c0_104] : memref<112x1024xf32, #tpu.memory_space<vmem>>, vector<8x1024xf32>
    %c64_105 = arith.constant 64 : index
    %c0_106 = arith.constant 0 : index
    %227 = vector.load %arg4[%c64_105, %c0_106] : memref<112x1024xbf16, #tpu.memory_space<vmem>>, vector<8x1024xbf16>
    %228 = arith.extf %227 : vector<8x1024xbf16> to vector<8x1024xf32>
    %229 = arith.mulf %226, %228 : vector<8x1024xf32>
    %230 = vector.extract_strided_slice %229 {offsets = [0, 0], sizes = [4, 1024], strides = [1, 1]} : vector<8x1024xf32> to vector<4x1024xf32>
    %c1016_i32_107 = arith.constant 1016 : i32
    %231 = tpu.dynamic_rotate %230 by %c1016_i32_107 dim 1 : vector<4x1024xf32>, i32 -> vector<4x1024xf32>
    %232 = arith.addf %225, %231 : vector<4x1024xf32>
    %233 = vector.extract_strided_slice %229 {offsets = [4, 0], sizes = [4, 1024], strides = [1, 1]} : vector<8x1024xf32> to vector<4x1024xf32>
    %c1015_i32_108 = arith.constant 1015 : i32
    %234 = tpu.dynamic_rotate %233 by %c1015_i32_108 dim 1 : vector<4x1024xf32>, i32 -> vector<4x1024xf32>
    %235 = arith.addf %232, %234 : vector<4x1024xf32>
    %c72_109 = arith.constant 72 : index
    %c0_110 = arith.constant 0 : index
    %236 = vector.load %arg6[%c72_109, %c0_110] : memref<112x1024xf32, #tpu.memory_space<vmem>>, vector<8x1024xf32>
    %c72_111 = arith.constant 72 : index
    %c0_112 = arith.constant 0 : index
    %237 = vector.load %arg4[%c72_111, %c0_112] : memref<112x1024xbf16, #tpu.memory_space<vmem>>, vector<8x1024xbf16>
    %238 = arith.extf %237 : vector<8x1024xbf16> to vector<8x1024xf32>
    %239 = arith.mulf %236, %238 : vector<8x1024xf32>
    %240 = vector.extract_strided_slice %239 {offsets = [0, 0], sizes = [4, 1024], strides = [1, 1]} : vector<8x1024xf32> to vector<4x1024xf32>
    %c969_i32_113 = arith.constant 969 : i32
    %241 = tpu.dynamic_rotate %240 by %c969_i32_113 dim 1 : vector<4x1024xf32>, i32 -> vector<4x1024xf32>
    %242 = arith.addf %235, %241 : vector<4x1024xf32>
    %243 = vector.extract_strided_slice %239 {offsets = [4, 0], sizes = [4, 1024], strides = [1, 1]} : vector<8x1024xf32> to vector<4x1024xf32>
    %c968_i32_114 = arith.constant 968 : i32
    %244 = tpu.dynamic_rotate %243 by %c968_i32_114 dim 1 : vector<4x1024xf32>, i32 -> vector<4x1024xf32>
    %245 = arith.addf %242, %244 : vector<4x1024xf32>
    %c80_115 = arith.constant 80 : index
    %c0_116 = arith.constant 0 : index
    %246 = vector.load %arg6[%c80_115, %c0_116] : memref<112x1024xf32, #tpu.memory_space<vmem>>, vector<8x1024xf32>
    %c80_117 = arith.constant 80 : index
    %c0_118 = arith.constant 0 : index
    %247 = vector.load %arg4[%c80_117, %c0_118] : memref<112x1024xbf16, #tpu.memory_space<vmem>>, vector<8x1024xbf16>
    %248 = arith.extf %247 : vector<8x1024xbf16> to vector<8x1024xf32>
    %249 = arith.mulf %246, %248 : vector<8x1024xf32>
    %250 = vector.extract_strided_slice %249 {offsets = [0, 0], sizes = [4, 1024], strides = [1, 1]} : vector<8x1024xf32> to vector<4x1024xf32>
    %c967_i32_119 = arith.constant 967 : i32
    %251 = tpu.dynamic_rotate %250 by %c967_i32_119 dim 1 : vector<4x1024xf32>, i32 -> vector<4x1024xf32>
    %252 = arith.addf %245, %251 : vector<4x1024xf32>
    %253 = vector.extract_strided_slice %249 {offsets = [4, 0], sizes = [4, 1024], strides = [1, 1]} : vector<8x1024xf32> to vector<4x1024xf32>
    %c961_i32_120 = arith.constant 961 : i32
    %254 = tpu.dynamic_rotate %253 by %c961_i32_120 dim 1 : vector<4x1024xf32>, i32 -> vector<4x1024xf32>
    %255 = arith.addf %252, %254 : vector<4x1024xf32>
    %c88_121 = arith.constant 88 : index
    %c0_122 = arith.constant 0 : index
    %256 = vector.load %arg6[%c88_121, %c0_122] : memref<112x1024xf32, #tpu.memory_space<vmem>>, vector<8x1024xf32>
    %c88_123 = arith.constant 88 : index
    %c0_124 = arith.constant 0 : index
    %257 = vector.load %arg4[%c88_123, %c0_124] : memref<112x1024xbf16, #tpu.memory_space<vmem>>, vector<8x1024xbf16>
    %258 = arith.extf %257 : vector<8x1024xbf16> to vector<8x1024xf32>
    %259 = arith.mulf %256, %258 : vector<8x1024xf32>
    %260 = vector.extract_strided_slice %259 {offsets = [0, 0], sizes = [4, 1024], strides = [1, 1]} : vector<8x1024xf32> to vector<4x1024xf32>
    %c960_i32_125 = arith.constant 960 : i32
    %261 = tpu.dynamic_rotate %260 by %c960_i32_125 dim 1 : vector<4x1024xf32>, i32 -> vector<4x1024xf32>
    %262 = arith.addf %255, %261 : vector<4x1024xf32>
    %263 = vector.extract_strided_slice %259 {offsets = [4, 0], sizes = [4, 1024], strides = [1, 1]} : vector<8x1024xf32> to vector<4x1024xf32>
    %c959_i32_126 = arith.constant 959 : i32
    %264 = tpu.dynamic_rotate %263 by %c959_i32_126 dim 1 : vector<4x1024xf32>, i32 -> vector<4x1024xf32>
    %265 = arith.addf %262, %264 : vector<4x1024xf32>
    %c96_127 = arith.constant 96 : index
    %c0_128 = arith.constant 0 : index
    %266 = vector.load %arg6[%c96_127, %c0_128] : memref<112x1024xf32, #tpu.memory_space<vmem>>, vector<8x1024xf32>
    %c96_129 = arith.constant 96 : index
    %c0_130 = arith.constant 0 : index
    %267 = vector.load %arg4[%c96_129, %c0_130] : memref<112x1024xbf16, #tpu.memory_space<vmem>>, vector<8x1024xbf16>
    %268 = arith.extf %267 : vector<8x1024xbf16> to vector<8x1024xf32>
    %269 = arith.mulf %266, %268 : vector<8x1024xf32>
    %270 = vector.extract_strided_slice %269 {offsets = [0, 0], sizes = [4, 1024], strides = [1, 1]} : vector<8x1024xf32> to vector<4x1024xf32>
    %c953_i32_131 = arith.constant 953 : i32
    %271 = tpu.dynamic_rotate %270 by %c953_i32_131 dim 1 : vector<4x1024xf32>, i32 -> vector<4x1024xf32>
    %272 = arith.addf %265, %271 : vector<4x1024xf32>
    %273 = vector.extract_strided_slice %269 {offsets = [4, 0], sizes = [4, 1024], strides = [1, 1]} : vector<8x1024xf32> to vector<4x1024xf32>
    %c952_i32_132 = arith.constant 952 : i32
    %274 = tpu.dynamic_rotate %273 by %c952_i32_132 dim 1 : vector<4x1024xf32>, i32 -> vector<4x1024xf32>
    %275 = arith.addf %272, %274 : vector<4x1024xf32>
    %c104_133 = arith.constant 104 : index
    %c0_134 = arith.constant 0 : index
    %276 = vector.load %arg6[%c104_133, %c0_134] : memref<112x1024xf32, #tpu.memory_space<vmem>>, vector<8x1024xf32>
    %c104_135 = arith.constant 104 : index
    %c0_136 = arith.constant 0 : index
    %277 = vector.load %arg4[%c104_135, %c0_136] : memref<112x1024xbf16, #tpu.memory_space<vmem>>, vector<8x1024xbf16>
    %278 = arith.extf %277 : vector<8x1024xbf16> to vector<8x1024xf32>
    %279 = arith.mulf %276, %278 : vector<8x1024xf32>
    %280 = vector.extract_strided_slice %279 {offsets = [0, 0], sizes = [4, 1024], strides = [1, 1]} : vector<8x1024xf32> to vector<4x1024xf32>
    %c951_i32_137 = arith.constant 951 : i32
    %281 = tpu.dynamic_rotate %280 by %c951_i32_137 dim 1 : vector<4x1024xf32>, i32 -> vector<4x1024xf32>
    %282 = arith.addf %275, %281 : vector<4x1024xf32>
    %283 = arith.addf %282, %0 : vector<4x1024xf32>
    %cst_138 = arith.constant 0.000000e+00 : f32
    %284 = vector.broadcast %cst_138 : f32 to vector<4x1024xf32>
    %285 = arith.maximumf %283, %284 : vector<4x1024xf32>
    %c0_139 = arith.constant 0 : index
    %c0_140 = arith.constant 0 : index
    %286 = vector.load %arg5[%c0_139, %c0_140] : memref<4x1024xf32, #tpu.memory_space<vmem>>, vector<4x1024xf32>
    tpu.vector_store %arg5[%c0_139, %c0_140], %285 {strides = array<i32>} : memref<4x1024xf32, #tpu.memory_space<vmem>>, vector<4x1024xf32>,
    return
  }
  func.func @transform_0(%arg0: i32) -> (i32, i32) {
    %c0_i32 = arith.constant 0 : i32
    %c0_i32_0 = arith.constant 0 : i32
    %c0_i32_1 = arith.constant 0 : i32
    return %c0_i32, %c0_i32_0 : i32, i32
  }
  func.func @transform_1(%arg0: i32) -> (i32, i32) {
    %c0_i32 = arith.constant 0 : i32
    %c0_i32_0 = arith.constant 0 : i32
    %c0_i32_1 = arith.constant 0 : i32
    return %c0_i32, %c0_i32_0 : i32, i32
  }
  func.func @transform_2(%arg0: i32) -> (i32, i32) {
    %c0_i32 = arith.constant 0 : i32
    %c0_i32_0 = arith.constant 0 : i32
    %c0_i32_1 = arith.constant 0 : i32
    return %c0_i32, %c0_i32_0 : i32, i32
  }
  func.func @transform_3(%arg0: i32) -> (i32, i32) {
    %c0_i32 = arith.constant 0 : i32
    %c0_i32_0 = arith.constant 0 : i32
    %c0_i32_1 = arith.constant 0 : i32
    return %c0_i32, %c0_i32_0 : i32, i32
  }
  func.func @transform_4(%arg0: i32) -> (i32, i32) {
    %c0_i32 = arith.constant 0 : i32
    %c0_i32_0 = arith.constant 0 : i32
    %c0_i32_1 = arith.constant 0 : i32
    return %c0_i32, %c0_i32_0 : i32, i32
  }
}

</mosaic_0001>

<llo_original>
// kernel: resblock2_apply.1
$region0: #{resblock2_apply.1}
  #allocation0 [shape = 'u32[]', space=smem, size = 0x4, offset = 0x4, fixed_abs, tag = 'smem constant byte address 0x4 - core index']
  #allocation1 [shape = 'u32[72,128]{1,0:T(1,128)}', space=vmem, size = 0x9000, scoped, tag = 'internal scratch']
  #allocation2 [shape = 'f32[112,1024]{1,0:T(8,128)}', space=vmem, size = 0x70000, scoped, tag = 'scratch operand']
  %s0 = inlined_call_operand.vmem [shape: f32[4,1024], index: 0, kind: input, shape index: {}]
  %s1 = inlined_call_operand.vmem [shape: f32[112,4], index: 1, kind: input, shape index: {}]
  %s2 = inlined_call_operand.vmem [shape: f32[112,4], index: 2, kind: input, shape index: {}]
  %s3 = inlined_call_operand.vmem [shape: bf16[112,1024], index: 3, kind: input, shape index: {}]
  %s4 = inlined_call_operand.vmem [shape: f32[4,1024], index: 4, kind: output, shape index: {}]
  %s5 = sld [smem:[#allocation0]]
  $region26: #{resblock2_apply.1} parent=0
    _
  %s7 = ssub.s32 1, %s5
  %s8 = scalar_select 0, %s7, %s5
  // Predicated region
  $region2: #{resblock2_apply.1} parent=0 // pred_check
    _
  $region3: #{resblock2_apply.1} parent=0 // pred_check_branch
    %10 = sbr.rel (0) target = $region5
  $region4: #{resblock2_apply.1} parent=0 // pred_region
    _
  $region5: #{resblock2_apply.1} parent=0 // pred_fallthru
    _
  // Predicated region
  $region6: #{resblock2_apply.1} parent=0 // pred_check
    _
  $region7: #{resblock2_apply.1} parent=0 // pred_check_branch
    %12 = sbr.rel (0) target = $region9
  $region8: #{resblock2_apply.1} parent=0 // pred_region
    _
  $region9: #{resblock2_apply.1} parent=0 // pred_fallthru
    _
  // Predicated region
  $region10: #{resblock2_apply.1} parent=0 // pred_check
    _
  $region11: #{resblock2_apply.1} parent=0 // pred_check_branch
    %14 = sbr.rel (0) target = $region13
  $region12: #{resblock2_apply.1} parent=0 // pred_region
    _
  $region13: #{resblock2_apply.1} parent=0 // pred_fallthru
    _
  // Predicated region
  $region14: #{resblock2_apply.1} parent=0 // pred_check
    _
  $region15: #{resblock2_apply.1} parent=0 // pred_check_branch
    %16 = sbr.rel (0) target = $region17
  $region16: #{resblock2_apply.1} parent=0 // pred_region
    _
  $region17: #{resblock2_apply.1} parent=0 // pred_fallthru
    _
  %v17 = vld [vmem:[%s0] sm:$0xff]
  %v18 = vld [vmem:[%s0 + $0x8] sm:$0xff]
  %v19 = vld [vmem:[%s0 + $0x10] sm:$0xff]
  %v20 = vld [vmem:[%s0 + $0x18] sm:$0xff]
  %v21 = vld [vmem:[%s1] sm:$0xff]
  %v22 = vld [vmem:[%s1 + $0x8] sm:$0xff]
  %v23 = vld [vmem:[%s1 + $0x10] sm:$0xff]
  %v24 = vld [vmem:[%s1 + $0x18] sm:$0xff]
  %v25 = vld [vmem:[%s1 + $0x20] sm:$0xff]
  %v26 = vld [vmem:[%s1 + $0x28] sm:$0xff]
  %v27 = vld [vmem:[%s1 + $0x30] sm:$0xff]
  %v28 = vld [vmem:[%s1 + $0x38] sm:$0xff]
  %v29 = vld [vmem:[%s1 + $0x40] sm:$0xff]
  %v30 = vld [vmem:[%s1 + $0x48] sm:$0xff]
  %v31 = vld [vmem:[%s1 + $0x50] sm:$0xff]
  %v32 = vld [vmem:[%s1 + $0x58] sm:$0xff]
  %v33 = vld [vmem:[%s1 + $0x60] sm:$0xff]
  %v34 = vld [vmem:[%s1 + $0x68] sm:$0xff]
  %39 = vst [vmem:[#allocation1] ss:$2 sm:$0xff] %v17
  %s40 = scalar_lea.vmem [#allocation1], 16
  %41 = vst [vmem:[%s40] ss:$2 sm:$0xff] %v18
  %s42 = scalar_lea.vmem [#allocation1], 32
  %43 = vst [vmem:[%s42] ss:$2 sm:$0xff] %v19
  %s44 = scalar_lea.vmem [#allocation1], 48
  %45 = vst [vmem:[%s44] ss:$2 sm:$0xff] %v20
  %v46 = vld.sshfl [vmem:[#allocation1] sm:$0xff pattern:$0x75316420]
  %v47 = vld.sshfl [vmem:[#allocation1 + $0x8] sm:$0xff pattern:$0x75316420]
  %v48 = vld.sshfl [vmem:[#allocation1 + $0x10] sm:$0xff pattern:$0x75316420]
  %v49 = vld.sshfl [vmem:[#allocation1 + $0x18] sm:$0xff pattern:$0x75316420]
  %v50 = vld.sshfl [vmem:[#allocation1 + $0x20] sm:$0xff pattern:$0x75316420]
  %v51 = vld.sshfl [vmem:[#allocation1 + $0x28] sm:$0xff pattern:$0x75316420]
  %v52 = vld.sshfl [vmem:[#allocation1 + $0x30] sm:$0xff pattern:$0x75316420]
  %v53 = vld.sshfl [vmem:[#allocation1 + $0x38] sm:$0xff pattern:$0x75316420]
  %vm54 = vcmask 31744
  %v56 = vsel %vm54, %v21, 0
  %v59 = vsel %vm54, %v22, 0
  %v62 = vsel %vm54, %v23, 0
  %v65 = vsel %vm54, %v24, 0
  %v68 = vsel %vm54, %v25, 0
  %v71 = vsel %vm54, %v26, 0
  %v74 = vsel %vm54, %v27, 0
  %v77 = vsel %vm54, %v28, 0
  %v80 = vsel %vm54, %v29, 0
  %v83 = vsel %vm54, %v30, 0
  %v86 = vsel %vm54, %v31, 0
  %v89 = vsel %vm54, %v32, 0
  %v92 = vsel %vm54, %v33, 0
  %v95 = vsel %vm54, %v34, 0
  %vm97 = vcmask 1043456
  %v98 = vsel %vm97, %v46, 0
  %v100 = vsel %vm97, %v47, 0
  %v102 = vsel %vm97, %v48, 0
  %v104 = vsel %vm97, %v49, 0
  %v106 = vsel %vm97, %v50, 0
  %v108 = vsel %vm97, %v51, 0
  %v110 = vsel %vm97, %v52, 0
  %v112 = vsel %vm97, %v53, 0
  %114 = vmatpush.msra.mxu0 0.0
  %115 = vmatpush.msra.mxu0 0.0
  %116 = vmatpush.msra.mxu0 0.0
  %117 = vmatpush.msra.mxu0 0.0
  %118 = vmatpush.msra.mxu0 0.0
  %119 = vmatpush.msra.mxu0 0.0
  %120 = vmatpush.msra.mxu0 0.0
  %121 = vmatpush.msra.mxu0 0.0
  %122 = vmatpush.msra.mxu0 0.0
  %123 = vmatpush.msra.mxu0 0.0
  %124 = vmatpush.msra.mxu0 0.0
  %125 = vmatpush.msra.mxu0 0.0
  %126 = vmatpush.msra.mxu0 0.0
  %127 = vmatpush.msra.mxu0 0.0
  %128 = vmatpush.msra.mxu0 0.0
  %129 = vmatpush.msra.mxu0 %v98
  %130 = vmatmul.f32.gmra.mxu0 %v56
  %v131 = vpop.f32.mrf.mxu0
  %v132 = vadd.f32 0.0, %v131
  %133 = vmatmul.f32.gmra.mxu0 %v59
  %v134 = vpop.f32.mrf.mxu0
  %v135 = vadd.f32 0.0, %v134
  %136 = vmatmul.f32.gmra.mxu0 %v62
  %v137 = vpop.f32.mrf.mxu0
  %v138 = vadd.f32 0.0, %v137
  %139 = vmatmul.f32.gmra.mxu0 %v65
  %v140 = vpop.f32.mrf.mxu0
  %v141 = vadd.f32 0.0, %v140
  %142 = vmatmul.f32.gmra.mxu0 %v68
  %v143 = vpop.f32.mrf.mxu0
  %v144 = vadd.f32 0.0, %v143
  %145 = vmatmul.f32.gmra.mxu0 %v71
  %v146 = vpop.f32.mrf.mxu0
  %v147 = vadd.f32 0.0, %v146
  %148 = vmatmul.f32.gmra.mxu0 %v74
  %v149 = vpop.f32.mrf.mxu0
  %v150 = vadd.f32 0.0, %v149
  %151 = vmatmul.f32.gmra.mxu0 %v77
  %v152 = vpop.f32.mrf.mxu0
  %v153 = vadd.f32 0.0, %v152
  %154 = vmatmul.f32.gmra.mxu0 %v80
  %v155 = vpop.f32.mrf.mxu0
  %v156 = vadd.f32 0.0, %v155
  %157 = vmatmul.f32.gmra.mxu0 %v83
  %v158 = vpop.f32.mrf.mxu0
  %v159 = vadd.f32 0.0, %v158
  %160 = vmatmul.f32.gmra.mxu0 %v86
  %v161 = vpop.f32.mrf.mxu0
  %v162 = vadd.f32 0.0, %v161
  %163 = vmatmul.f32.gmra.mxu0 %v89
  %v164 = vpop.f32.mrf.mxu0
  %v165 = vadd.f32 0.0, %v164
  %166 = vmatmul.f32.gmra.mxu0 %v92
  %v167 = vpop.f32.mrf.mxu0
  %v168 = vadd.f32 0.0, %v167
  %169 = vmatmul.f32.gmra.mxu0 %v95
  %v170 = vpop.f32.mrf.mxu0
  %v171 = vadd.f32 0.0, %v170
  %172 = vdwg.mxu0
  %173 = vmatpush.msra.mxu0 0.0
  %174 = vmatpush.msra.mxu0 0.0
  %175 = vmatpush.msra.mxu0 0.0
  %176 = vmatpush.msra.mxu0 0.0
  %177 = vmatpush.msra.mxu0 0.0
  %178 = vmatpush.msra.mxu0 0.0
  %179 = vmatpush.msra.mxu0 0.0
  %180 = vmatpush.msra.mxu0 0.0
  %181 = vmatpush.msra.mxu0 0.0
  %182 = vmatpush.msra.mxu0 0.0
  %183 = vmatpush.msra.mxu0 0.0
  %184 = vmatpush.msra.mxu0 0.0
  %185 = vmatpush.msra.mxu0 0.0
  %186 = vmatpush.msra.mxu0 0.0
  %187 = vmatpush.msra.mxu0 0.0
  %188 = vmatpush.msra.mxu0 %v100
  %189 = vmatmul.f32.gmra.mxu0 %v56
  %v190 = vpop.f32.mrf.mxu0
  %v191 = vadd.f32 0.0, %v190
  %192 = vmatmul.f32.gmra.mxu0 %v59
  %v193 = vpop.f32.mrf.mxu0
  %v194 = vadd.f32 0.0, %v193
  %195 = vmatmul.f32.gmra.mxu0 %v62
  %v196 = vpop.f32.mrf.mxu0
  %v197 = vadd.f32 0.0, %v196
  %198 = vmatmul.f32.gmra.mxu0 %v65
  %v199 = vpop.f32.mrf.mxu0
  %v200 = vadd.f32 0.0, %v199
  %201 = vmatmul.f32.gmra.mxu0 %v68
  %v202 = vpop.f32.mrf.mxu0
  %v203 = vadd.f32 0.0, %v202
  %204 = vmatmul.f32.gmra.mxu0 %v71
  %v205 = vpop.f32.mrf.mxu0
  %v206 = vadd.f32 0.0, %v205
  %207 = vmatmul.f32.gmra.mxu0 %v74
  %v208 = vpop.f32.mrf.mxu0
  %v209 = vadd.f32 0.0, %v208
  %210 = vmatmul.f32.gmra.mxu0 %v77
  %v211 = vpop.f32.mrf.mxu0
  %v212 = vadd.f32 0.0, %v211
  %213 = vmatmul.f32.gmra.mxu0 %v80
  %v214 = vpop.f32.mrf.mxu0
  %v215 = vadd.f32 0.0, %v214
  %216 = vmatmul.f32.gmra.mxu0 %v83
  %v217 = vpop.f32.mrf.mxu0
  %v218 = vadd.f32 0.0, %v217
  %219 = vmatmul.f32.gmra.mxu0 %v86
  %v220 = vpop.f32.mrf.mxu0
  %v221 = vadd.f32 0.0, %v220
  %222 = vmatmul.f32.gmra.mxu0 %v89
  %v223 = vpop.f32.mrf.mxu0
  %v224 = vadd.f32 0.0, %v223
  %225 = vmatmul.f32.gmra.mxu0 %v92
  %v226 = vpop.f32.mrf.mxu0
  %v227 = vadd.f32 0.0, %v226
  %228 = vmatmul.f32.gmra.mxu0 %v95
  %v229 = vpop.f32.mrf.mxu0
  %v230 = vadd.f32 0.0, %v229
  %231 = vdwg.mxu0
  %232 = vmatpush.msra.mxu0 0.0
  %233 = vmatpush.msra.mxu0 0.0
  %234 = vmatpush.msra.mxu0 0.0
  %235 = vmatpush.msra.mxu0 0.0
  %236 = vmatpush.msra.mxu0 0.0
  %237 = vmatpush.msra.mxu0 0.0
  %238 = vmatpush.msra.mxu0 0.0
  %239 = vmatpush.msra.mxu0 0.0
  %240 = vmatpush.msra.mxu0 0.0
  %241 = vmatpush.msra.mxu0 0.0
  %242 = vmatpush.msra.mxu0 0.0
  %243 = vmatpush.msra.mxu0 0.0
  %244 = vmatpush.msra.mxu0 0.0
  %245 = vmatpush.msra.mxu0 0.0
  %246 = vmatpush.msra.mxu0 0.0
  %247 = vmatpush.msra.mxu0 %v102
  %248 = vmatmul.f32.gmra.mxu0 %v56
  %v249 = vpop.f32.mrf.mxu0
  %v250 = vadd.f32 0.0, %v249
  %251 = vmatmul.f32.gmra.mxu0 %v59
  %v252 = vpop.f32.mrf.mxu0
  %v253 = vadd.f32 0.0, %v252
  %254 = vmatmul.f32.gmra.mxu0 %v62
  %v255 = vpop.f32.mrf.mxu0
  %v256 = vadd.f32 0.0, %v255
  %257 = vmatmul.f32.gmra.mxu0 %v65
  %v258 = vpop.f32.mrf.mxu0
  %v259 = vadd.f32 0.0, %v258
  %260 = vmatmul.f32.gmra.mxu0 %v68
  %v261 = vpop.f32.mrf.mxu0
  %v262 = vadd.f32 0.0, %v261
  %263 = vmatmul.f32.gmra.mxu0 %v71
  %v264 = vpop.f32.mrf.mxu0
  %v265 = vadd.f32 0.0, %v264
  %266 = vmatmul.f32.gmra.mxu0 %v74
  %v267 = vpop.f32.mrf.mxu0
  %v268 = vadd.f32 0.0, %v267
  %269 = vmatmul.f32.gmra.mxu0 %v77
  %v270 = vpop.f32.mrf.mxu0
  %v271 = vadd.f32 0.0, %v270
  %272 = vmatmul.f32.gmra.mxu0 %v80
  %v273 = vpop.f32.mrf.mxu0
  %v274 = vadd.f32 0.0, %v273
  %275 = vmatmul.f32.gmra.mxu0 %v83
  %v276 = vpop.f32.mrf.mxu0
  %v277 = vadd.f32 0.0, %v276
  %278 = vmatmul.f32.gmra.mxu0 %v86
  %v279 = vpop.f32.mrf.mxu0
  %v280 = vadd.f32 0.0, %v279
  %281 = vmatmul.f32.gmra.mxu0 %v89
  %v282 = vpop.f32.mrf.mxu0
  %v283 = vadd.f32 0.0, %v282
  %284 = vmatmul.f32.gmra.mxu0 %v92
  %v285 = vpop.f32.mrf.mxu0
  %v286 = vadd.f32 0.0, %v285
  %287 = vmatmul.f32.gmra.mxu0 %v95
  %v288 = vpop.f32.mrf.mxu0
  %v289 = vadd.f32 0.0, %v288
  %290 = vdwg.mxu0
  %291 = vmatpush.msra.mxu0 0.0
  %292 = vmatpush.msra.mxu0 0.0
  %293 = vmatpush.msra.mxu0 0.0
  %294 = vmatpush.msra.mxu0 0.0
  %295 = vmatpush.msra.mxu0 0.0
  %296 = vmatpush.msra.mxu0 0.0
  %297 = vmatpush.msra.mxu0 0.0
  %298 = vmatpush.msra.mxu0 0.0
  %299 = vmatpush.msra.mxu0 0.0
  %300 = vmatpush.msra.mxu0 0.0
  %301 = vmatpush.msra.mxu0 0.0
  %302 = vmatpush.msra.mxu0 0.0
  %303 = vmatpush.msra.mxu0 0.0
  %304 = vmatpush.msra.mxu0 0.0
  %305 = vmatpush.msra.mxu0 0.0
  %306 = vmatpush.msra.mxu0 %v104
  %307 = vmatmul.f32.gmra.mxu0 %v56
  %v308 = vpop.f32.mrf.mxu0
  %v309 = vadd.f32 0.0, %v308
  %310 = vmatmul.f32.gmra.mxu0 %v59
  %v311 = vpop.f32.mrf.mxu0
  %v312 = vadd.f32 0.0, %v311
  %313 = vmatmul.f32.gmra.mxu0 %v62
  %v314 = vpop.f32.mrf.mxu0
  %v315 = vadd.f32 0.0, %v314
  %316 = vmatmul.f32.gmra.mxu0 %v65
  %v317 = vpop.f32.mrf.mxu0
  %v318 = vadd.f32 0.0, %v317
  %319 = vmatmul.f32.gmra.mxu0 %v68
  %v320 = vpop.f32.mrf.mxu0
  %v321 = vadd.f32 0.0, %v320
  %322 = vmatmul.f32.gmra.mxu0 %v71
  %v323 = vpop.f32.mrf.mxu0
  %v324 = vadd.f32 0.0, %v323
  %325 = vmatmul.f32.gmra.mxu0 %v74
  %v326 = vpop.f32.mrf.mxu0
  %v327 = vadd.f32 0.0, %v326
  %328 = vmatmul.f32.gmra.mxu0 %v77
  %v329 = vpop.f32.mrf.mxu0
  %v330 = vadd.f32 0.0, %v329
  %331 = vmatmul.f32.gmra.mxu0 %v80
  %v332 = vpop.f32.mrf.mxu0
  %v333 = vadd.f32 0.0, %v332
  %334 = vmatmul.f32.gmra.mxu0 %v83
  %v335 = vpop.f32.mrf.mxu0
  %v336 = vadd.f32 0.0, %v335
  %337 = vmatmul.f32.gmra.mxu0 %v86
  %v338 = vpop.f32.mrf.mxu0
  %v339 = vadd.f32 0.0, %v338
  %340 = vmatmul.f32.gmra.mxu0 %v89
  %v341 = vpop.f32.mrf.mxu0
  %v342 = vadd.f32 0.0, %v341
  %343 = vmatmul.f32.gmra.mxu0 %v92
  %v344 = vpop.f32.mrf.mxu0
  %v345 = vadd.f32 0.0, %v344
  %346 = vmatmul.f32.gmra.mxu0 %v95
  %v347 = vpop.f32.mrf.mxu0
  %v348 = vadd.f32 0.0, %v347
  %349 = vdwg.mxu0
  %350 = vmatpush.msra.mxu0 0.0
  %351 = vmatpush.msra.mxu0 0.0
  %352 = vmatpush.msra.mxu0 0.0
  %353 = vmatpush.msra.mxu0 0.0
  %354 = vmatpush.msra.mxu0 0.0
  %355 = vmatpush.msra.mxu0 0.0
  %356 = vmatpush.msra.mxu0 0.0
  %357 = vmatpush.msra.mxu0 0.0
  %358 = vmatpush.msra.mxu0 0.0
  %359 = vmatpush.msra.mxu0 0.0
  %360 = vmatpush.msra.mxu0 0.0
  %361 = vmatpush.msra.mxu0 0.0
  %362 = vmatpush.msra.mxu0 0.0
  %363 = vmatpush.msra.mxu0 0.0
  %364 = vmatpush.msra.mxu0 0.0
  %365 = vmatpush.msra.mxu0 %v106
  %366 = vmatmul.f32.gmra.mxu0 %v56
  %v367 = vpop.f32.mrf.mxu0
  %v368 = vadd.f32 0.0, %v367
  %369 = vmatmul.f32.gmra.mxu0 %v59
  %v370 = vpop.f32.mrf.mxu0
  %v371 = vadd.f32 0.0, %v370
  %372 = vmatmul.f32.gmra.mxu0 %v62
  %v373 = vpop.f32.mrf.mxu0
  %v374 = vadd.f32 0.0, %v373
  %375 = vmatmul.f32.gmra.mxu0 %v65
  %v376 = vpop.f32.mrf.mxu0
  %v377 = vadd.f32 0.0, %v376
  %378 = vmatmul.f32.gmra.mxu0 %v68
  %v379 = vpop.f32.mrf.mxu0
  %v380 = vadd.f32 0.0, %v379
  %381 = vmatmul.f32.gmra.mxu0 %v71
  %v382 = vpop.f32.mrf.mxu0
  %v383 = vadd.f32 0.0, %v382
  %384 = vmatmul.f32.gmra.mxu0 %v74
  %v385 = vpop.f32.mrf.mxu0
  %v386 = vadd.f32 0.0, %v385
  %387 = vmatmul.f32.gmra.mxu0 %v77
  %v388 = vpop.f32.mrf.mxu0
  %v389 = vadd.f32 0.0, %v388
  %390 = vmatmul.f32.gmra.mxu0 %v80
  %v391 = vpop.f32.mrf.mxu0
  %v392 = vadd.f32 0.0, %v391
  %393 = vmatmul.f32.gmra.mxu0 %v83
  %v394 = vpop.f32.mrf.mxu0
  %v395 = vadd.f32 0.0, %v394
  %396 = vmatmul.f32.gmra.mxu0 %v86
  %v397 = vpop.f32.mrf.mxu0
  %v398 = vadd.f32 0.0, %v397
  %399 = vmatmul.f32.gmra.mxu0 %v89
  %v400 = vpop.f32.mrf.mxu0
  %v401 = vadd.f32 0.0, %v400
  %402 = vmatmul.f32.gmra.mxu0 %v92
  %v403 = vpop.f32.mrf.mxu0
  %v404 = vadd.f32 0.0, %v403
  %405 = vmatmul.f32.gmra.mxu0 %v95
  %v406 = vpop.f32.mrf.mxu0
  %v407 = vadd.f32 0.0, %v406
  %408 = vdwg.mxu0
  %409 = vmatpush.msra.mxu0 0.0
  %410 = vmatpush.msra.mxu0 0.0
  %411 = vmatpush.msra.mxu0 0.0
  %412 = vmatpush.msra.mxu0 0.0
  %413 = vmatpush.msra.mxu0 0.0
  %414 = vmatpush.msra.mxu0 0.0
  %415 = vmatpush.msra.mxu0 0.0
  %416 = vmatpush.msra.mxu0 0.0
  %417 = vmatpush.msra.mxu0 0.0
  %418 = vmatpush.msra.mxu0 0.0
  %419 = vmatpush.msra.mxu0 0.0
  %420 = vmatpush.msra.mxu0 0.0
  %421 = vmatpush.msra.mxu0 0.0
  %422 = vmatpush.msra.mxu0 0.0
  %423 = vmatpush.msra.mxu0 0.0
  %424 = vmatpush.msra.mxu0 %v108
  %425 = vmatmul.f32.gmra.mxu0 %v56
  %v426 = vpop.f32.mrf.mxu0
  %v427 = vadd.f32 0.0, %v426
  %428 = vmatmul.f32.gmra.mxu0 %v59
  %v429 = vpop.f32.mrf.mxu0
  %v430 = vadd.f32 0.0, %v429
  %431 = vmatmul.f32.gmra.mxu0 %v62
  %v432 = vpop.f32.mrf.mxu0
  %v433 = vadd.f32 0.0, %v432
  %434 = vmatmul.f32.gmra.mxu0 %v65
  %v435 = vpop.f32.mrf.mxu0
  %v436 = vadd.f32 0.0, %v435
  %437 = vmatmul.f32.gmra.mxu0 %v68
  %v438 = vpop.f32.mrf.mxu0
  %v439 = vadd.f32 0.0, %v438
  %440 = vmatmul.f32.gmra.mxu0 %v71
  %v441 = vpop.f32.mrf.mxu0
  %v442 = vadd.f32 0.0, %v441
  %443 = vmatmul.f32.gmra.mxu0 %v74
  %v444 = vpop.f32.mrf.mxu0
  %v445 = vadd.f32 0.0, %v444
  %446 = vmatmul.f32.gmra.mxu0 %v77
  %v447 = vpop.f32.mrf.mxu0
  %v448 = vadd.f32 0.0, %v447
  %449 = vmatmul.f32.gmra.mxu0 %v80
  %v450 = vpop.f32.mrf.mxu0
  %v451 = vadd.f32 0.0, %v450
  %452 = vmatmul.f32.gmra.mxu0 %v83
  %v453 = vpop.f32.mrf.mxu0
  %v454 = vadd.f32 0.0, %v453
  %455 = vmatmul.f32.gmra.mxu0 %v86
  %v456 = vpop.f32.mrf.mxu0
  %v457 = vadd.f32 0.0, %v456
  %458 = vmatmul.f32.gmra.mxu0 %v89
  %v459 = vpop.f32.mrf.mxu0
  %v460 = vadd.f32 0.0, %v459
  %461 = vmatmul.f32.gmra.mxu0 %v92
  %v462 = vpop.f32.mrf.mxu0
  %v463 = vadd.f32 0.0, %v462
  %464 = vmatmul.f32.gmra.mxu0 %v95
  %v465 = vpop.f32.mrf.mxu0
  %v466 = vadd.f32 0.0, %v465
  %467 = vdwg.mxu0
  %468 = vmatpush.msra.mxu0 0.0
  %469 = vmatpush.msra.mxu0 0.0
  %470 = vmatpush.msra.mxu0 0.0
  %471 = vmatpush.msra.mxu0 0.0
  %472 = vmatpush.msra.mxu0 0.0
  %473 = vmatpush.msra.mxu0 0.0
  %474 = vmatpush.msra.mxu0 0.0
  %475 = vmatpush.msra.mxu0 0.0
  %476 = vmatpush.msra.mxu0 0.0
  %477 = vmatpush.msra.mxu0 0.0
  %478 = vmatpush.msra.mxu0 0.0
  %479 = vmatpush.msra.mxu0 0.0
  %480 = vmatpush.msra.mxu0 0.0
  %481 = vmatpush.msra.mxu0 0.0
  %482 = vmatpush.msra.mxu0 0.0
  %483 = vmatpush.msra.mxu0 %v110
  %484 = vmatmul.f32.gmra.mxu0 %v56
  %v485 = vpop.f32.mrf.mxu0
  %v486 = vadd.f32 0.0, %v485
  %487 = vmatmul.f32.gmra.mxu0 %v59
  %v488 = vpop.f32.mrf.mxu0
  %v489 = vadd.f32 0.0, %v488
  %490 = vmatmul.f32.gmra.mxu0 %v62
  %v491 = vpop.f32.mrf.mxu0
  %v492 = vadd.f32 0.0, %v491
  %493 = vmatmul.f32.gmra.mxu0 %v65
  %v494 = vpop.f32.mrf.mxu0
  %v495 = vadd.f32 0.0, %v494
  %496 = vmatmul.f32.gmra.mxu0 %v68
  %v497 = vpop.f32.mrf.mxu0
  %v498 = vadd.f32 0.0, %v497
  %499 = vmatmul.f32.gmra.mxu0 %v71
  %v500 = vpop.f32.mrf.mxu0
  %v501 = vadd.f32 0.0, %v500
  %502 = vmatmul.f32.gmra.mxu0 %v74
  %v503 = vpop.f32.mrf.mxu0
  %v504 = vadd.f32 0.0, %v503
  %505 = vmatmul.f32.gmra.mxu0 %v77
  %v506 = vpop.f32.mrf.mxu0
  %v507 = vadd.f32 0.0, %v506
  %508 = vmatmul.f32.gmra.mxu0 %v80
  %v509 = vpop.f32.mrf.mxu0
  %v510 = vadd.f32 0.0, %v509
  %511 = vmatmul.f32.gmra.mxu0 %v83
  %v512 = vpop.f32.mrf.mxu0
  %v513 = vadd.f32 0.0, %v512
  %514 = vmatmul.f32.gmra.mxu0 %v86
  %v515 = vpop.f32.mrf.mxu0
  %v516 = vadd.f32 0.0, %v515
  %517 = vmatmul.f32.gmra.mxu0 %v89
  %v518 = vpop.f32.mrf.mxu0
  %v519 = vadd.f32 0.0, %v518
  %520 = vmatmul.f32.gmra.mxu0 %v92
  %v521 = vpop.f32.mrf.mxu0
  %v522 = vadd.f32 0.0, %v521
  %523 = vmatmul.f32.gmra.mxu0 %v95
  %v524 = vpop.f32.mrf.mxu0
  %v525 = vadd.f32 0.0, %v524
  %526 = vdwg.mxu0
  %527 = vmatpush.msra.mxu0 0.0
  %528 = vmatpush.msra.mxu0 0.0
  %529 = vmatpush.msra.mxu0 0.0
  %530 = vmatpush.msra.mxu0 0.0
  %531 = vmatpush.msra.mxu0 0.0
  %532 = vmatpush.msra.mxu0 0.0
  %533 = vmatpush.msra.mxu0 0.0
  %534 = vmatpush.msra.mxu0 0.0
  %535 = vmatpush.msra.mxu0 0.0
  %536 = vmatpush.msra.mxu0 0.0
  %537 = vmatpush.msra.mxu0 0.0
  %538 = vmatpush.msra.mxu0 0.0
  %539 = vmatpush.msra.mxu0 0.0
  %540 = vmatpush.msra.mxu0 0.0
  %541 = vmatpush.msra.mxu0 0.0
  %542 = vmatpush.msra.mxu0 %v112
  %543 = vmatmul.f32.gmra.mxu0 %v56
  %v544 = vpop.f32.mrf.mxu0
  %v545 = vadd.f32 0.0, %v544
  %546 = vmatmul.f32.gmra.mxu0 %v59
  %v547 = vpop.f32.mrf.mxu0
  %v548 = vadd.f32 0.0, %v547
  %549 = vmatmul.f32.gmra.mxu0 %v62
  %v550 = vpop.f32.mrf.mxu0
  %v551 = vadd.f32 0.0, %v550
  %552 = vmatmul.f32.gmra.mxu0 %v65
  %v553 = vpop.f32.mrf.mxu0
  %v554 = vadd.f32 0.0, %v553
  %555 = vmatmul.f32.gmra.mxu0 %v68
  %v556 = vpop.f32.mrf.mxu0
  %v557 = vadd.f32 0.0, %v556
  %558 = vmatmul.f32.gmra.mxu0 %v71
  %v559 = vpop.f32.mrf.mxu0
  %v560 = vadd.f32 0.0, %v559
  %561 = vmatmul.f32.gmra.mxu0 %v74
  %v562 = vpop.f32.mrf.mxu0
  %v563 = vadd.f32 0.0, %v562
  %564 = vmatmul.f32.gmra.mxu0 %v77
  %v565 = vpop.f32.mrf.mxu0
  %v566 = vadd.f32 0.0, %v565
  %567 = vmatmul.f32.gmra.mxu0 %v80
  %v568 = vpop.f32.mrf.mxu0
  %v569 = vadd.f32 0.0, %v568
  %570 = vmatmul.f32.gmra.mxu0 %v83
  %v571 = vpop.f32.mrf.mxu0
  %v572 = vadd.f32 0.0, %v571
  %573 = vmatmul.f32.gmra.mxu0 %v86
  %v574 = vpop.f32.mrf.mxu0
  %v575 = vadd.f32 0.0, %v574
  %576 = vmatmul.f32.gmra.mxu0 %v89
  %v577 = vpop.f32.mrf.mxu0
  %v578 = vadd.f32 0.0, %v577
  %579 = vmatmul.f32.gmra.mxu0 %v92
  %v580 = vpop.f32.mrf.mxu0
  %v581 = vadd.f32 0.0, %v580
  %582 = vmatmul.f32.gmra.mxu0 %v95
  %v583 = vpop.f32.mrf.mxu0
  %v584 = vadd.f32 0.0, %v583
  %585 = vdwg.mxu0
  %586 = vst [vmem:[#allocation2] sm:$0xff] %v132
  %587 = vst [vmem:[#allocation2 + $0x8] sm:$0xff] %v191
  %588 = vst [vmem:[#allocation2 + $0x10] sm:$0xff] %v250
  %589 = vst [vmem:[#allocation2 + $0x18] sm:$0xff] %v309
  %590 = vst [vmem:[#allocation2 + $0x20] sm:$0xff] %v368
  %591 = vst [vmem:[#allocation2 + $0x28] sm:$0xff] %v427
  %592 = vst [vmem:[#allocation2 + $0x30] sm:$0xff] %v486
  %593 = vst [vmem:[#allocation2 + $0x38] sm:$0xff] %v545
  %594 = vst [vmem:[#allocation2 + $0x40] sm:$0xff] %v135
  %595 = vst [vmem:[#allocation2 + $0x48] sm:$0xff] %v194
  %596 = vst [vmem:[#allocation2 + $0x50] sm:$0xff] %v253
  %597 = vst [vmem:[#allocation2 + $0x58] sm:$0xff] %v312
  %598 = vst [vmem:[#allocation2 + $0x60] sm:$0xff] %v371
  %599 = vst [vmem:[#allocation2 + $0x68] sm:$0xff] %v430
  %600 = vst [vmem:[#allocation2 + $0x70] sm:$0xff] %v489
  %601 = vst [vmem:[#allocation2 + $0x78] sm:$0xff] %v548
  %602 = vst [vmem:[#allocation2 + $0x80] sm:$0xff] %v138
  %603 = vst [vmem:[#allocation2 + $0x88] sm:$0xff] %v197
  %604 = vst [vmem:[#allocation2 + $0x90] sm:$0xff] %v256
  %605 = vst [vmem:[#allocation2 + $0x98] sm:$0xff] %v315
  %606 = vst [vmem:[#allocation2 + $0xa0] sm:$0xff] %v374
  %607 = vst [vmem:[#allocation2 + $0xa8] sm:$0xff] %v433
  %608 = vst [vmem:[#allocation2 + $0xb0] sm:$0xff] %v492
  %609 = vst [vmem:[#allocation2 + $0xb8] sm:$0xff] %v551
  %610 = vst [vmem:[#allocation2 + $0xc0] sm:$0xff] %v141
  %611 = vst [vmem:[#allocation2 + $0xc8] sm:$0xff] %v200
  %612 = vst [vmem:[#allocation2 + $0xd0] sm:$0xff] %v259
  %613 = vst [vmem:[#allocation2 + $0xd8] sm:$0xff] %v318
  %614 = vst [vmem:[#allocation2 + $0xe0] sm:$0xff] %v377
  %615 = vst [vmem:[#allocation2 + $0xe8] sm:$0xff] %v436
  %616 = vst [vmem:[#allocation2 + $0xf0] sm:$0xff] %v495
  %617 = vst [vmem:[#allocation2 + $0xf8] sm:$0xff] %v554
  %618 = vst [vmem:[#allocation2 + $0x100] sm:$0xff] %v144
  %619 = vst [vmem:[#allocation2 + $0x108] sm:$0xff] %v203
  %620 = vst [vmem:[#allocation2 + $0x110] sm:$0xff] %v262
  %621 = vst [vmem:[#allocation2 + $0x118] sm:$0xff] %v321
  %622 = vst [vmem:[#allocation2 + $0x120] sm:$0xff] %v380
  %623 = vst [vmem:[#allocation2 + $0x128] sm:$0xff] %v439
  %624 = vst [vmem:[#allocation2 + $0x130] sm:$0xff] %v498
  %625 = vst [vmem:[#allocation2 + $0x138] sm:$0xff] %v557
  %626 = vst [vmem:[#allocation2 + $0x140] sm:$0xff] %v147
  %627 = vst [vmem:[#allocation2 + $0x148] sm:$0xff] %v206
  %628 = vst [vmem:[#allocation2 + $0x150] sm:$0xff] %v265
  %629 = vst [vmem:[#allocation2 + $0x158] sm:$0xff] %v324
  %630 = vst [vmem:[#allocation2 + $0x160] sm:$0xff] %v383
  %631 = vst [vmem:[#allocation2 + $0x168] sm:$0xff] %v442
  %632 = vst [vmem:[#allocation2 + $0x170] sm:$0xff] %v501
  %633 = vst [vmem:[#allocation2 + $0x178] sm:$0xff] %v560
  %634 = vst [vmem:[#allocation2 + $0x180] sm:$0xff] %v150
  %635 = vst [vmem:[#allocation2 + $0x188] sm:$0xff] %v209
  %636 = vst [vmem:[#allocation2 + $0x190] sm:$0xff] %v268
  %637 = vst [vmem:[#allocation2 + $0x198] sm:$0xff] %v327
  %638 = vst [vmem:[#allocation2 + $0x1a0] sm:$0xff] %v386
  %639 = vst [vmem:[#allocation2 + $0x1a8] sm:$0xff] %v445
  %640 = vst [vmem:[#allocation2 + $0x1b0] sm:$0xff] %v504
  %641 = vst [vmem:[#allocation2 + $0x1b8] sm:$0xff] %v563
  %642 = vst [vmem:[#allocation2 + $0x1c0] sm:$0xff] %v153
  %643 = vst [vmem:[#allocation2 + $0x1c8] sm:$0xff] %v212
  %644 = vst [vmem:[#allocation2 + $0x1d0] sm:$0xff] %v271
  %645 = vst [vmem:[#allocation2 + $0x1d8] sm:$0xff] %v330
  %646 = vst [vmem:[#allocation2 + $0x1e0] sm:$0xff] %v389
  %647 = vst [vmem:[#allocation2 + $0x1e8] sm:$0xff] %v448
  %648 = vst [vmem:[#allocation2 + $0x1f0] sm:$0xff] %v507
  %649 = vst [vmem:[#allocation2 + $0x1f8] sm:$0xff] %v566
  %650 = vst [vmem:[#allocation2 + $0x200] sm:$0xff] %v156
  %651 = vst [vmem:[#allocation2 + $0x208] sm:$0xff] %v215
  %652 = vst [vmem:[#allocation2 + $0x210] sm:$0xff] %v274
  %653 = vst [vmem:[#allocation2 + $0x218] sm:$0xff] %v333
  %654 = vst [vmem:[#allocation2 + $0x220] sm:$0xff] %v392
  %655 = vst [vmem:[#allocation2 + $0x228] sm:$0xff] %v451
  %656 = vst [vmem:[#allocation2 + $0x230] sm:$0xff] %v510
  %657 = vst [vmem:[#allocation2 + $0x238] sm:$0xff] %v569
  %658 = vst [vmem:[#allocation2 + $0x240] sm:$0xff] %v159
  %659 = vst [vmem:[#allocation2 + $0x248] sm:$0xff] %v218
  %660 = vst [vmem:[#allocation2 + $0x250] sm:$0xff] %v277
  %661 = vst [vmem:[#allocation2 + $0x258] sm:$0xff] %v336
  %662 = vst [vmem:[#allocation2 + $0x260] sm:$0xff] %v395
  %663 = vst [vmem:[#allocation2 + $0x268] sm:$0xff] %v454
  %664 = vst [vmem:[#allocation2 + $0x270] sm:$0xff] %v513
  %665 = vst [vmem:[#allocation2 + $0x278] sm:$0xff] %v572
  %666 = vst [vmem:[#allocation2 + $0x280] sm:$0xff] %v162
  %667 = vst [vmem:[#allocation2 + $0x288] sm:$0xff] %v221
  %668 = vst [vmem:[#allocation2 + $0x290] sm:$0xff] %v280
  %669 = vst [vmem:[#allocation2 + $0x298] sm:$0xff] %v339
  %670 = vst [vmem:[#allocation2 + $0x2a0] sm:$0xff] %v398
  %671 = vst [vmem:[#allocation2 + $0x2a8] sm:$0xff] %v457
  %672 = vst [vmem:[#allocation2 + $0x2b0] sm:$0xff] %v516
  %673 = vst [vmem:[#allocation2 + $0x2b8] sm:$0xff] %v575
  %674 = vst [vmem:[#allocation2 + $0x2c0] sm:$0xff] %v165
  %675 = vst [vmem:[#allocation2 + $0x2c8] sm:$0xff] %v224
  %676 = vst [vmem:[#allocation2 + $0x2d0] sm:$0xff] %v283
  %677 = vst [vmem:[#allocation2 + $0x2d8] sm:$0xff] %v342
  %678 = vst [vmem:[#allocation2 + $0x2e0] sm:$0xff] %v401
  %679 = vst [vmem:[#allocation2 + $0x2e8] sm:$0xff] %v460
  %680 = vst [vmem:[#allocation2 + $0x2f0] sm:$0xff] %v519
  %681 = vst [vmem:[#allocation2 + $0x2f8] sm:$0xff] %v578
  %682 = vst [vmem:[#allocation2 + $0x300] sm:$0xff] %v168
  %683 = vst [vmem:[#allocation2 + $0x308] sm:$0xff] %v227
  %684 = vst [vmem:[#allocation2 + $0x310] sm:$0xff] %v286
  %685 = vst [vmem:[#allocation2 + $0x318] sm:$0xff] %v345
  %686 = vst [vmem:[#allocation2 + $0x320] sm:$0xff] %v404
  %687 = vst [vmem:[#allocation2 + $0x328] sm:$0xff] %v463
  %688 = vst [vmem:[#allocation2 + $0x330] sm:$0xff] %v522
  %689 = vst [vmem:[#allocation2 + $0x338] sm:$0xff] %v581
  %690 = vst [vmem:[#allocation2 + $0x340] sm:$0xff] %v171
  %691 = vst [vmem:[#allocation2 + $0x348] sm:$0xff] %v230
  %692 = vst [vmem:[#allocation2 + $0x350] sm:$0xff] %v289
  %693 = vst [vmem:[#allocation2 + $0x358] sm:$0xff] %v348
  %694 = vst [vmem:[#allocation2 + $0x360] sm:$0xff] %v407
  %695 = vst [vmem:[#allocation2 + $0x368] sm:$0xff] %v466
  %696 = vst [vmem:[#allocation2 + $0x370] sm:$0xff] %v525
  %697 = vst [vmem:[#allocation2 + $0x378] sm:$0xff] %v584
  %v698 = vld [vmem:[#allocation2] sm:$0xff]
  %v699 = vld [vmem:[#allocation2 + $0x8] sm:$0xff]
  %v700 = vld [vmem:[#allocation2 + $0x10] sm:$0xff]
  %v701 = vld [vmem:[#allocation2 + $0x18] sm:$0xff]
  %v702 = vld [vmem:[#allocation2 + $0x20] sm:$0xff]
  %v703 = vld [vmem:[#allocation2 + $0x28] sm:$0xff]
  %v704 = vld [vmem:[#allocation2 + $0x30] sm:$0xff]
  %v705 = vld [vmem:[#allocation2 + $0x38] sm:$0xff]
  %v706 = vld [vmem:[%s3] sm:$0xff]
  %v707 = vld [vmem:[%s3 + $0x8] sm:$0xff]
  %v708 = vld [vmem:[%s3 + $0x10] sm:$0xff]
  %v709 = vld [vmem:[%s3 + $0x18] sm:$0xff]
  %v710 = vunpack.c.l.bf16 %v706
  %v711 = vunpack.c.h.bf16 %v706
  %v712 = vunpack.c.l.bf16 %v707
  %v713 = vunpack.c.h.bf16 %v707
  %v714 = vunpack.c.l.bf16 %v708
  %v715 = vunpack.c.h.bf16 %v708
  %v716 = vunpack.c.l.bf16 %v709
  %v717 = vunpack.c.h.bf16 %v709
  %v718 = vmul.f32 %v698, %v710
  %v719 = vmul.f32 %v699, %v711
  %v720 = vmul.f32 %v700, %v712
  %v721 = vmul.f32 %v701, %v713
  %v722 = vmul.f32 %v702, %v714
  %v723 = vmul.f32 %v703, %v715
  %v724 = vmul.f32 %v704, %v716
  %v725 = vmul.f32 %v705, %v717
  %726 = vrot.lane.b32.xlu0 %v718, 73
  %v727 = vpop.permute.xlu0 %726
  %728 = vrot.lane.b32.xlu0 %v719, 73
  %v729 = vpop.permute.xlu0 %728
  %730 = vrot.lane.b32.xlu0 %v720, 73
  %v731 = vpop.permute.xlu0 %730
  %732 = vrot.lane.b32.xlu0 %v721, 73
  %v733 = vpop.permute.xlu0 %732
  %734 = vrot.lane.b32.xlu0 %v722, 73
  %v735 = vpop.permute.xlu0 %734
  %736 = vrot.lane.b32.xlu0 %v723, 73
  %v737 = vpop.permute.xlu0 %736
  %738 = vrot.lane.b32.xlu0 %v724, 73
  %v739 = vpop.permute.xlu0 %738
  %740 = vrot.lane.b32.xlu0 %v725, 73
  %v741 = vpop.permute.xlu0 %740
  %v742 = vlaneseq
  %v743 = vand.u32 %v742, 127
  %vm744 = vcmp.lt.s32.totalorder %v743, 73
  %v745 = vsel %vm744, %v739, %v741
  %v746 = vsel %vm744, %v737, %v739
  %v747 = vsel %vm744, %v735, %v737
  %v748 = vsel %vm744, %v733, %v735
  %v749 = vsel %vm744, %v731, %v733
  %v750 = vsel %vm744, %v729, %v731
  %v751 = vsel %vm744, %v727, %v729
  %v752 = vsel %vm744, %v741, %v727
  %v753 = vadd.f32 %v752, 0.0
  %v754 = vadd.f32 %v751, 0.0
  %v755 = vadd.f32 %v750, 0.0
  %v756 = vadd.f32 %v749, 0.0
  %v757 = vadd.f32 %v748, 0.0
  %v758 = vadd.f32 %v747, 0.0
  %v759 = vadd.f32 %v746, 0.0
  %v760 = vadd.f32 %v745, 0.0
  %v769 = vrot.slane %v718, 4
  %v770 = vrot.slane %v719, 4
  %v771 = vrot.slane %v720, 4
  %v772 = vrot.slane %v721, 4
  %v773 = vrot.slane %v722, 4
  %v774 = vrot.slane %v723, 4
  %v775 = vrot.slane %v724, 4
  %v776 = vrot.slane %v725, 4
  %785 = vrot.lane.b32.xlu0 %v769, 72
  %v786 = vpop.permute.xlu0 %785
  %787 = vrot.lane.b32.xlu0 %v770, 72
  %v788 = vpop.permute.xlu0 %787
  %789 = vrot.lane.b32.xlu0 %v771, 72
  %v790 = vpop.permute.xlu0 %789
  %791 = vrot.lane.b32.xlu0 %v772, 72
  %v792 = vpop.permute.xlu0 %791
  %793 = vrot.lane.b32.xlu0 %v773, 72
  %v794 = vpop.permute.xlu0 %793
  %795 = vrot.lane.b32.xlu0 %v774, 72
  %v796 = vpop.permute.xlu0 %795
  %797 = vrot.lane.b32.xlu0 %v775, 72
  %v798 = vpop.permute.xlu0 %797
  %799 = vrot.lane.b32.xlu0 %v776, 72
  %v800 = vpop.permute.xlu0 %799
  %vm801 = vcmp.lt.s32.totalorder %v743, 72
  %v802 = vsel %vm801, %v798, %v800
  %v803 = vsel %vm801, %v796, %v798
  %v804 = vsel %vm801, %v794, %v796
  %v805 = vsel %vm801, %v792, %v794
  %v806 = vsel %vm801, %v790, %v792
  %v807 = vsel %vm801, %v788, %v790
  %v808 = vsel %vm801, %v786, %v788
  %v809 = vsel %vm801, %v800, %v786
  %v810 = vadd.f32 %v753, %v809
  %v811 = vadd.f32 %v754, %v808
  %v812 = vadd.f32 %v755, %v807
  %v813 = vadd.f32 %v756, %v806
  %v814 = vadd.f32 %v757, %v805
  %v815 = vadd.f32 %v758, %v804
  %v816 = vadd.f32 %v759, %v803
  %v817 = vadd.f32 %v760, %v802
  %v818 = vld [vmem:[#allocation2 + $0x40] sm:$0xff]
  %v819 = vld [vmem:[#allocation2 + $0x48] sm:$0xff]
  %v820 = vld [vmem:[#allocation2 + $0x50] sm:$0xff]
  %v821 = vld [vmem:[#allocation2 + $0x58] sm:$0xff]
  %v822 = vld [vmem:[#allocation2 + $0x60] sm:$0xff]
  %v823 = vld [vmem:[#allocation2 + $0x68] sm:$0xff]
  %v824 = vld [vmem:[#allocation2 + $0x70] sm:$0xff]
  %v825 = vld [vmem:[#allocation2 + $0x78] sm:$0xff]
  %v826 = vld [vmem:[%s3 + $0x20] sm:$0xff]
  %v827 = vld [vmem:[%s3 + $0x28] sm:$0xff]
  %v828 = vld [vmem:[%s3 + $0x30] sm:$0xff]
  %v829 = vld [vmem:[%s3 + $0x38] sm:$0xff]
  %v830 = vunpack.c.l.bf16 %v826
  %v831 = vunpack.c.h.bf16 %v826
  %v832 = vunpack.c.l.bf16 %v827
  %v833 = vunpack.c.h.bf16 %v827
  %v834 = vunpack.c.l.bf16 %v828
  %v835 = vunpack.c.h.bf16 %v828
  %v836 = vunpack.c.l.bf16 %v829
  %v837 = vunpack.c.h.bf16 %v829
  %v838 = vmul.f32 %v818, %v830
  %v839 = vmul.f32 %v819, %v831
  %v840 = vmul.f32 %v820, %v832
  %v841 = vmul.f32 %v821, %v833
  %v842 = vmul.f32 %v822, %v834
  %v843 = vmul.f32 %v823, %v835
  %v844 = vmul.f32 %v824, %v836
  %v845 = vmul.f32 %v825, %v837
  %846 = vrot.lane.b32.xlu0 %v838, 71
  %v847 = vpop.permute.xlu0 %846
  %848 = vrot.lane.b32.xlu0 %v839, 71
  %v849 = vpop.permute.xlu0 %848
  %850 = vrot.lane.b32.xlu0 %v840, 71
  %v851 = vpop.permute.xlu0 %850
  %852 = vrot.lane.b32.xlu0 %v841, 71
  %v853 = vpop.permute.xlu0 %852
  %854 = vrot.lane.b32.xlu0 %v842, 71
  %v855 = vpop.permute.xlu0 %854
  %856 = vrot.lane.b32.xlu0 %v843, 71
  %v857 = vpop.permute.xlu0 %856
  %858 = vrot.lane.b32.xlu0 %v844, 71
  %v859 = vpop.permute.xlu0 %858
  %860 = vrot.lane.b32.xlu0 %v845, 71
  %v861 = vpop.permute.xlu0 %860
  %vm862 = vcmp.lt.s32.totalorder %v743, 71
  %v863 = vsel %vm862, %v859, %v861
  %v864 = vsel %vm862, %v857, %v859
  %v865 = vsel %vm862, %v855, %v857
  %v866 = vsel %vm862, %v853, %v855
  %v867 = vsel %vm862, %v851, %v853
  %v868 = vsel %vm862, %v849, %v851
  %v869 = vsel %vm862, %v847, %v849
  %v870 = vsel %vm862, %v861, %v847
  %v871 = vadd.f32 %v810, %v870
  %v872 = vadd.f32 %v811, %v869
  %v873 = vadd.f32 %v812, %v868
  %v874 = vadd.f32 %v813, %v867
  %v875 = vadd.f32 %v814, %v866
  %v876 = vadd.f32 %v815, %v865
  %v877 = vadd.f32 %v816, %v864
  %v878 = vadd.f32 %v817, %v863
  %v887 = vrot.slane %v838, 4
  %v888 = vrot.slane %v839, 4
  %v889 = vrot.slane %v840, 4
  %v890 = vrot.slane %v841, 4
  %v891 = vrot.slane %v842, 4
  %v892 = vrot.slane %v843, 4
  %v893 = vrot.slane %v844, 4
  %v894 = vrot.slane %v845, 4
  %903 = vrot.lane.b32.xlu0 %v887, 65
  %v904 = vpop.permute.xlu0 %903
  %905 = vrot.lane.b32.xlu0 %v888, 65
  %v906 = vpop.permute.xlu0 %905
  %907 = vrot.lane.b32.xlu0 %v889, 65
  %v908 = vpop.permute.xlu0 %907
  %909 = vrot.lane.b32.xlu0 %v890, 65
  %v910 = vpop.permute.xlu0 %909
  %911 = vrot.lane.b32.xlu0 %v891, 65
  %v912 = vpop.permute.xlu0 %911
  %913 = vrot.lane.b32.xlu0 %v892, 65
  %v914 = vpop.permute.xlu0 %913
  %915 = vrot.lane.b32.xlu0 %v893, 65
  %v916 = vpop.permute.xlu0 %915
  %917 = vrot.lane.b32.xlu0 %v894, 65
  %v918 = vpop.permute.xlu0 %917
  %vm919 = vcmp.lt.s32.totalorder %v743, 65
  %v920 = vsel %vm919, %v916, %v918
  %v921 = vsel %vm919, %v914, %v916
  %v922 = vsel %vm919, %v912, %v914
  %v923 = vsel %vm919, %v910, %v912
  %v924 = vsel %vm919, %v908, %v910
  %v925 = vsel %vm919, %v906, %v908
  %v926 = vsel %vm919, %v904, %v906
  %v927 = vsel %vm919, %v918, %v904
  %v928 = vadd.f32 %v871, %v927
  %v929 = vadd.f32 %v872, %v926
  %v930 = vadd.f32 %v873, %v925
  %v931 = vadd.f32 %v874, %v924
  %v932 = vadd.f32 %v875, %v923
  %v933 = vadd.f32 %v876, %v922
  %v934 = vadd.f32 %v877, %v921
  %v935 = vadd.f32 %v878, %v920
  %v936 = vld [vmem:[#allocation2 + $0x80] sm:$0xff]
  %v937 = vld [vmem:[#allocation2 + $0x88] sm:$0xff]
  %v938 = vld [vmem:[#allocation2 + $0x90] sm:$0xff]
  %v939 = vld [vmem:[#allocation2 + $0x98] sm:$0xff]
  %v940 = vld [vmem:[#allocation2 + $0xa0] sm:$0xff]
  %v941 = vld [vmem:[#allocation2 + $0xa8] sm:$0xff]
  %v942 = vld [vmem:[#allocation2 + $0xb0] sm:$0xff]
  %v943 = vld [vmem:[#allocation2 + $0xb8] sm:$0xff]
  %v944 = vld [vmem:[%s3 + $0x40] sm:$0xff]
  %v945 = vld [vmem:[%s3 + $0x48] sm:$0xff]
  %v946 = vld [vmem:[%s3 + $0x50] sm:$0xff]
  %v947 = vld [vmem:[%s3 + $0x58] sm:$0xff]
  %v948 = vunpack.c.l.bf16 %v944
  %v949 = vunpack.c.h.bf16 %v944
  %v950 = vunpack.c.l.bf16 %v945
  %v951 = vunpack.c.h.bf16 %v945
  %v952 = vunpack.c.l.bf16 %v946
  %v953 = vunpack.c.h.bf16 %v946
  %v954 = vunpack.c.l.bf16 %v947
  %v955 = vunpack.c.h.bf16 %v947
  %v956 = vmul.f32 %v936, %v948
  %v957 = vmul.f32 %v937, %v949
  %v958 = vmul.f32 %v938, %v950
  %v959 = vmul.f32 %v939, %v951
  %v960 = vmul.f32 %v940, %v952
  %v961 = vmul.f32 %v941, %v953
  %v962 = vmul.f32 %v942, %v954
  %v963 = vmul.f32 %v943, %v955
  %964 = vrot.lane.b32.xlu0 %v956, 64
  %v965 = vpop.permute.xlu0 %964
  %966 = vrot.lane.b32.xlu0 %v957, 64
  %v967 = vpop.permute.xlu0 %966
  %968 = vrot.lane.b32.xlu0 %v958, 64
  %v969 = vpop.permute.xlu0 %968
  %970 = vrot.lane.b32.xlu0 %v959, 64
  %v971 = vpop.permute.xlu0 %970
  %972 = vrot.lane.b32.xlu0 %v960, 64
  %v973 = vpop.permute.xlu0 %972
  %974 = vrot.lane.b32.xlu0 %v961, 64
  %v975 = vpop.permute.xlu0 %974
  %976 = vrot.lane.b32.xlu0 %v962, 64
  %v977 = vpop.permute.xlu0 %976
  %978 = vrot.lane.b32.xlu0 %v963, 64
  %v979 = vpop.permute.xlu0 %978
  %vm980 = vcmp.lt.s32.totalorder %v743, 64
  %v981 = vsel %vm980, %v977, %v979
  %v982 = vsel %vm980, %v975, %v977
  %v983 = vsel %vm980, %v973, %v975
  %v984 = vsel %vm980, %v971, %v973
  %v985 = vsel %vm980, %v969, %v971
  %v986 = vsel %vm980, %v967, %v969
  %v987 = vsel %vm980, %v965, %v967
  %v988 = vsel %vm980, %v979, %v965
  %v989 = vadd.f32 %v928, %v988
  %v990 = vadd.f32 %v929, %v987
  %v991 = vadd.f32 %v930, %v986
  %v992 = vadd.f32 %v931, %v985
  %v993 = vadd.f32 %v932, %v984
  %v994 = vadd.f32 %v933, %v983
  %v995 = vadd.f32 %v934, %v982
  %v996 = vadd.f32 %v935, %v981
  %v1005 = vrot.slane %v956, 4
  %v1006 = vrot.slane %v957, 4
  %v1007 = vrot.slane %v958, 4
  %v1008 = vrot.slane %v959, 4
  %v1009 = vrot.slane %v960, 4
  %v1010 = vrot.slane %v961, 4
  %v1011 = vrot.slane %v962, 4
  %v1012 = vrot.slane %v963, 4
  %1021 = vrot.lane.b32.xlu0 %v1005, 63
  %v1022 = vpop.permute.xlu0 %1021
  %1023 = vrot.lane.b32.xlu0 %v1006, 63
  %v1024 = vpop.permute.xlu0 %1023
  %1025 = vrot.lane.b32.xlu0 %v1007, 63
  %v1026 = vpop.permute.xlu0 %1025
  %1027 = vrot.lane.b32.xlu0 %v1008, 63
  %v1028 = vpop.permute.xlu0 %1027
  %1029 = vrot.lane.b32.xlu0 %v1009, 63
  %v1030 = vpop.permute.xlu0 %1029
  %1031 = vrot.lane.b32.xlu0 %v1010, 63
  %v1032 = vpop.permute.xlu0 %1031
  %1033 = vrot.lane.b32.xlu0 %v1011, 63
  %v1034 = vpop.permute.xlu0 %1033
  %1035 = vrot.lane.b32.xlu0 %v1012, 63
  %v1036 = vpop.permute.xlu0 %1035
  %vm1037 = vcmp.lt.s32.totalorder %v743, 63
  %v1038 = vsel %vm1037, %v1034, %v1036
  %v1039 = vsel %vm1037, %v1032, %v1034
  %v1040 = vsel %vm1037, %v1030, %v1032
  %v1041 = vsel %vm1037, %v1028, %v1030
  %v1042 = vsel %vm1037, %v1026, %v1028
  %v1043 = vsel %vm1037, %v1024, %v1026
  %v1044 = vsel %vm1037, %v1022, %v1024
  %v1045 = vsel %vm1037, %v1036, %v1022
  %v1046 = vadd.f32 %v989, %v1045
  %v1047 = vadd.f32 %v990, %v1044
  %v1048 = vadd.f32 %v991, %v1043
  %v1049 = vadd.f32 %v992, %v1042
  %v1050 = vadd.f32 %v993, %v1041
  %v1051 = vadd.f32 %v994, %v1040
  %v1052 = vadd.f32 %v995, %v1039
  %v1053 = vadd.f32 %v996, %v1038
  %v1054 = vld [vmem:[#allocation2 + $0xc0] sm:$0xff]
  %v1055 = vld [vmem:[#allocation2 + $0xc8] sm:$0xff]
  %v1056 = vld [vmem:[#allocation2 + $0xd0] sm:$0xff]
  %v1057 = vld [vmem:[#allocation2 + $0xd8] sm:$0xff]
  %v1058 = vld [vmem:[#allocation2 + $0xe0] sm:$0xff]
  %v1059 = vld [vmem:[#allocation2 + $0xe8] sm:$0xff]
  %v1060 = vld [vmem:[#allocation2 + $0xf0] sm:$0xff]
  %v1061 = vld [vmem:[#allocation2 + $0xf8] sm:$0xff]
  %v1062 = vld [vmem:[%s3 + $0x60] sm:$0xff]
  %v1063 = vld [vmem:[%s3 + $0x68] sm:$0xff]
  %v1064 = vld [vmem:[%s3 + $0x70] sm:$0xff]
  %v1065 = vld [vmem:[%s3 + $0x78] sm:$0xff]
  %v1066 = vunpack.c.l.bf16 %v1062
  %v1067 = vunpack.c.h.bf16 %v1062
  %v1068 = vunpack.c.l.bf16 %v1063
  %v1069 = vunpack.c.h.bf16 %v1063
  %v1070 = vunpack.c.l.bf16 %v1064
  %v1071 = vunpack.c.h.bf16 %v1064
  %v1072 = vunpack.c.l.bf16 %v1065
  %v1073 = vunpack.c.h.bf16 %v1065
  %v1074 = vmul.f32 %v1054, %v1066
  %v1075 = vmul.f32 %v1055, %v1067
  %v1076 = vmul.f32 %v1056, %v1068
  %v1077 = vmul.f32 %v1057, %v1069
  %v1078 = vmul.f32 %v1058, %v1070
  %v1079 = vmul.f32 %v1059, %v1071
  %v1080 = vmul.f32 %v1060, %v1072
  %v1081 = vmul.f32 %v1061, %v1073
  %1082 = vrot.lane.b32.xlu0 %v1074, 57
  %v1083 = vpop.permute.xlu0 %1082
  %1084 = vrot.lane.b32.xlu0 %v1075, 57
  %v1085 = vpop.permute.xlu0 %1084
  %1086 = vrot.lane.b32.xlu0 %v1076, 57
  %v1087 = vpop.permute.xlu0 %1086
  %1088 = vrot.lane.b32.xlu0 %v1077, 57
  %v1089 = vpop.permute.xlu0 %1088
  %1090 = vrot.lane.b32.xlu0 %v1078, 57
  %v1091 = vpop.permute.xlu0 %1090
  %1092 = vrot.lane.b32.xlu0 %v1079, 57
  %v1093 = vpop.permute.xlu0 %1092
  %1094 = vrot.lane.b32.xlu0 %v1080, 57
  %v1095 = vpop.permute.xlu0 %1094
  %1096 = vrot.lane.b32.xlu0 %v1081, 57
  %v1097 = vpop.permute.xlu0 %1096
  %vm1098 = vcmp.lt.s32.totalorder %v743, 57
  %v1099 = vsel %vm1098, %v1095, %v1097
  %v1100 = vsel %vm1098, %v1093, %v1095
  %v1101 = vsel %vm1098, %v1091, %v1093
  %v1102 = vsel %vm1098, %v1089, %v1091
  %v1103 = vsel %vm1098, %v1087, %v1089
  %v1104 = vsel %vm1098, %v1085, %v1087
  %v1105 = vsel %vm1098, %v1083, %v1085
  %v1106 = vsel %vm1098, %v1097, %v1083
  %v1107 = vadd.f32 %v1046, %v1106
  %v1108 = vadd.f32 %v1047, %v1105
  %v1109 = vadd.f32 %v1048, %v1104
  %v1110 = vadd.f32 %v1049, %v1103
  %v1111 = vadd.f32 %v1050, %v1102
  %v1112 = vadd.f32 %v1051, %v1101
  %v1113 = vadd.f32 %v1052, %v1100
  %v1114 = vadd.f32 %v1053, %v1099
  %v1123 = vrot.slane %v1074, 4
  %v1124 = vrot.slane %v1075, 4
  %v1125 = vrot.slane %v1076, 4
  %v1126 = vrot.slane %v1077, 4
  %v1127 = vrot.slane %v1078, 4
  %v1128 = vrot.slane %v1079, 4
  %v1129 = vrot.slane %v1080, 4
  %v1130 = vrot.slane %v1081, 4
  %1139 = vrot.lane.b32.xlu0 %v1123, 56
  %v1140 = vpop.permute.xlu0 %1139
  %1141 = vrot.lane.b32.xlu0 %v1124, 56
  %v1142 = vpop.permute.xlu0 %1141
  %1143 = vrot.lane.b32.xlu0 %v1125, 56
  %v1144 = vpop.permute.xlu0 %1143
  %1145 = vrot.lane.b32.xlu0 %v1126, 56
  %v1146 = vpop.permute.xlu0 %1145
  %1147 = vrot.lane.b32.xlu0 %v1127, 56
  %v1148 = vpop.permute.xlu0 %1147
  %1149 = vrot.lane.b32.xlu0 %v1128, 56
  %v1150 = vpop.permute.xlu0 %1149
  %1151 = vrot.lane.b32.xlu0 %v1129, 56
  %v1152 = vpop.permute.xlu0 %1151
  %1153 = vrot.lane.b32.xlu0 %v1130, 56
  %v1154 = vpop.permute.xlu0 %1153
  %vm1155 = vcmp.lt.s32.totalorder %v743, 56
  %v1156 = vsel %vm1155, %v1152, %v1154
  %v1157 = vsel %vm1155, %v1150, %v1152
  %v1158 = vsel %vm1155, %v1148, %v1150
  %v1159 = vsel %vm1155, %v1146, %v1148
  %v1160 = vsel %vm1155, %v1144, %v1146
  %v1161 = vsel %vm1155, %v1142, %v1144
  %v1162 = vsel %vm1155, %v1140, %v1142
  %v1163 = vsel %vm1155, %v1154, %v1140
  %v1164 = vadd.f32 %v1107, %v1163
  %v1165 = vadd.f32 %v1108, %v1162
  %v1166 = vadd.f32 %v1109, %v1161
  %v1167 = vadd.f32 %v1110, %v1160
  %v1168 = vadd.f32 %v1111, %v1159
  %v1169 = vadd.f32 %v1112, %v1158
  %v1170 = vadd.f32 %v1113, %v1157
  %v1171 = vadd.f32 %v1114, %v1156
  %v1172 = vld [vmem:[#allocation2 + $0x100] sm:$0xff]
  %v1173 = vld [vmem:[#allocation2 + $0x108] sm:$0xff]
  %v1174 = vld [vmem:[#allocation2 + $0x110] sm:$0xff]
  %v1175 = vld [vmem:[#allocation2 + $0x118] sm:$0xff]
  %v1176 = vld [vmem:[#allocation2 + $0x120] sm:$0xff]
  %v1177 = vld [vmem:[#allocation2 + $0x128] sm:$0xff]
  %v1178 = vld [vmem:[#allocation2 + $0x130] sm:$0xff]
  %v1179 = vld [vmem:[#allocation2 + $0x138] sm:$0xff]
  %v1180 = vld [vmem:[%s3 + $0x80] sm:$0xff]
  %v1181 = vld [vmem:[%s3 + $0x88] sm:$0xff]
  %v1182 = vld [vmem:[%s3 + $0x90] sm:$0xff]
  %v1183 = vld [vmem:[%s3 + $0x98] sm:$0xff]
  %v1184 = vunpack.c.l.bf16 %v1180
  %v1185 = vunpack.c.h.bf16 %v1180
  %v1186 = vunpack.c.l.bf16 %v1181
  %v1187 = vunpack.c.h.bf16 %v1181
  %v1188 = vunpack.c.l.bf16 %v1182
  %v1189 = vunpack.c.h.bf16 %v1182
  %v1190 = vunpack.c.l.bf16 %v1183
  %v1191 = vunpack.c.h.bf16 %v1183
  %v1192 = vmul.f32 %v1172, %v1184
  %v1193 = vmul.f32 %v1173, %v1185
  %v1194 = vmul.f32 %v1174, %v1186
  %v1195 = vmul.f32 %v1175, %v1187
  %v1196 = vmul.f32 %v1176, %v1188
  %v1197 = vmul.f32 %v1177, %v1189
  %v1198 = vmul.f32 %v1178, %v1190
  %v1199 = vmul.f32 %v1179, %v1191
  %1200 = vrot.lane.b32.xlu0 %v1192, 55
  %v1201 = vpop.permute.xlu0 %1200
  %1202 = vrot.lane.b32.xlu0 %v1193, 55
  %v1203 = vpop.permute.xlu0 %1202
  %1204 = vrot.lane.b32.xlu0 %v1194, 55
  %v1205 = vpop.permute.xlu0 %1204
  %1206 = vrot.lane.b32.xlu0 %v1195, 55
  %v1207 = vpop.permute.xlu0 %1206
  %1208 = vrot.lane.b32.xlu0 %v1196, 55
  %v1209 = vpop.permute.xlu0 %1208
  %1210 = vrot.lane.b32.xlu0 %v1197, 55
  %v1211 = vpop.permute.xlu0 %1210
  %1212 = vrot.lane.b32.xlu0 %v1198, 55
  %v1213 = vpop.permute.xlu0 %1212
  %1214 = vrot.lane.b32.xlu0 %v1199, 55
  %v1215 = vpop.permute.xlu0 %1214
  %vm1216 = vcmp.lt.s32.totalorder %v743, 55
  %v1217 = vsel %vm1216, %v1213, %v1215
  %v1218 = vsel %vm1216, %v1211, %v1213
  %v1219 = vsel %vm1216, %v1209, %v1211
  %v1220 = vsel %vm1216, %v1207, %v1209
  %v1221 = vsel %vm1216, %v1205, %v1207
  %v1222 = vsel %vm1216, %v1203, %v1205
  %v1223 = vsel %vm1216, %v1201, %v1203
  %v1224 = vsel %vm1216, %v1215, %v1201
  %v1225 = vadd.f32 %v1164, %v1224
  %v1226 = vadd.f32 %v1165, %v1223
  %v1227 = vadd.f32 %v1166, %v1222
  %v1228 = vadd.f32 %v1167, %v1221
  %v1229 = vadd.f32 %v1168, %v1220
  %v1230 = vadd.f32 %v1169, %v1219
  %v1231 = vadd.f32 %v1170, %v1218
  %v1232 = vadd.f32 %v1171, %v1217
  %v1241 = vrot.slane %v1192, 4
  %v1242 = vrot.slane %v1193, 4
  %v1243 = vrot.slane %v1194, 4
  %v1244 = vrot.slane %v1195, 4
  %v1245 = vrot.slane %v1196, 4
  %v1246 = vrot.slane %v1197, 4
  %v1247 = vrot.slane %v1198, 4
  %v1248 = vrot.slane %v1199, 4
  %1257 = vrot.lane.b32.xlu0 %v1241, 9
  %v1258 = vpop.permute.xlu0 %1257
  %1259 = vrot.lane.b32.xlu0 %v1242, 9
  %v1260 = vpop.permute.xlu0 %1259
  %1261 = vrot.lane.b32.xlu0 %v1243, 9
  %v1262 = vpop.permute.xlu0 %1261
  %1263 = vrot.lane.b32.xlu0 %v1244, 9
  %v1264 = vpop.permute.xlu0 %1263
  %1265 = vrot.lane.b32.xlu0 %v1245, 9
  %v1266 = vpop.permute.xlu0 %1265
  %1267 = vrot.lane.b32.xlu0 %v1246, 9
  %v1268 = vpop.permute.xlu0 %1267
  %1269 = vrot.lane.b32.xlu0 %v1247, 9
  %v1270 = vpop.permute.xlu0 %1269
  %1271 = vrot.lane.b32.xlu0 %v1248, 9
  %v1272 = vpop.permute.xlu0 %1271
  %vm1273 = vcmp.lt.s32.totalorder %v743, 9
  %v1274 = vsel %vm1273, %v1270, %v1272
  %v1275 = vsel %vm1273, %v1268, %v1270
  %v1276 = vsel %vm1273, %v1266, %v1268
  %v1277 = vsel %vm1273, %v1264, %v1266
  %v1278 = vsel %vm1273, %v1262, %v1264
  %v1279 = vsel %vm1273, %v1260, %v1262
  %v1280 = vsel %vm1273, %v1258, %v1260
  %v1281 = vsel %vm1273, %v1272, %v1258
  %v1282 = vadd.f32 %v1225, %v1281
  %v1283 = vadd.f32 %v1226, %v1280
  %v1284 = vadd.f32 %v1227, %v1279
  %v1285 = vadd.f32 %v1228, %v1278
  %v1286 = vadd.f32 %v1229, %v1277
  %v1287 = vadd.f32 %v1230, %v1276
  %v1288 = vadd.f32 %v1231, %v1275
  %v1289 = vadd.f32 %v1232, %v1274
  %v1290 = vld [vmem:[#allocation2 + $0x140] sm:$0xff]
  %v1291 = vld [vmem:[#allocation2 + $0x148] sm:$0xff]
  %v1292 = vld [vmem:[#allocation2 + $0x150] sm:$0xff]
  %v1293 = vld [vmem:[#allocation2 + $0x158] sm:$0xff]
  %v1294 = vld [vmem:[#allocation2 + $0x160] sm:$0xff]
  %v1295 = vld [vmem:[#allocation2 + $0x168] sm:$0xff]
  %v1296 = vld [vmem:[#allocation2 + $0x170] sm:$0xff]
  %v1297 = vld [vmem:[#allocation2 + $0x178] sm:$0xff]
  %v1298 = vld [vmem:[%s3 + $0xa0] sm:$0xff]
  %v1299 = vld [vmem:[%s3 + $0xa8] sm:$0xff]
  %v1300 = vld [vmem:[%s3 + $0xb0] sm:$0xff]
  %v1301 = vld [vmem:[%s3 + $0xb8] sm:$0xff]
  %v1302 = vunpack.c.l.bf16 %v1298
  %v1303 = vunpack.c.h.bf16 %v1298
  %v1304 = vunpack.c.l.bf16 %v1299
  %v1305 = vunpack.c.h.bf16 %v1299
  %v1306 = vunpack.c.l.bf16 %v1300
  %v1307 = vunpack.c.h.bf16 %v1300
  %v1308 = vunpack.c.l.bf16 %v1301
  %v1309 = vunpack.c.h.bf16 %v1301
  %v1310 = vmul.f32 %v1290, %v1302
  %v1311 = vmul.f32 %v1291, %v1303
  %v1312 = vmul.f32 %v1292, %v1304
  %v1313 = vmul.f32 %v1293, %v1305
  %v1314 = vmul.f32 %v1294, %v1306
  %v1315 = vmul.f32 %v1295, %v1307
  %v1316 = vmul.f32 %v1296, %v1308
  %v1317 = vmul.f32 %v1297, %v1309
  %1318 = vrot.lane.b32.xlu0 %v1310, 8
  %v1319 = vpop.permute.xlu0 %1318
  %1320 = vrot.lane.b32.xlu0 %v1311, 8
  %v1321 = vpop.permute.xlu0 %1320
  %1322 = vrot.lane.b32.xlu0 %v1312, 8
  %v1323 = vpop.permute.xlu0 %1322
  %1324 = vrot.lane.b32.xlu0 %v1313, 8
  %v1325 = vpop.permute.xlu0 %1324
  %1326 = vrot.lane.b32.xlu0 %v1314, 8
  %v1327 = vpop.permute.xlu0 %1326
  %1328 = vrot.lane.b32.xlu0 %v1315, 8
  %v1329 = vpop.permute.xlu0 %1328
  %1330 = vrot.lane.b32.xlu0 %v1316, 8
  %v1331 = vpop.permute.xlu0 %1330
  %1332 = vrot.lane.b32.xlu0 %v1317, 8
  %v1333 = vpop.permute.xlu0 %1332
  %vm1334 = vcmp.lt.s32.totalorder %v743, 8
  %v1335 = vsel %vm1334, %v1331, %v1333
  %v1336 = vsel %vm1334, %v1329, %v1331
  %v1337 = vsel %vm1334, %v1327, %v1329
  %v1338 = vsel %vm1334, %v1325, %v1327
  %v1339 = vsel %vm1334, %v1323, %v1325
  %v1340 = vsel %vm1334, %v1321, %v1323
  %v1341 = vsel %vm1334, %v1319, %v1321
  %v1342 = vsel %vm1334, %v1333, %v1319
  %v1343 = vadd.f32 %v1282, %v1342
  %v1344 = vadd.f32 %v1283, %v1341
  %v1345 = vadd.f32 %v1284, %v1340
  %v1346 = vadd.f32 %v1285, %v1339
  %v1347 = vadd.f32 %v1286, %v1338
  %v1348 = vadd.f32 %v1287, %v1337
  %v1349 = vadd.f32 %v1288, %v1336
  %v1350 = vadd.f32 %v1289, %v1335
  %v1359 = vrot.slane %v1310, 4
  %v1360 = vrot.slane %v1311, 4
  %v1361 = vrot.slane %v1312, 4
  %v1362 = vrot.slane %v1313, 4
  %v1363 = vrot.slane %v1314, 4
  %v1364 = vrot.slane %v1315, 4
  %v1365 = vrot.slane %v1316, 4
  %v1366 = vrot.slane %v1317, 4
  %1375 = vrot.lane.b32.xlu0 %v1359, 7
  %v1376 = vpop.permute.xlu0 %1375
  %1377 = vrot.lane.b32.xlu0 %v1360, 7
  %v1378 = vpop.permute.xlu0 %1377
  %1379 = vrot.lane.b32.xlu0 %v1361, 7
  %v1380 = vpop.permute.xlu0 %1379
  %1381 = vrot.lane.b32.xlu0 %v1362, 7
  %v1382 = vpop.permute.xlu0 %1381
  %1383 = vrot.lane.b32.xlu0 %v1363, 7
  %v1384 = vpop.permute.xlu0 %1383
  %1385 = vrot.lane.b32.xlu0 %v1364, 7
  %v1386 = vpop.permute.xlu0 %1385
  %1387 = vrot.lane.b32.xlu0 %v1365, 7
  %v1388 = vpop.permute.xlu0 %1387
  %1389 = vrot.lane.b32.xlu0 %v1366, 7
  %v1390 = vpop.permute.xlu0 %1389
  %vm1391 = vcmp.lt.s32.totalorder %v743, 7
  %v1392 = vsel %vm1391, %v1388, %v1390
  %v1393 = vsel %vm1391, %v1386, %v1388
  %v1394 = vsel %vm1391, %v1384, %v1386
  %v1395 = vsel %vm1391, %v1382, %v1384
  %v1396 = vsel %vm1391, %v1380, %v1382
  %v1397 = vsel %vm1391, %v1378, %v1380
  %v1398 = vsel %vm1391, %v1376, %v1378
  %v1399 = vsel %vm1391, %v1390, %v1376
  %v1400 = vadd.f32 %v1343, %v1399
  %v1401 = vadd.f32 %v1344, %v1398
  %v1402 = vadd.f32 %v1345, %v1397
  %v1403 = vadd.f32 %v1346, %v1396
  %v1404 = vadd.f32 %v1347, %v1395
  %v1405 = vadd.f32 %v1348, %v1394
  %v1406 = vadd.f32 %v1349, %v1393
  %v1407 = vadd.f32 %v1350, %v1392
  %v1408 = vld [vmem:[#allocation2 + $0x180] sm:$0xff]
  %v1409 = vld [vmem:[#allocation2 + $0x188] sm:$0xff]
  %v1410 = vld [vmem:[#allocation2 + $0x190] sm:$0xff]
  %v1411 = vld [vmem:[#allocation2 + $0x198] sm:$0xff]
  %v1412 = vld [vmem:[#allocation2 + $0x1a0] sm:$0xff]
  %v1413 = vld [vmem:[#allocation2 + $0x1a8] sm:$0xff]
  %v1414 = vld [vmem:[#allocation2 + $0x1b0] sm:$0xff]
  %v1415 = vld [vmem:[#allocation2 + $0x1b8] sm:$0xff]
  %v1416 = vld [vmem:[%s3 + $0xc0] sm:$0xff]
  %v1417 = vld [vmem:[%s3 + $0xc8] sm:$0xff]
  %v1418 = vld [vmem:[%s3 + $0xd0] sm:$0xff]
  %v1419 = vld [vmem:[%s3 + $0xd8] sm:$0xff]
  %v1420 = vunpack.c.l.bf16 %v1416
  %v1421 = vunpack.c.h.bf16 %v1416
  %v1422 = vunpack.c.l.bf16 %v1417
  %v1423 = vunpack.c.h.bf16 %v1417
  %v1424 = vunpack.c.l.bf16 %v1418
  %v1425 = vunpack.c.h.bf16 %v1418
  %v1426 = vunpack.c.l.bf16 %v1419
  %v1427 = vunpack.c.h.bf16 %v1419
  %v1428 = vmul.f32 %v1408, %v1420
  %v1429 = vmul.f32 %v1409, %v1421
  %v1430 = vmul.f32 %v1410, %v1422
  %v1431 = vmul.f32 %v1411, %v1423
  %v1432 = vmul.f32 %v1412, %v1424
  %v1433 = vmul.f32 %v1413, %v1425
  %v1434 = vmul.f32 %v1414, %v1426
  %v1435 = vmul.f32 %v1415, %v1427
  %1436 = vrot.lane.b32.xlu0 %v1428, 1
  %v1437 = vpop.permute.xlu0 %1436
  %1438 = vrot.lane.b32.xlu0 %v1429, 1
  %v1439 = vpop.permute.xlu0 %1438
  %1440 = vrot.lane.b32.xlu0 %v1430, 1
  %v1441 = vpop.permute.xlu0 %1440
  %1442 = vrot.lane.b32.xlu0 %v1431, 1
  %v1443 = vpop.permute.xlu0 %1442
  %1444 = vrot.lane.b32.xlu0 %v1432, 1
  %v1445 = vpop.permute.xlu0 %1444
  %1446 = vrot.lane.b32.xlu0 %v1433, 1
  %v1447 = vpop.permute.xlu0 %1446
  %1448 = vrot.lane.b32.xlu0 %v1434, 1
  %v1449 = vpop.permute.xlu0 %1448
  %1450 = vrot.lane.b32.xlu0 %v1435, 1
  %v1451 = vpop.permute.xlu0 %1450
  %vm1452 = vcmp.lt.s32.totalorder %v743, 1
  %v1453 = vsel %vm1452, %v1449, %v1451
  %v1454 = vsel %vm1452, %v1447, %v1449
  %v1455 = vsel %vm1452, %v1445, %v1447
  %v1456 = vsel %vm1452, %v1443, %v1445
  %v1457 = vsel %vm1452, %v1441, %v1443
  %v1458 = vsel %vm1452, %v1439, %v1441
  %v1459 = vsel %vm1452, %v1437, %v1439
  %v1460 = vsel %vm1452, %v1451, %v1437
  %v1461 = vadd.f32 %v1400, %v1460
  %v1462 = vadd.f32 %v1401, %v1459
  %v1463 = vadd.f32 %v1402, %v1458
  %v1464 = vadd.f32 %v1403, %v1457
  %v1465 = vadd.f32 %v1404, %v1456
  %v1466 = vadd.f32 %v1405, %v1455
  %v1467 = vadd.f32 %v1406, %v1454
  %v1468 = vadd.f32 %v1407, %v1453
  %v1477 = vrot.slane %v1428, 4
  %v1478 = vrot.slane %v1429, 4
  %v1479 = vrot.slane %v1430, 4
  %v1480 = vrot.slane %v1431, 4
  %v1481 = vrot.slane %v1432, 4
  %v1482 = vrot.slane %v1433, 4
  %v1483 = vrot.slane %v1434, 4
  %v1484 = vrot.slane %v1435, 4
  %v1493 = vadd.f32 %v1461, %v1477
  %v1494 = vadd.f32 %v1462, %v1478
  %v1495 = vadd.f32 %v1463, %v1479
  %v1496 = vadd.f32 %v1464, %v1480
  %v1497 = vadd.f32 %v1465, %v1481
  %v1498 = vadd.f32 %v1466, %v1482
  %v1499 = vadd.f32 %v1467, %v1483
  %v1500 = vadd.f32 %v1468, %v1484
  %v1501 = vld [vmem:[#allocation2 + $0x1c0] sm:$0xff]
  %v1502 = vld [vmem:[#allocation2 + $0x1c8] sm:$0xff]
  %v1503 = vld [vmem:[#allocation2 + $0x1d0] sm:$0xff]
  %v1504 = vld [vmem:[#allocation2 + $0x1d8] sm:$0xff]
  %v1505 = vld [vmem:[#allocation2 + $0x1e0] sm:$0xff]
  %v1506 = vld [vmem:[#allocation2 + $0x1e8] sm:$0xff]
  %v1507 = vld [vmem:[#allocation2 + $0x1f0] sm:$0xff]
  %v1508 = vld [vmem:[#allocation2 + $0x1f8] sm:$0xff]
  %v1509 = vld [vmem:[%s3 + $0xe0] sm:$0xff]
  %v1510 = vld [vmem:[%s3 + $0xe8] sm:$0xff]
  %v1511 = vld [vmem:[%s3 + $0xf0] sm:$0xff]
  %v1512 = vld [vmem:[%s3 + $0xf8] sm:$0xff]
  %v1513 = vunpack.c.l.bf16 %v1509
  %v1514 = vunpack.c.h.bf16 %v1509
  %v1515 = vunpack.c.l.bf16 %v1510
  %v1516 = vunpack.c.h.bf16 %v1510
  %v1517 = vunpack.c.l.bf16 %v1511
  %v1518 = vunpack.c.h.bf16 %v1511
  %v1519 = vunpack.c.l.bf16 %v1512
  %v1520 = vunpack.c.h.bf16 %v1512
  %v1521 = vmul.f32 %v1501, %v1513
  %v1522 = vmul.f32 %v1502, %v1514
  %v1523 = vmul.f32 %v1503, %v1515
  %v1524 = vmul.f32 %v1504, %v1516
  %v1525 = vmul.f32 %v1505, %v1517
  %v1526 = vmul.f32 %v1506, %v1518
  %v1527 = vmul.f32 %v1507, %v1519
  %v1528 = vmul.f32 %v1508, %v1520
  %1529 = vrot.lane.b32.xlu0 %v1521, 127
  %v1530 = vpop.permute.xlu0 %1529
  %1531 = vrot.lane.b32.xlu0 %v1522, 127
  %v1532 = vpop.permute.xlu0 %1531
  %1533 = vrot.lane.b32.xlu0 %v1523, 127
  %v1534 = vpop.permute.xlu0 %1533
  %1535 = vrot.lane.b32.xlu0 %v1524, 127
  %v1536 = vpop.permute.xlu0 %1535
  %1537 = vrot.lane.b32.xlu0 %v1525, 127
  %v1538 = vpop.permute.xlu0 %1537
  %1539 = vrot.lane.b32.xlu0 %v1526, 127
  %v1540 = vpop.permute.xlu0 %1539
  %1541 = vrot.lane.b32.xlu0 %v1527, 127
  %v1542 = vpop.permute.xlu0 %1541
  %1543 = vrot.lane.b32.xlu0 %v1528, 127
  %v1544 = vpop.permute.xlu0 %1543
  %vm1545 = vcmp.lt.s32.totalorder %v743, 127
  %v1546 = vsel %vm1545, %v1542, %v1544
  %v1547 = vsel %vm1545, %v1540, %v1542
  %v1548 = vsel %vm1545, %v1538, %v1540
  %v1549 = vsel %vm1545, %v1536, %v1538
  %v1550 = vsel %vm1545, %v1534, %v1536
  %v1551 = vsel %vm1545, %v1532, %v1534
  %v1552 = vsel %vm1545, %v1530, %v1532
  %v1553 = vsel %vm1545, %v1544, %v1530
  %v1554 = vadd.f32 %v1493, %v1552
  %v1555 = vadd.f32 %v1494, %v1551
  %v1556 = vadd.f32 %v1495, %v1550
  %v1557 = vadd.f32 %v1496, %v1549
  %v1558 = vadd.f32 %v1497, %v1548
  %v1559 = vadd.f32 %v1498, %v1547
  %v1560 = vadd.f32 %v1499, %v1546
  %v1561 = vadd.f32 %v1500, %v1553
  %v1570 = vrot.slane %v1521, 4
  %v1571 = vrot.slane %v1522, 4
  %v1572 = vrot.slane %v1523, 4
  %v1573 = vrot.slane %v1524, 4
  %v1574 = vrot.slane %v1525, 4
  %v1575 = vrot.slane %v1526, 4
  %v1576 = vrot.slane %v1527, 4
  %v1577 = vrot.slane %v1528, 4
  %1586 = vrot.lane.b32.xlu0 %v1570, 121
  %v1587 = vpop.permute.xlu0 %1586
  %1588 = vrot.lane.b32.xlu0 %v1571, 121
  %v1589 = vpop.permute.xlu0 %1588
  %1590 = vrot.lane.b32.xlu0 %v1572, 121
  %v1591 = vpop.permute.xlu0 %1590
  %1592 = vrot.lane.b32.xlu0 %v1573, 121
  %v1593 = vpop.permute.xlu0 %1592
  %1594 = vrot.lane.b32.xlu0 %v1574, 121
  %v1595 = vpop.permute.xlu0 %1594
  %1596 = vrot.lane.b32.xlu0 %v1575, 121
  %v1597 = vpop.permute.xlu0 %1596
  %1598 = vrot.lane.b32.xlu0 %v1576, 121
  %v1599 = vpop.permute.xlu0 %1598
  %1600 = vrot.lane.b32.xlu0 %v1577, 121
  %v1601 = vpop.permute.xlu0 %1600
  %vm1602 = vcmp.lt.s32.totalorder %v743, 121
  %v1603 = vsel %vm1602, %v1599, %v1601
  %v1604 = vsel %vm1602, %v1597, %v1599
  %v1605 = vsel %vm1602, %v1595, %v1597
  %v1606 = vsel %vm1602, %v1593, %v1595
  %v1607 = vsel %vm1602, %v1591, %v1593
  %v1608 = vsel %vm1602, %v1589, %v1591
  %v1609 = vsel %vm1602, %v1587, %v1589
  %v1610 = vsel %vm1602, %v1601, %v1587
  %v1611 = vadd.f32 %v1554, %v1609
  %v1612 = vadd.f32 %v1555, %v1608
  %v1613 = vadd.f32 %v1556, %v1607
  %v1614 = vadd.f32 %v1557, %v1606
  %v1615 = vadd.f32 %v1558, %v1605
  %v1616 = vadd.f32 %v1559, %v1604
  %v1617 = vadd.f32 %v1560, %v1603
  %v1618 = vadd.f32 %v1561, %v1610
  %v1619 = vld [vmem:[#allocation2 + $0x200] sm:$0xff]
  %v1620 = vld [vmem:[#allocation2 + $0x208] sm:$0xff]
  %v1621 = vld [vmem:[#allocation2 + $0x210] sm:$0xff]
  %v1622 = vld [vmem:[#allocation2 + $0x218] sm:$0xff]
  %v1623 = vld [vmem:[#allocation2 + $0x220] sm:$0xff]
  %v1624 = vld [vmem:[#allocation2 + $0x228] sm:$0xff]
  %v1625 = vld [vmem:[#allocation2 + $0x230] sm:$0xff]
  %v1626 = vld [vmem:[#allocation2 + $0x238] sm:$0xff]
  %v1627 = vld [vmem:[%s3 + $0x100] sm:$0xff]
  %v1628 = vld [vmem:[%s3 + $0x108] sm:$0xff]
  %v1629 = vld [vmem:[%s3 + $0x110] sm:$0xff]
  %v1630 = vld [vmem:[%s3 + $0x118] sm:$0xff]
  %v1631 = vunpack.c.l.bf16 %v1627
  %v1632 = vunpack.c.h.bf16 %v1627
  %v1633 = vunpack.c.l.bf16 %v1628
  %v1634 = vunpack.c.h.bf16 %v1628
  %v1635 = vunpack.c.l.bf16 %v1629
  %v1636 = vunpack.c.h.bf16 %v1629
  %v1637 = vunpack.c.l.bf16 %v1630
  %v1638 = vunpack.c.h.bf16 %v1630
  %v1639 = vmul.f32 %v1619, %v1631
  %v1640 = vmul.f32 %v1620, %v1632
  %v1641 = vmul.f32 %v1621, %v1633
  %v1642 = vmul.f32 %v1622, %v1634
  %v1643 = vmul.f32 %v1623, %v1635
  %v1644 = vmul.f32 %v1624, %v1636
  %v1645 = vmul.f32 %v1625, %v1637
  %v1646 = vmul.f32 %v1626, %v1638
  %1647 = vrot.lane.b32.xlu0 %v1639, 120
  %v1648 = vpop.permute.xlu0 %1647
  %1649 = vrot.lane.b32.xlu0 %v1640, 120
  %v1650 = vpop.permute.xlu0 %1649
  %1651 = vrot.lane.b32.xlu0 %v1641, 120
  %v1652 = vpop.permute.xlu0 %1651
  %1653 = vrot.lane.b32.xlu0 %v1642, 120
  %v1654 = vpop.permute.xlu0 %1653
  %1655 = vrot.lane.b32.xlu0 %v1643, 120
  %v1656 = vpop.permute.xlu0 %1655
  %1657 = vrot.lane.b32.xlu0 %v1644, 120
  %v1658 = vpop.permute.xlu0 %1657
  %1659 = vrot.lane.b32.xlu0 %v1645, 120
  %v1660 = vpop.permute.xlu0 %1659
  %1661 = vrot.lane.b32.xlu0 %v1646, 120
  %v1662 = vpop.permute.xlu0 %1661
  %vm1663 = vcmp.lt.s32.totalorder %v743, 120
  %v1664 = vsel %vm1663, %v1660, %v1662
  %v1665 = vsel %vm1663, %v1658, %v1660
  %v1666 = vsel %vm1663, %v1656, %v1658
  %v1667 = vsel %vm1663, %v1654, %v1656
  %v1668 = vsel %vm1663, %v1652, %v1654
  %v1669 = vsel %vm1663, %v1650, %v1652
  %v1670 = vsel %vm1663, %v1648, %v1650
  %v1671 = vsel %vm1663, %v1662, %v1648
  %v1672 = vadd.f32 %v1611, %v1670
  %v1673 = vadd.f32 %v1612, %v1669
  %v1674 = vadd.f32 %v1613, %v1668
  %v1675 = vadd.f32 %v1614, %v1667
  %v1676 = vadd.f32 %v1615, %v1666
  %v1677 = vadd.f32 %v1616, %v1665
  %v1678 = vadd.f32 %v1617, %v1664
  %v1679 = vadd.f32 %v1618, %v1671
  %v1688 = vrot.slane %v1639, 4
  %v1689 = vrot.slane %v1640, 4
  %v1690 = vrot.slane %v1641, 4
  %v1691 = vrot.slane %v1642, 4
  %v1692 = vrot.slane %v1643, 4
  %v1693 = vrot.slane %v1644, 4
  %v1694 = vrot.slane %v1645, 4
  %v1695 = vrot.slane %v1646, 4
  %1704 = vrot.lane.b32.xlu0 %v1688, 119
  %v1705 = vpop.permute.xlu0 %1704
  %1706 = vrot.lane.b32.xlu0 %v1689, 119
  %v1707 = vpop.permute.xlu0 %1706
  %1708 = vrot.lane.b32.xlu0 %v1690, 119
  %v1709 = vpop.permute.xlu0 %1708
  %1710 = vrot.lane.b32.xlu0 %v1691, 119
  %v1711 = vpop.permute.xlu0 %1710
  %1712 = vrot.lane.b32.xlu0 %v1692, 119
  %v1713 = vpop.permute.xlu0 %1712
  %1714 = vrot.lane.b32.xlu0 %v1693, 119
  %v1715 = vpop.permute.xlu0 %1714
  %1716 = vrot.lane.b32.xlu0 %v1694, 119
  %v1717 = vpop.permute.xlu0 %1716
  %1718 = vrot.lane.b32.xlu0 %v1695, 119
  %v1719 = vpop.permute.xlu0 %1718
  %vm1720 = vcmp.lt.s32.totalorder %v743, 119
  %v1721 = vsel %vm1720, %v1717, %v1719
  %v1722 = vsel %vm1720, %v1715, %v1717
  %v1723 = vsel %vm1720, %v1713, %v1715
  %v1724 = vsel %vm1720, %v1711, %v1713
  %v1725 = vsel %vm1720, %v1709, %v1711
  %v1726 = vsel %vm1720, %v1707, %v1709
  %v1727 = vsel %vm1720, %v1705, %v1707
  %v1728 = vsel %vm1720, %v1719, %v1705
  %v1729 = vadd.f32 %v1672, %v1727
  %v1730 = vadd.f32 %v1673, %v1726
  %v1731 = vadd.f32 %v1674, %v1725
  %v1732 = vadd.f32 %v1675, %v1724
  %v1733 = vadd.f32 %v1676, %v1723
  %v1734 = vadd.f32 %v1677, %v1722
  %v1735 = vadd.f32 %v1678, %v1721
  %v1736 = vadd.f32 %v1679, %v1728
  %v1737 = vld [vmem:[#allocation2 + $0x240] sm:$0xff]
  %v1738 = vld [vmem:[#allocation2 + $0x248] sm:$0xff]
  %v1739 = vld [vmem:[#allocation2 + $0x250] sm:$0xff]
  %v1740 = vld [vmem:[#allocation2 + $0x258] sm:$0xff]
  %v1741 = vld [vmem:[#allocation2 + $0x260] sm:$0xff]
  %v1742 = vld [vmem:[#allocation2 + $0x268] sm:$0xff]
  %v1743 = vld [vmem:[#allocation2 + $0x270] sm:$0xff]
  %v1744 = vld [vmem:[#allocation2 + $0x278] sm:$0xff]
  %v1745 = vld [vmem:[%s3 + $0x120] sm:$0xff]
  %v1746 = vld [vmem:[%s3 + $0x128] sm:$0xff]
  %v1747 = vld [vmem:[%s3 + $0x130] sm:$0xff]
  %v1748 = vld [vmem:[%s3 + $0x138] sm:$0xff]
  %v1749 = vunpack.c.l.bf16 %v1745
  %v1750 = vunpack.c.h.bf16 %v1745
  %v1751 = vunpack.c.l.bf16 %v1746
  %v1752 = vunpack.c.h.bf16 %v1746
  %v1753 = vunpack.c.l.bf16 %v1747
  %v1754 = vunpack.c.h.bf16 %v1747
  %v1755 = vunpack.c.l.bf16 %v1748
  %v1756 = vunpack.c.h.bf16 %v1748
  %v1757 = vmul.f32 %v1737, %v1749
  %v1758 = vmul.f32 %v1738, %v1750
  %v1759 = vmul.f32 %v1739, %v1751
  %v1760 = vmul.f32 %v1740, %v1752
  %v1761 = vmul.f32 %v1741, %v1753
  %v1762 = vmul.f32 %v1742, %v1754
  %v1763 = vmul.f32 %v1743, %v1755
  %v1764 = vmul.f32 %v1744, %v1756
  %1765 = vrot.lane.b32.xlu0 %v1757, 73
  %v1766 = vpop.permute.xlu0 %1765
  %1767 = vrot.lane.b32.xlu0 %v1758, 73
  %v1768 = vpop.permute.xlu0 %1767
  %1769 = vrot.lane.b32.xlu0 %v1759, 73
  %v1770 = vpop.permute.xlu0 %1769
  %1771 = vrot.lane.b32.xlu0 %v1760, 73
  %v1772 = vpop.permute.xlu0 %1771
  %1773 = vrot.lane.b32.xlu0 %v1761, 73
  %v1774 = vpop.permute.xlu0 %1773
  %1775 = vrot.lane.b32.xlu0 %v1762, 73
  %v1776 = vpop.permute.xlu0 %1775
  %1777 = vrot.lane.b32.xlu0 %v1763, 73
  %v1778 = vpop.permute.xlu0 %1777
  %1779 = vrot.lane.b32.xlu0 %v1764, 73
  %v1780 = vpop.permute.xlu0 %1779
  %v1781 = vsel %vm744, %v1778, %v1780
  %v1782 = vsel %vm744, %v1776, %v1778
  %v1783 = vsel %vm744, %v1774, %v1776
  %v1784 = vsel %vm744, %v1772, %v1774
  %v1785 = vsel %vm744, %v1770, %v1772
  %v1786 = vsel %vm744, %v1768, %v1770
  %v1787 = vsel %vm744, %v1766, %v1768
  %v1788 = vsel %vm744, %v1780, %v1766
  %v1789 = vadd.f32 %v1729, %v1787
  %v1790 = vadd.f32 %v1730, %v1786
  %v1791 = vadd.f32 %v1731, %v1785
  %v1792 = vadd.f32 %v1732, %v1784
  %v1793 = vadd.f32 %v1733, %v1783
  %v1794 = vadd.f32 %v1734, %v1782
  %v1795 = vadd.f32 %v1735, %v1781
  %v1796 = vadd.f32 %v1736, %v1788
  %v1805 = vrot.slane %v1757, 4
  %v1806 = vrot.slane %v1758, 4
  %v1807 = vrot.slane %v1759, 4
  %v1808 = vrot.slane %v1760, 4
  %v1809 = vrot.slane %v1761, 4
  %v1810 = vrot.slane %v1762, 4
  %v1811 = vrot.slane %v1763, 4
  %v1812 = vrot.slane %v1764, 4
  %1821 = vrot.lane.b32.xlu0 %v1805, 72
  %v1822 = vpop.permute.xlu0 %1821
  %1823 = vrot.lane.b32.xlu0 %v1806, 72
  %v1824 = vpop.permute.xlu0 %1823
  %1825 = vrot.lane.b32.xlu0 %v1807, 72
  %v1826 = vpop.permute.xlu0 %1825
  %1827 = vrot.lane.b32.xlu0 %v1808, 72
  %v1828 = vpop.permute.xlu0 %1827
  %1829 = vrot.lane.b32.xlu0 %v1809, 72
  %v1830 = vpop.permute.xlu0 %1829
  %1831 = vrot.lane.b32.xlu0 %v1810, 72
  %v1832 = vpop.permute.xlu0 %1831
  %1833 = vrot.lane.b32.xlu0 %v1811, 72
  %v1834 = vpop.permute.xlu0 %1833
  %1835 = vrot.lane.b32.xlu0 %v1812, 72
  %v1836 = vpop.permute.xlu0 %1835
  %v1837 = vsel %vm801, %v1834, %v1836
  %v1838 = vsel %vm801, %v1832, %v1834
  %v1839 = vsel %vm801, %v1830, %v1832
  %v1840 = vsel %vm801, %v1828, %v1830
  %v1841 = vsel %vm801, %v1826, %v1828
  %v1842 = vsel %vm801, %v1824, %v1826
  %v1843 = vsel %vm801, %v1822, %v1824
  %v1844 = vsel %vm801, %v1836, %v1822
  %v1845 = vadd.f32 %v1789, %v1843
  %v1846 = vadd.f32 %v1790, %v1842
  %v1847 = vadd.f32 %v1791, %v1841
  %v1848 = vadd.f32 %v1792, %v1840
  %v1849 = vadd.f32 %v1793, %v1839
  %v1850 = vadd.f32 %v1794, %v1838
  %v1851 = vadd.f32 %v1795, %v1837
  %v1852 = vadd.f32 %v1796, %v1844
  %v1853 = vld [vmem:[#allocation2 + $0x280] sm:$0xff]
  %v1854 = vld [vmem:[#allocation2 + $0x288] sm:$0xff]
  %v1855 = vld [vmem:[#allocation2 + $0x290] sm:$0xff]
  %v1856 = vld [vmem:[#allocation2 + $0x298] sm:$0xff]
  %v1857 = vld [vmem:[#allocation2 + $0x2a0] sm:$0xff]
  %v1858 = vld [vmem:[#allocation2 + $0x2a8] sm:$0xff]
  %v1859 = vld [vmem:[#allocation2 + $0x2b0] sm:$0xff]
  %v1860 = vld [vmem:[#allocation2 + $0x2b8] sm:$0xff]
  %v1861 = vld [vmem:[%s3 + $0x140] sm:$0xff]
  %v1862 = vld [vmem:[%s3 + $0x148] sm:$0xff]
  %v1863 = vld [vmem:[%s3 + $0x150] sm:$0xff]
  %v1864 = vld [vmem:[%s3 + $0x158] sm:$0xff]
  %v1865 = vunpack.c.l.bf16 %v1861
  %v1866 = vunpack.c.h.bf16 %v1861
  %v1867 = vunpack.c.l.bf16 %v1862
  %v1868 = vunpack.c.h.bf16 %v1862
  %v1869 = vunpack.c.l.bf16 %v1863
  %v1870 = vunpack.c.h.bf16 %v1863
  %v1871 = vunpack.c.l.bf16 %v1864
  %v1872 = vunpack.c.h.bf16 %v1864
  %v1873 = vmul.f32 %v1853, %v1865
  %v1874 = vmul.f32 %v1854, %v1866
  %v1875 = vmul.f32 %v1855, %v1867
  %v1876 = vmul.f32 %v1856, %v1868
  %v1877 = vmul.f32 %v1857, %v1869
  %v1878 = vmul.f32 %v1858, %v1870
  %v1879 = vmul.f32 %v1859, %v1871
  %v1880 = vmul.f32 %v1860, %v1872
  %1881 = vrot.lane.b32.xlu0 %v1873, 71
  %v1882 = vpop.permute.xlu0 %1881
  %1883 = vrot.lane.b32.xlu0 %v1874, 71
  %v1884 = vpop.permute.xlu0 %1883
  %1885 = vrot.lane.b32.xlu0 %v1875, 71
  %v1886 = vpop.permute.xlu0 %1885
  %1887 = vrot.lane.b32.xlu0 %v1876, 71
  %v1888 = vpop.permute.xlu0 %1887
  %1889 = vrot.lane.b32.xlu0 %v1877, 71
  %v1890 = vpop.permute.xlu0 %1889
  %1891 = vrot.lane.b32.xlu0 %v1878, 71
  %v1892 = vpop.permute.xlu0 %1891
  %1893 = vrot.lane.b32.xlu0 %v1879, 71
  %v1894 = vpop.permute.xlu0 %1893
  %1895 = vrot.lane.b32.xlu0 %v1880, 71
  %v1896 = vpop.permute.xlu0 %1895
  %v1897 = vsel %vm862, %v1894, %v1896
  %v1898 = vsel %vm862, %v1892, %v1894
  %v1899 = vsel %vm862, %v1890, %v1892
  %v1900 = vsel %vm862, %v1888, %v1890
  %v1901 = vsel %vm862, %v1886, %v1888
  %v1902 = vsel %vm862, %v1884, %v1886
  %v1903 = vsel %vm862, %v1882, %v1884
  %v1904 = vsel %vm862, %v1896, %v1882
  %v1905 = vadd.f32 %v1845, %v1903
  %v1906 = vadd.f32 %v1846, %v1902
  %v1907 = vadd.f32 %v1847, %v1901
  %v1908 = vadd.f32 %v1848, %v1900
  %v1909 = vadd.f32 %v1849, %v1899
  %v1910 = vadd.f32 %v1850, %v1898
  %v1911 = vadd.f32 %v1851, %v1897
  %v1912 = vadd.f32 %v1852, %v1904
  %v1921 = vrot.slane %v1873, 4
  %v1922 = vrot.slane %v1874, 4
  %v1923 = vrot.slane %v1875, 4
  %v1924 = vrot.slane %v1876, 4
  %v1925 = vrot.slane %v1877, 4
  %v1926 = vrot.slane %v1878, 4
  %v1927 = vrot.slane %v1879, 4
  %v1928 = vrot.slane %v1880, 4
  %1937 = vrot.lane.b32.xlu0 %v1921, 65
  %v1938 = vpop.permute.xlu0 %1937
  %1939 = vrot.lane.b32.xlu0 %v1922, 65
  %v1940 = vpop.permute.xlu0 %1939
  %1941 = vrot.lane.b32.xlu0 %v1923, 65
  %v1942 = vpop.permute.xlu0 %1941
  %1943 = vrot.lane.b32.xlu0 %v1924, 65
  %v1944 = vpop.permute.xlu0 %1943
  %1945 = vrot.lane.b32.xlu0 %v1925, 65
  %v1946 = vpop.permute.xlu0 %1945
  %1947 = vrot.lane.b32.xlu0 %v1926, 65
  %v1948 = vpop.permute.xlu0 %1947
  %1949 = vrot.lane.b32.xlu0 %v1927, 65
  %v1950 = vpop.permute.xlu0 %1949
  %1951 = vrot.lane.b32.xlu0 %v1928, 65
  %v1952 = vpop.permute.xlu0 %1951
  %v1953 = vsel %vm919, %v1950, %v1952
  %v1954 = vsel %vm919, %v1948, %v1950
  %v1955 = vsel %vm919, %v1946, %v1948
  %v1956 = vsel %vm919, %v1944, %v1946
  %v1957 = vsel %vm919, %v1942, %v1944
  %v1958 = vsel %vm919, %v1940, %v1942
  %v1959 = vsel %vm919, %v1938, %v1940
  %v1960 = vsel %vm919, %v1952, %v1938
  %v1961 = vadd.f32 %v1905, %v1959
  %v1962 = vadd.f32 %v1906, %v1958
  %v1963 = vadd.f32 %v1907, %v1957
  %v1964 = vadd.f32 %v1908, %v1956
  %v1965 = vadd.f32 %v1909, %v1955
  %v1966 = vadd.f32 %v1910, %v1954
  %v1967 = vadd.f32 %v1911, %v1953
  %v1968 = vadd.f32 %v1912, %v1960
  %v1969 = vld [vmem:[#allocation2 + $0x2c0] sm:$0xff]
  %v1970 = vld [vmem:[#allocation2 + $0x2c8] sm:$0xff]
  %v1971 = vld [vmem:[#allocation2 + $0x2d0] sm:$0xff]
  %v1972 = vld [vmem:[#allocation2 + $0x2d8] sm:$0xff]
  %v1973 = vld [vmem:[#allocation2 + $0x2e0] sm:$0xff]
  %v1974 = vld [vmem:[#allocation2 + $0x2e8] sm:$0xff]
  %v1975 = vld [vmem:[#allocation2 + $0x2f0] sm:$0xff]
  %v1976 = vld [vmem:[#allocation2 + $0x2f8] sm:$0xff]
  %v1977 = vld [vmem:[%s3 + $0x160] sm:$0xff]
  %v1978 = vld [vmem:[%s3 + $0x168] sm:$0xff]
  %v1979 = vld [vmem:[%s3 + $0x170] sm:$0xff]
  %v1980 = vld [vmem:[%s3 + $0x178] sm:$0xff]
  %v1981 = vunpack.c.l.bf16 %v1977
  %v1982 = vunpack.c.h.bf16 %v1977
  %v1983 = vunpack.c.l.bf16 %v1978
  %v1984 = vunpack.c.h.bf16 %v1978
  %v1985 = vunpack.c.l.bf16 %v1979
  %v1986 = vunpack.c.h.bf16 %v1979
  %v1987 = vunpack.c.l.bf16 %v1980
  %v1988 = vunpack.c.h.bf16 %v1980
  %v1989 = vmul.f32 %v1969, %v1981
  %v1990 = vmul.f32 %v1970, %v1982
  %v1991 = vmul.f32 %v1971, %v1983
  %v1992 = vmul.f32 %v1972, %v1984
  %v1993 = vmul.f32 %v1973, %v1985
  %v1994 = vmul.f32 %v1974, %v1986
  %v1995 = vmul.f32 %v1975, %v1987
  %v1996 = vmul.f32 %v1976, %v1988
  %1997 = vrot.lane.b32.xlu0 %v1989, 64
  %v1998 = vpop.permute.xlu0 %1997
  %1999 = vrot.lane.b32.xlu0 %v1990, 64
  %v2000 = vpop.permute.xlu0 %1999
  %2001 = vrot.lane.b32.xlu0 %v1991, 64
  %v2002 = vpop.permute.xlu0 %2001
  %2003 = vrot.lane.b32.xlu0 %v1992, 64
  %v2004 = vpop.permute.xlu0 %2003
  %2005 = vrot.lane.b32.xlu0 %v1993, 64
  %v2006 = vpop.permute.xlu0 %2005
  %2007 = vrot.lane.b32.xlu0 %v1994, 64
  %v2008 = vpop.permute.xlu0 %2007
  %2009 = vrot.lane.b32.xlu0 %v1995, 64
  %v2010 = vpop.permute.xlu0 %2009
  %2011 = vrot.lane.b32.xlu0 %v1996, 64
  %v2012 = vpop.permute.xlu0 %2011
  %v2013 = vsel %vm980, %v2010, %v2012
  %v2014 = vsel %vm980, %v2008, %v2010
  %v2015 = vsel %vm980, %v2006, %v2008
  %v2016 = vsel %vm980, %v2004, %v2006
  %v2017 = vsel %vm980, %v2002, %v2004
  %v2018 = vsel %vm980, %v2000, %v2002
  %v2019 = vsel %vm980, %v1998, %v2000
  %v2020 = vsel %vm980, %v2012, %v1998
  %v2021 = vadd.f32 %v1961, %v2019
  %v2022 = vadd.f32 %v1962, %v2018
  %v2023 = vadd.f32 %v1963, %v2017
  %v2024 = vadd.f32 %v1964, %v2016
  %v2025 = vadd.f32 %v1965, %v2015
  %v2026 = vadd.f32 %v1966, %v2014
  %v2027 = vadd.f32 %v1967, %v2013
  %v2028 = vadd.f32 %v1968, %v2020
  %v2037 = vrot.slane %v1989, 4
  %v2038 = vrot.slane %v1990, 4
  %v2039 = vrot.slane %v1991, 4
  %v2040 = vrot.slane %v1992, 4
  %v2041 = vrot.slane %v1993, 4
  %v2042 = vrot.slane %v1994, 4
  %v2043 = vrot.slane %v1995, 4
  %v2044 = vrot.slane %v1996, 4
  %2053 = vrot.lane.b32.xlu0 %v2037, 63
  %v2054 = vpop.permute.xlu0 %2053
  %2055 = vrot.lane.b32.xlu0 %v2038, 63
  %v2056 = vpop.permute.xlu0 %2055
  %2057 = vrot.lane.b32.xlu0 %v2039, 63
  %v2058 = vpop.permute.xlu0 %2057
  %2059 = vrot.lane.b32.xlu0 %v2040, 63
  %v2060 = vpop.permute.xlu0 %2059
  %2061 = vrot.lane.b32.xlu0 %v2041, 63
  %v2062 = vpop.permute.xlu0 %2061
  %2063 = vrot.lane.b32.xlu0 %v2042, 63
  %v2064 = vpop.permute.xlu0 %2063
  %2065 = vrot.lane.b32.xlu0 %v2043, 63
  %v2066 = vpop.permute.xlu0 %2065
  %2067 = vrot.lane.b32.xlu0 %v2044, 63
  %v2068 = vpop.permute.xlu0 %2067
  %v2069 = vsel %vm1037, %v2066, %v2068
  %v2070 = vsel %vm1037, %v2064, %v2066
  %v2071 = vsel %vm1037, %v2062, %v2064
  %v2072 = vsel %vm1037, %v2060, %v2062
  %v2073 = vsel %vm1037, %v2058, %v2060
  %v2074 = vsel %vm1037, %v2056, %v2058
  %v2075 = vsel %vm1037, %v2054, %v2056
  %v2076 = vsel %vm1037, %v2068, %v2054
  %v2077 = vadd.f32 %v2021, %v2075
  %v2078 = vadd.f32 %v2022, %v2074
  %v2079 = vadd.f32 %v2023, %v2073
  %v2080 = vadd.f32 %v2024, %v2072
  %v2081 = vadd.f32 %v2025, %v2071
  %v2082 = vadd.f32 %v2026, %v2070
  %v2083 = vadd.f32 %v2027, %v2069
  %v2084 = vadd.f32 %v2028, %v2076
  %v2085 = vld [vmem:[#allocation2 + $0x300] sm:$0xff]
  %v2086 = vld [vmem:[#allocation2 + $0x308] sm:$0xff]
  %v2087 = vld [vmem:[#allocation2 + $0x310] sm:$0xff]
  %v2088 = vld [vmem:[#allocation2 + $0x318] sm:$0xff]
  %v2089 = vld [vmem:[#allocation2 + $0x320] sm:$0xff]
  %v2090 = vld [vmem:[#allocation2 + $0x328] sm:$0xff]
  %v2091 = vld [vmem:[#allocation2 + $0x330] sm:$0xff]
  %v2092 = vld [vmem:[#allocation2 + $0x338] sm:$0xff]
  %v2093 = vld [vmem:[%s3 + $0x180] sm:$0xff]
  %v2094 = vld [vmem:[%s3 + $0x188] sm:$0xff]
  %v2095 = vld [vmem:[%s3 + $0x190] sm:$0xff]
  %v2096 = vld [vmem:[%s3 + $0x198] sm:$0xff]
  %v2097 = vunpack.c.l.bf16 %v2093
  %v2098 = vunpack.c.h.bf16 %v2093
  %v2099 = vunpack.c.l.bf16 %v2094
  %v2100 = vunpack.c.h.bf16 %v2094
  %v2101 = vunpack.c.l.bf16 %v2095
  %v2102 = vunpack.c.h.bf16 %v2095
  %v2103 = vunpack.c.l.bf16 %v2096
  %v2104 = vunpack.c.h.bf16 %v2096
  %v2105 = vmul.f32 %v2085, %v2097
  %v2106 = vmul.f32 %v2086, %v2098
  %v2107 = vmul.f32 %v2087, %v2099
  %v2108 = vmul.f32 %v2088, %v2100
  %v2109 = vmul.f32 %v2089, %v2101
  %v2110 = vmul.f32 %v2090, %v2102
  %v2111 = vmul.f32 %v2091, %v2103
  %v2112 = vmul.f32 %v2092, %v2104
  %2113 = vrot.lane.b32.xlu0 %v2105, 57
  %v2114 = vpop.permute.xlu0 %2113
  %2115 = vrot.lane.b32.xlu0 %v2106, 57
  %v2116 = vpop.permute.xlu0 %2115
  %2117 = vrot.lane.b32.xlu0 %v2107, 57
  %v2118 = vpop.permute.xlu0 %2117
  %2119 = vrot.lane.b32.xlu0 %v2108, 57
  %v2120 = vpop.permute.xlu0 %2119
  %2121 = vrot.lane.b32.xlu0 %v2109, 57
  %v2122 = vpop.permute.xlu0 %2121
  %2123 = vrot.lane.b32.xlu0 %v2110, 57
  %v2124 = vpop.permute.xlu0 %2123
  %2125 = vrot.lane.b32.xlu0 %v2111, 57
  %v2126 = vpop.permute.xlu0 %2125
  %2127 = vrot.lane.b32.xlu0 %v2112, 57
  %v2128 = vpop.permute.xlu0 %2127
  %v2129 = vsel %vm1098, %v2126, %v2128
  %v2130 = vsel %vm1098, %v2124, %v2126
  %v2131 = vsel %vm1098, %v2122, %v2124
  %v2132 = vsel %vm1098, %v2120, %v2122
  %v2133 = vsel %vm1098, %v2118, %v2120
  %v2134 = vsel %vm1098, %v2116, %v2118
  %v2135 = vsel %vm1098, %v2114, %v2116
  %v2136 = vsel %vm1098, %v2128, %v2114
  %v2137 = vadd.f32 %v2077, %v2135
  %v2138 = vadd.f32 %v2078, %v2134
  %v2139 = vadd.f32 %v2079, %v2133
  %v2140 = vadd.f32 %v2080, %v2132
  %v2141 = vadd.f32 %v2081, %v2131
  %v2142 = vadd.f32 %v2082, %v2130
  %v2143 = vadd.f32 %v2083, %v2129
  %v2144 = vadd.f32 %v2084, %v2136
  %v2153 = vrot.slane %v2105, 4
  %v2154 = vrot.slane %v2106, 4
  %v2155 = vrot.slane %v2107, 4
  %v2156 = vrot.slane %v2108, 4
  %v2157 = vrot.slane %v2109, 4
  %v2158 = vrot.slane %v2110, 4
  %v2159 = vrot.slane %v2111, 4
  %v2160 = vrot.slane %v2112, 4
  %2169 = vrot.lane.b32.xlu0 %v2153, 56
  %v2170 = vpop.permute.xlu0 %2169
  %2171 = vrot.lane.b32.xlu0 %v2154, 56
  %v2172 = vpop.permute.xlu0 %2171
  %2173 = vrot.lane.b32.xlu0 %v2155, 56
  %v2174 = vpop.permute.xlu0 %2173
  %2175 = vrot.lane.b32.xlu0 %v2156, 56
  %v2176 = vpop.permute.xlu0 %2175
  %2177 = vrot.lane.b32.xlu0 %v2157, 56
  %v2178 = vpop.permute.xlu0 %2177
  %2179 = vrot.lane.b32.xlu0 %v2158, 56
  %v2180 = vpop.permute.xlu0 %2179
  %2181 = vrot.lane.b32.xlu0 %v2159, 56
  %v2182 = vpop.permute.xlu0 %2181
  %2183 = vrot.lane.b32.xlu0 %v2160, 56
  %v2184 = vpop.permute.xlu0 %2183
  %v2185 = vsel %vm1155, %v2182, %v2184
  %v2186 = vsel %vm1155, %v2180, %v2182
  %v2187 = vsel %vm1155, %v2178, %v2180
  %v2188 = vsel %vm1155, %v2176, %v2178
  %v2189 = vsel %vm1155, %v2174, %v2176
  %v2190 = vsel %vm1155, %v2172, %v2174
  %v2191 = vsel %vm1155, %v2170, %v2172
  %v2192 = vsel %vm1155, %v2184, %v2170
  %v2193 = vadd.f32 %v2137, %v2191
  %v2194 = vadd.f32 %v2138, %v2190
  %v2195 = vadd.f32 %v2139, %v2189
  %v2196 = vadd.f32 %v2140, %v2188
  %v2197 = vadd.f32 %v2141, %v2187
  %v2198 = vadd.f32 %v2142, %v2186
  %v2199 = vadd.f32 %v2143, %v2185
  %v2200 = vadd.f32 %v2144, %v2192
  %v2201 = vld [vmem:[#allocation2 + $0x340] sm:$0xff]
  %v2202 = vld [vmem:[#allocation2 + $0x348] sm:$0xff]
  %v2203 = vld [vmem:[#allocation2 + $0x350] sm:$0xff]
  %v2204 = vld [vmem:[#allocation2 + $0x358] sm:$0xff]
  %v2205 = vld [vmem:[#allocation2 + $0x360] sm:$0xff]
  %v2206 = vld [vmem:[#allocation2 + $0x368] sm:$0xff]
  %v2207 = vld [vmem:[#allocation2 + $0x370] sm:$0xff]
  %v2208 = vld [vmem:[#allocation2 + $0x378] sm:$0xff]
  %v2209 = vld [vmem:[%s3 + $0x1a0] sm:$0xff]
  %v2210 = vld [vmem:[%s3 + $0x1a8] sm:$0xff]
  %v2211 = vld [vmem:[%s3 + $0x1b0] sm:$0xff]
  %v2212 = vld [vmem:[%s3 + $0x1b8] sm:$0xff]
  %v2213 = vunpack.c.l.bf16 %v2209
  %v2214 = vunpack.c.h.bf16 %v2209
  %v2215 = vunpack.c.l.bf16 %v2210
  %v2216 = vunpack.c.h.bf16 %v2210
  %v2217 = vunpack.c.l.bf16 %v2211
  %v2218 = vunpack.c.h.bf16 %v2211
  %v2219 = vunpack.c.l.bf16 %v2212
  %v2220 = vunpack.c.h.bf16 %v2212
  %v2221 = vmul.f32 %v2201, %v2213
  %v2222 = vmul.f32 %v2202, %v2214
  %v2223 = vmul.f32 %v2203, %v2215
  %v2224 = vmul.f32 %v2204, %v2216
  %v2225 = vmul.f32 %v2205, %v2217
  %v2226 = vmul.f32 %v2206, %v2218
  %v2227 = vmul.f32 %v2207, %v2219
  %v2228 = vmul.f32 %v2208, %v2220
  %2229 = vrot.lane.b32.xlu0 %v2221, 55
  %v2230 = vpop.permute.xlu0 %2229
  %2231 = vrot.lane.b32.xlu0 %v2222, 55
  %v2232 = vpop.permute.xlu0 %2231
  %2233 = vrot.lane.b32.xlu0 %v2223, 55
  %v2234 = vpop.permute.xlu0 %2233
  %2235 = vrot.lane.b32.xlu0 %v2224, 55
  %v2236 = vpop.permute.xlu0 %2235
  %2237 = vrot.lane.b32.xlu0 %v2225, 55
  %v2238 = vpop.permute.xlu0 %2237
  %2239 = vrot.lane.b32.xlu0 %v2226, 55
  %v2240 = vpop.permute.xlu0 %2239
  %2241 = vrot.lane.b32.xlu0 %v2227, 55
  %v2242 = vpop.permute.xlu0 %2241
  %2243 = vrot.lane.b32.xlu0 %v2228, 55
  %v2244 = vpop.permute.xlu0 %2243
  %v2245 = vsel %vm1216, %v2242, %v2244
  %v2246 = vsel %vm1216, %v2240, %v2242
  %v2247 = vsel %vm1216, %v2238, %v2240
  %v2248 = vsel %vm1216, %v2236, %v2238
  %v2249 = vsel %vm1216, %v2234, %v2236
  %v2250 = vsel %vm1216, %v2232, %v2234
  %v2251 = vsel %vm1216, %v2230, %v2232
  %v2252 = vsel %vm1216, %v2244, %v2230
  %v2253 = vadd.f32 %v2193, %v2251
  %v2254 = vadd.f32 %v2194, %v2250
  %v2255 = vadd.f32 %v2195, %v2249
  %v2256 = vadd.f32 %v2196, %v2248
  %v2257 = vadd.f32 %v2197, %v2247
  %v2258 = vadd.f32 %v2198, %v2246
  %v2259 = vadd.f32 %v2199, %v2245
  %v2260 = vadd.f32 %v2200, %v2252
  %v2261 = vmax.f32 %v2253, 0.0
  %v2262 = vmax.f32 %v2254, 0.0
  %v2263 = vmax.f32 %v2255, 0.0
  %v2264 = vmax.f32 %v2256, 0.0
  %v2265 = vmax.f32 %v2257, 0.0
  %v2266 = vmax.f32 %v2258, 0.0
  %v2267 = vmax.f32 %v2259, 0.0
  %v2268 = vmax.f32 %v2260, 0.0
  %v2269 = vld [vmem:[%s2] sm:$0xff]
  %v2270 = vld [vmem:[%s2 + $0x8] sm:$0xff]
  %v2271 = vld [vmem:[%s2 + $0x10] sm:$0xff]
  %v2272 = vld [vmem:[%s2 + $0x18] sm:$0xff]
  %v2273 = vld [vmem:[%s2 + $0x20] sm:$0xff]
  %v2274 = vld [vmem:[%s2 + $0x28] sm:$0xff]
  %v2275 = vld [vmem:[%s2 + $0x30] sm:$0xff]
  %v2276 = vld [vmem:[%s2 + $0x38] sm:$0xff]
  %v2277 = vld [vmem:[%s2 + $0x40] sm:$0xff]
  %v2278 = vld [vmem:[%s2 + $0x48] sm:$0xff]
  %v2279 = vld [vmem:[%s2 + $0x50] sm:$0xff]
  %v2280 = vld [vmem:[%s2 + $0x58] sm:$0xff]
  %v2281 = vld [vmem:[%s2 + $0x60] sm:$0xff]
  %v2282 = vld [vmem:[%s2 + $0x68] sm:$0xff]
  %v2284 = vsel %vm54, %v2269, 0
  %v2287 = vsel %vm54, %v2270, 0
  %v2290 = vsel %vm54, %v2271, 0
  %v2293 = vsel %vm54, %v2272, 0
  %v2296 = vsel %vm54, %v2273, 0
  %v2299 = vsel %vm54, %v2274, 0
  %v2302 = vsel %vm54, %v2275, 0
  %v2305 = vsel %vm54, %v2276, 0
  %v2308 = vsel %vm54, %v2277, 0
  %v2311 = vsel %vm54, %v2278, 0
  %v2314 = vsel %vm54, %v2279, 0
  %v2317 = vsel %vm54, %v2280, 0
  %v2320 = vsel %vm54, %v2281, 0
  %v2323 = vsel %vm54, %v2282, 0
  %v2326 = vsel %vm97, %v2261, 0
  %v2329 = vsel %vm97, %v2262, 0
  %v2332 = vsel %vm97, %v2263, 0
  %v2335 = vsel %vm97, %v2264, 0
  %v2338 = vsel %vm97, %v2265, 0
  %v2341 = vsel %vm97, %v2266, 0
  %v2344 = vsel %vm97, %v2267, 0
  %v2347 = vsel %vm97, %v2268, 0
  %2349 = vmatpush.msra.mxu0 0.0
  %2350 = vmatpush.msra.mxu0 0.0
  %2351 = vmatpush.msra.mxu0 0.0
  %2352 = vmatpush.msra.mxu0 0.0
  %2353 = vmatpush.msra.mxu0 0.0
  %2354 = vmatpush.msra.mxu0 0.0
  %2355 = vmatpush.msra.mxu0 0.0
  %2356 = vmatpush.msra.mxu0 0.0
  %2357 = vmatpush.msra.mxu0 0.0
  %2358 = vmatpush.msra.mxu0 0.0
  %2359 = vmatpush.msra.mxu0 0.0
  %2360 = vmatpush.msra.mxu0 0.0
  %2361 = vmatpush.msra.mxu0 0.0
  %2362 = vmatpush.msra.mxu0 0.0
  %2363 = vmatpush.msra.mxu0 0.0
  %2364 = vmatpush.msra.mxu0 %v2326
  %2365 = vmatmul.f32.gmra.mxu0 %v2284
  %v2366 = vpop.f32.mrf.mxu0
  %v2367 = vadd.f32 0.0, %v2366
  %2368 = vmatmul.f32.gmra.mxu0 %v2287
  %v2369 = vpop.f32.mrf.mxu0
  %v2370 = vadd.f32 0.0, %v2369
  %2371 = vmatmul.f32.gmra.mxu0 %v2290
  %v2372 = vpop.f32.mrf.mxu0
  %v2373 = vadd.f32 0.0, %v2372
  %2374 = vmatmul.f32.gmra.mxu0 %v2293
  %v2375 = vpop.f32.mrf.mxu0
  %v2376 = vadd.f32 0.0, %v2375
  %2377 = vmatmul.f32.gmra.mxu0 %v2296
  %v2378 = vpop.f32.mrf.mxu0
  %v2379 = vadd.f32 0.0, %v2378
  %2380 = vmatmul.f32.gmra.mxu0 %v2299
  %v2381 = vpop.f32.mrf.mxu0
  %v2382 = vadd.f32 0.0, %v2381
  %2383 = vmatmul.f32.gmra.mxu0 %v2302
  %v2384 = vpop.f32.mrf.mxu0
  %v2385 = vadd.f32 0.0, %v2384
  %2386 = vmatmul.f32.gmra.mxu0 %v2305
  %v2387 = vpop.f32.mrf.mxu0
  %v2388 = vadd.f32 0.0, %v2387
  %2389 = vmatmul.f32.gmra.mxu0 %v2308
  %v2390 = vpop.f32.mrf.mxu0
  %v2391 = vadd.f32 0.0, %v2390
  %2392 = vmatmul.f32.gmra.mxu0 %v2311
  %v2393 = vpop.f32.mrf.mxu0
  %v2394 = vadd.f32 0.0, %v2393
  %2395 = vmatmul.f32.gmra.mxu0 %v2314
  %v2396 = vpop.f32.mrf.mxu0
  %v2397 = vadd.f32 0.0, %v2396
  %2398 = vmatmul.f32.gmra.mxu0 %v2317
  %v2399 = vpop.f32.mrf.mxu0
  %v2400 = vadd.f32 0.0, %v2399
  %2401 = vmatmul.f32.gmra.mxu0 %v2320
  %v2402 = vpop.f32.mrf.mxu0
  %v2403 = vadd.f32 0.0, %v2402
  %2404 = vmatmul.f32.gmra.mxu0 %v2323
  %v2405 = vpop.f32.mrf.mxu0
  %v2406 = vadd.f32 0.0, %v2405
  %2407 = vdwg.mxu0
  %2408 = vmatpush.msra.mxu0 0.0
  %2409 = vmatpush.msra.mxu0 0.0
  %2410 = vmatpush.msra.mxu0 0.0
  %2411 = vmatpush.msra.mxu0 0.0
  %2412 = vmatpush.msra.mxu0 0.0
  %2413 = vmatpush.msra.mxu0 0.0
  %2414 = vmatpush.msra.mxu0 0.0
  %2415 = vmatpush.msra.mxu0 0.0
  %2416 = vmatpush.msra.mxu0 0.0
  %2417 = vmatpush.msra.mxu0 0.0
  %2418 = vmatpush.msra.mxu0 0.0
  %2419 = vmatpush.msra.mxu0 0.0
  %2420 = vmatpush.msra.mxu0 0.0
  %2421 = vmatpush.msra.mxu0 0.0
  %2422 = vmatpush.msra.mxu0 0.0
  %2423 = vmatpush.msra.mxu0 %v2329
  %2424 = vmatmul.f32.gmra.mxu0 %v2284
  %v2425 = vpop.f32.mrf.mxu0
  %v2426 = vadd.f32 0.0, %v2425
  %2427 = vmatmul.f32.gmra.mxu0 %v2287
  %v2428 = vpop.f32.mrf.mxu0
  %v2429 = vadd.f32 0.0, %v2428
  %2430 = vmatmul.f32.gmra.mxu0 %v2290
  %v2431 = vpop.f32.mrf.mxu0
  %v2432 = vadd.f32 0.0, %v2431
  %2433 = vmatmul.f32.gmra.mxu0 %v2293
  %v2434 = vpop.f32.mrf.mxu0
  %v2435 = vadd.f32 0.0, %v2434
  %2436 = vmatmul.f32.gmra.mxu0 %v2296
  %v2437 = vpop.f32.mrf.mxu0
  %v2438 = vadd.f32 0.0, %v2437
  %2439 = vmatmul.f32.gmra.mxu0 %v2299
  %v2440 = vpop.f32.mrf.mxu0
  %v2441 = vadd.f32 0.0, %v2440
  %2442 = vmatmul.f32.gmra.mxu0 %v2302
  %v2443 = vpop.f32.mrf.mxu0
  %v2444 = vadd.f32 0.0, %v2443
  %2445 = vmatmul.f32.gmra.mxu0 %v2305
  %v2446 = vpop.f32.mrf.mxu0
  %v2447 = vadd.f32 0.0, %v2446
  %2448 = vmatmul.f32.gmra.mxu0 %v2308
  %v2449 = vpop.f32.mrf.mxu0
  %v2450 = vadd.f32 0.0, %v2449
  %2451 = vmatmul.f32.gmra.mxu0 %v2311
  %v2452 = vpop.f32.mrf.mxu0
  %v2453 = vadd.f32 0.0, %v2452
  %2454 = vmatmul.f32.gmra.mxu0 %v2314
  %v2455 = vpop.f32.mrf.mxu0
  %v2456 = vadd.f32 0.0, %v2455
  %2457 = vmatmul.f32.gmra.mxu0 %v2317
  %v2458 = vpop.f32.mrf.mxu0
  %v2459 = vadd.f32 0.0, %v2458
  %2460 = vmatmul.f32.gmra.mxu0 %v2320
  %v2461 = vpop.f32.mrf.mxu0
  %v2462 = vadd.f32 0.0, %v2461
  %2463 = vmatmul.f32.gmra.mxu0 %v2323
  %v2464 = vpop.f32.mrf.mxu0
  %v2465 = vadd.f32 0.0, %v2464
  %2466 = vdwg.mxu0
  %2467 = vmatpush.msra.mxu0 0.0
  %2468 = vmatpush.msra.mxu0 0.0
  %2469 = vmatpush.msra.mxu0 0.0
  %2470 = vmatpush.msra.mxu0 0.0
  %2471 = vmatpush.msra.mxu0 0.0
  %2472 = vmatpush.msra.mxu0 0.0
  %2473 = vmatpush.msra.mxu0 0.0
  %2474 = vmatpush.msra.mxu0 0.0
  %2475 = vmatpush.msra.mxu0 0.0
  %2476 = vmatpush.msra.mxu0 0.0
  %2477 = vmatpush.msra.mxu0 0.0
  %2478 = vmatpush.msra.mxu0 0.0
  %2479 = vmatpush.msra.mxu0 0.0
  %2480 = vmatpush.msra.mxu0 0.0
  %2481 = vmatpush.msra.mxu0 0.0
  %2482 = vmatpush.msra.mxu0 %v2332
  %2483 = vmatmul.f32.gmra.mxu0 %v2284
  %v2484 = vpop.f32.mrf.mxu0
  %v2485 = vadd.f32 0.0, %v2484
  %2486 = vmatmul.f32.gmra.mxu0 %v2287
  %v2487 = vpop.f32.mrf.mxu0
  %v2488 = vadd.f32 0.0, %v2487
  %2489 = vmatmul.f32.gmra.mxu0 %v2290
  %v2490 = vpop.f32.mrf.mxu0
  %v2491 = vadd.f32 0.0, %v2490
  %2492 = vmatmul.f32.gmra.mxu0 %v2293
  %v2493 = vpop.f32.mrf.mxu0
  %v2494 = vadd.f32 0.0, %v2493
  %2495 = vmatmul.f32.gmra.mxu0 %v2296
  %v2496 = vpop.f32.mrf.mxu0
  %v2497 = vadd.f32 0.0, %v2496
  %2498 = vmatmul.f32.gmra.mxu0 %v2299
  %v2499 = vpop.f32.mrf.mxu0
  %v2500 = vadd.f32 0.0, %v2499
  %2501 = vmatmul.f32.gmra.mxu0 %v2302
  %v2502 = vpop.f32.mrf.mxu0
  %v2503 = vadd.f32 0.0, %v2502
  %2504 = vmatmul.f32.gmra.mxu0 %v2305
  %v2505 = vpop.f32.mrf.mxu0
  %v2506 = vadd.f32 0.0, %v2505
  %2507 = vmatmul.f32.gmra.mxu0 %v2308
  %v2508 = vpop.f32.mrf.mxu0
  %v2509 = vadd.f32 0.0, %v2508
  %2510 = vmatmul.f32.gmra.mxu0 %v2311
  %v2511 = vpop.f32.mrf.mxu0
  %v2512 = vadd.f32 0.0, %v2511
  %2513 = vmatmul.f32.gmra.mxu0 %v2314
  %v2514 = vpop.f32.mrf.mxu0
  %v2515 = vadd.f32 0.0, %v2514
  %2516 = vmatmul.f32.gmra.mxu0 %v2317
  %v2517 = vpop.f32.mrf.mxu0
  %v2518 = vadd.f32 0.0, %v2517
  %2519 = vmatmul.f32.gmra.mxu0 %v2320
  %v2520 = vpop.f32.mrf.mxu0
  %v2521 = vadd.f32 0.0, %v2520
  %2522 = vmatmul.f32.gmra.mxu0 %v2323
  %v2523 = vpop.f32.mrf.mxu0
  %v2524 = vadd.f32 0.0, %v2523
  %2525 = vdwg.mxu0
  %2526 = vmatpush.msra.mxu0 0.0
  %2527 = vmatpush.msra.mxu0 0.0
  %2528 = vmatpush.msra.mxu0 0.0
  %2529 = vmatpush.msra.mxu0 0.0
  %2530 = vmatpush.msra.mxu0 0.0
  %2531 = vmatpush.msra.mxu0 0.0
  %2532 = vmatpush.msra.mxu0 0.0
  %2533 = vmatpush.msra.mxu0 0.0
  %2534 = vmatpush.msra.mxu0 0.0
  %2535 = vmatpush.msra.mxu0 0.0
  %2536 = vmatpush.msra.mxu0 0.0
  %2537 = vmatpush.msra.mxu0 0.0
  %2538 = vmatpush.msra.mxu0 0.0
  %2539 = vmatpush.msra.mxu0 0.0
  %2540 = vmatpush.msra.mxu0 0.0
  %2541 = vmatpush.msra.mxu0 %v2335
  %2542 = vmatmul.f32.gmra.mxu0 %v2284
  %v2543 = vpop.f32.mrf.mxu0
  %v2544 = vadd.f32 0.0, %v2543
  %2545 = vmatmul.f32.gmra.mxu0 %v2287
  %v2546 = vpop.f32.mrf.mxu0
  %v2547 = vadd.f32 0.0, %v2546
  %2548 = vmatmul.f32.gmra.mxu0 %v2290
  %v2549 = vpop.f32.mrf.mxu0
  %v2550 = vadd.f32 0.0, %v2549
  %2551 = vmatmul.f32.gmra.mxu0 %v2293
  %v2552 = vpop.f32.mrf.mxu0
  %v2553 = vadd.f32 0.0, %v2552
  %2554 = vmatmul.f32.gmra.mxu0 %v2296
  %v2555 = vpop.f32.mrf.mxu0
  %v2556 = vadd.f32 0.0, %v2555
  %2557 = vmatmul.f32.gmra.mxu0 %v2299
  %v2558 = vpop.f32.mrf.mxu0
  %v2559 = vadd.f32 0.0, %v2558
  %2560 = vmatmul.f32.gmra.mxu0 %v2302
  %v2561 = vpop.f32.mrf.mxu0
  %v2562 = vadd.f32 0.0, %v2561
  %2563 = vmatmul.f32.gmra.mxu0 %v2305
  %v2564 = vpop.f32.mrf.mxu0
  %v2565 = vadd.f32 0.0, %v2564
  %2566 = vmatmul.f32.gmra.mxu0 %v2308
  %v2567 = vpop.f32.mrf.mxu0
  %v2568 = vadd.f32 0.0, %v2567
  %2569 = vmatmul.f32.gmra.mxu0 %v2311
  %v2570 = vpop.f32.mrf.mxu0
  %v2571 = vadd.f32 0.0, %v2570
  %2572 = vmatmul.f32.gmra.mxu0 %v2314
  %v2573 = vpop.f32.mrf.mxu0
  %v2574 = vadd.f32 0.0, %v2573
  %2575 = vmatmul.f32.gmra.mxu0 %v2317
  %v2576 = vpop.f32.mrf.mxu0
  %v2577 = vadd.f32 0.0, %v2576
  %2578 = vmatmul.f32.gmra.mxu0 %v2320
  %v2579 = vpop.f32.mrf.mxu0
  %v2580 = vadd.f32 0.0, %v2579
  %2581 = vmatmul.f32.gmra.mxu0 %v2323
  %v2582 = vpop.f32.mrf.mxu0
  %v2583 = vadd.f32 0.0, %v2582
  %2584 = vdwg.mxu0
  %2585 = vmatpush.msra.mxu0 0.0
  %2586 = vmatpush.msra.mxu0 0.0
  %2587 = vmatpush.msra.mxu0 0.0
  %2588 = vmatpush.msra.mxu0 0.0
  %2589 = vmatpush.msra.mxu0 0.0
  %2590 = vmatpush.msra.mxu0 0.0
  %2591 = vmatpush.msra.mxu0 0.0
  %2592 = vmatpush.msra.mxu0 0.0
  %2593 = vmatpush.msra.mxu0 0.0
  %2594 = vmatpush.msra.mxu0 0.0
  %2595 = vmatpush.msra.mxu0 0.0
  %2596 = vmatpush.msra.mxu0 0.0
  %2597 = vmatpush.msra.mxu0 0.0
  %2598 = vmatpush.msra.mxu0 0.0
  %2599 = vmatpush.msra.mxu0 0.0
  %2600 = vmatpush.msra.mxu0 %v2338
  %2601 = vmatmul.f32.gmra.mxu0 %v2284
  %v2602 = vpop.f32.mrf.mxu0
  %v2603 = vadd.f32 0.0, %v2602
  %2604 = vmatmul.f32.gmra.mxu0 %v2287
  %v2605 = vpop.f32.mrf.mxu0
  %v2606 = vadd.f32 0.0, %v2605
  %2607 = vmatmul.f32.gmra.mxu0 %v2290
  %v2608 = vpop.f32.mrf.mxu0
  %v2609 = vadd.f32 0.0, %v2608
  %2610 = vmatmul.f32.gmra.mxu0 %v2293
  %v2611 = vpop.f32.mrf.mxu0
  %v2612 = vadd.f32 0.0, %v2611
  %2613 = vmatmul.f32.gmra.mxu0 %v2296
  %v2614 = vpop.f32.mrf.mxu0
  %v2615 = vadd.f32 0.0, %v2614
  %2616 = vmatmul.f32.gmra.mxu0 %v2299
  %v2617 = vpop.f32.mrf.mxu0
  %v2618 = vadd.f32 0.0, %v2617
  %2619 = vmatmul.f32.gmra.mxu0 %v2302
  %v2620 = vpop.f32.mrf.mxu0
  %v2621 = vadd.f32 0.0, %v2620
  %2622 = vmatmul.f32.gmra.mxu0 %v2305
  %v2623 = vpop.f32.mrf.mxu0
  %v2624 = vadd.f32 0.0, %v2623
  %2625 = vmatmul.f32.gmra.mxu0 %v2308
  %v2626 = vpop.f32.mrf.mxu0
  %v2627 = vadd.f32 0.0, %v2626
  %2628 = vmatmul.f32.gmra.mxu0 %v2311
  %v2629 = vpop.f32.mrf.mxu0
  %v2630 = vadd.f32 0.0, %v2629
  %2631 = vmatmul.f32.gmra.mxu0 %v2314
  %v2632 = vpop.f32.mrf.mxu0
  %v2633 = vadd.f32 0.0, %v2632
  %2634 = vmatmul.f32.gmra.mxu0 %v2317
  %v2635 = vpop.f32.mrf.mxu0
  %v2636 = vadd.f32 0.0, %v2635
  %2637 = vmatmul.f32.gmra.mxu0 %v2320
  %v2638 = vpop.f32.mrf.mxu0
  %v2639 = vadd.f32 0.0, %v2638
  %2640 = vmatmul.f32.gmra.mxu0 %v2323
  %v2641 = vpop.f32.mrf.mxu0
  %v2642 = vadd.f32 0.0, %v2641
  %2643 = vdwg.mxu0
  %2644 = vmatpush.msra.mxu0 0.0
  %2645 = vmatpush.msra.mxu0 0.0
  %2646 = vmatpush.msra.mxu0 0.0
  %2647 = vmatpush.msra.mxu0 0.0
  %2648 = vmatpush.msra.mxu0 0.0
  %2649 = vmatpush.msra.mxu0 0.0
  %2650 = vmatpush.msra.mxu0 0.0
  %2651 = vmatpush.msra.mxu0 0.0
  %2652 = vmatpush.msra.mxu0 0.0
  %2653 = vmatpush.msra.mxu0 0.0
  %2654 = vmatpush.msra.mxu0 0.0
  %2655 = vmatpush.msra.mxu0 0.0
  %2656 = vmatpush.msra.mxu0 0.0
  %2657 = vmatpush.msra.mxu0 0.0
  %2658 = vmatpush.msra.mxu0 0.0
  %2659 = vmatpush.msra.mxu0 %v2341
  %2660 = vmatmul.f32.gmra.mxu0 %v2284
  %v2661 = vpop.f32.mrf.mxu0
  %v2662 = vadd.f32 0.0, %v2661
  %2663 = vmatmul.f32.gmra.mxu0 %v2287
  %v2664 = vpop.f32.mrf.mxu0
  %v2665 = vadd.f32 0.0, %v2664
  %2666 = vmatmul.f32.gmra.mxu0 %v2290
  %v2667 = vpop.f32.mrf.mxu0
  %v2668 = vadd.f32 0.0, %v2667
  %2669 = vmatmul.f32.gmra.mxu0 %v2293
  %v2670 = vpop.f32.mrf.mxu0
  %v2671 = vadd.f32 0.0, %v2670
  %2672 = vmatmul.f32.gmra.mxu0 %v2296
  %v2673 = vpop.f32.mrf.mxu0
  %v2674 = vadd.f32 0.0, %v2673
  %2675 = vmatmul.f32.gmra.mxu0 %v2299
  %v2676 = vpop.f32.mrf.mxu0
  %v2677 = vadd.f32 0.0, %v2676
  %2678 = vmatmul.f32.gmra.mxu0 %v2302
  %v2679 = vpop.f32.mrf.mxu0
  %v2680 = vadd.f32 0.0, %v2679
  %2681 = vmatmul.f32.gmra.mxu0 %v2305
  %v2682 = vpop.f32.mrf.mxu0
  %v2683 = vadd.f32 0.0, %v2682
  %2684 = vmatmul.f32.gmra.mxu0 %v2308
  %v2685 = vpop.f32.mrf.mxu0
  %v2686 = vadd.f32 0.0, %v2685
  %2687 = vmatmul.f32.gmra.mxu0 %v2311
  %v2688 = vpop.f32.mrf.mxu0
  %v2689 = vadd.f32 0.0, %v2688
  %2690 = vmatmul.f32.gmra.mxu0 %v2314
  %v2691 = vpop.f32.mrf.mxu0
  %v2692 = vadd.f32 0.0, %v2691
  %2693 = vmatmul.f32.gmra.mxu0 %v2317
  %v2694 = vpop.f32.mrf.mxu0
  %v2695 = vadd.f32 0.0, %v2694
  %2696 = vmatmul.f32.gmra.mxu0 %v2320
  %v2697 = vpop.f32.mrf.mxu0
  %v2698 = vadd.f32 0.0, %v2697
  %2699 = vmatmul.f32.gmra.mxu0 %v2323
  %v2700 = vpop.f32.mrf.mxu0
  %v2701 = vadd.f32 0.0, %v2700
  %2702 = vdwg.mxu0
  %2703 = vmatpush.msra.mxu0 0.0
  %2704 = vmatpush.msra.mxu0 0.0
  %2705 = vmatpush.msra.mxu0 0.0
  %2706 = vmatpush.msra.mxu0 0.0
  %2707 = vmatpush.msra.mxu0 0.0
  %2708 = vmatpush.msra.mxu0 0.0
  %2709 = vmatpush.msra.mxu0 0.0
  %2710 = vmatpush.msra.mxu0 0.0
  %2711 = vmatpush.msra.mxu0 0.0
  %2712 = vmatpush.msra.mxu0 0.0
  %2713 = vmatpush.msra.mxu0 0.0
  %2714 = vmatpush.msra.mxu0 0.0
  %2715 = vmatpush.msra.mxu0 0.0
  %2716 = vmatpush.msra.mxu0 0.0
  %2717 = vmatpush.msra.mxu0 0.0
  %2718 = vmatpush.msra.mxu0 %v2344
  %2719 = vmatmul.f32.gmra.mxu0 %v2284
  %v2720 = vpop.f32.mrf.mxu0
  %v2721 = vadd.f32 0.0, %v2720
  %2722 = vmatmul.f32.gmra.mxu0 %v2287
  %v2723 = vpop.f32.mrf.mxu0
  %v2724 = vadd.f32 0.0, %v2723
  %2725 = vmatmul.f32.gmra.mxu0 %v2290
  %v2726 = vpop.f32.mrf.mxu0
  %v2727 = vadd.f32 0.0, %v2726
  %2728 = vmatmul.f32.gmra.mxu0 %v2293
  %v2729 = vpop.f32.mrf.mxu0
  %v2730 = vadd.f32 0.0, %v2729
  %2731 = vmatmul.f32.gmra.mxu0 %v2296
  %v2732 = vpop.f32.mrf.mxu0
  %v2733 = vadd.f32 0.0, %v2732
  %2734 = vmatmul.f32.gmra.mxu0 %v2299
  %v2735 = vpop.f32.mrf.mxu0
  %v2736 = vadd.f32 0.0, %v2735
  %2737 = vmatmul.f32.gmra.mxu0 %v2302
  %v2738 = vpop.f32.mrf.mxu0
  %v2739 = vadd.f32 0.0, %v2738
  %2740 = vmatmul.f32.gmra.mxu0 %v2305
  %v2741 = vpop.f32.mrf.mxu0
  %v2742 = vadd.f32 0.0, %v2741
  %2743 = vmatmul.f32.gmra.mxu0 %v2308
  %v2744 = vpop.f32.mrf.mxu0
  %v2745 = vadd.f32 0.0, %v2744
  %2746 = vmatmul.f32.gmra.mxu0 %v2311
  %v2747 = vpop.f32.mrf.mxu0
  %v2748 = vadd.f32 0.0, %v2747
  %2749 = vmatmul.f32.gmra.mxu0 %v2314
  %v2750 = vpop.f32.mrf.mxu0
  %v2751 = vadd.f32 0.0, %v2750
  %2752 = vmatmul.f32.gmra.mxu0 %v2317
  %v2753 = vpop.f32.mrf.mxu0
  %v2754 = vadd.f32 0.0, %v2753
  %2755 = vmatmul.f32.gmra.mxu0 %v2320
  %v2756 = vpop.f32.mrf.mxu0
  %v2757 = vadd.f32 0.0, %v2756
  %2758 = vmatmul.f32.gmra.mxu0 %v2323
  %v2759 = vpop.f32.mrf.mxu0
  %v2760 = vadd.f32 0.0, %v2759
  %2761 = vdwg.mxu0
  %2762 = vmatpush.msra.mxu0 0.0
  %2763 = vmatpush.msra.mxu0 0.0
  %2764 = vmatpush.msra.mxu0 0.0
  %2765 = vmatpush.msra.mxu0 0.0
  %2766 = vmatpush.msra.mxu0 0.0
  %2767 = vmatpush.msra.mxu0 0.0
  %2768 = vmatpush.msra.mxu0 0.0
  %2769 = vmatpush.msra.mxu0 0.0
  %2770 = vmatpush.msra.mxu0 0.0
  %2771 = vmatpush.msra.mxu0 0.0
  %2772 = vmatpush.msra.mxu0 0.0
  %2773 = vmatpush.msra.mxu0 0.0
  %2774 = vmatpush.msra.mxu0 0.0
  %2775 = vmatpush.msra.mxu0 0.0
  %2776 = vmatpush.msra.mxu0 0.0
  %2777 = vmatpush.msra.mxu0 %v2347
  %2778 = vmatmul.f32.gmra.mxu0 %v2284
  %v2779 = vpop.f32.mrf.mxu0
  %v2780 = vadd.f32 0.0, %v2779
  %2781 = vmatmul.f32.gmra.mxu0 %v2287
  %v2782 = vpop.f32.mrf.mxu0
  %v2783 = vadd.f32 0.0, %v2782
  %2784 = vmatmul.f32.gmra.mxu0 %v2290
  %v2785 = vpop.f32.mrf.mxu0
  %v2786 = vadd.f32 0.0, %v2785
  %2787 = vmatmul.f32.gmra.mxu0 %v2293
  %v2788 = vpop.f32.mrf.mxu0
  %v2789 = vadd.f32 0.0, %v2788
  %2790 = vmatmul.f32.gmra.mxu0 %v2296
  %v2791 = vpop.f32.mrf.mxu0
  %v2792 = vadd.f32 0.0, %v2791
  %2793 = vmatmul.f32.gmra.mxu0 %v2299
  %v2794 = vpop.f32.mrf.mxu0
  %v2795 = vadd.f32 0.0, %v2794
  %2796 = vmatmul.f32.gmra.mxu0 %v2302
  %v2797 = vpop.f32.mrf.mxu0
  %v2798 = vadd.f32 0.0, %v2797
  %2799 = vmatmul.f32.gmra.mxu0 %v2305
  %v2800 = vpop.f32.mrf.mxu0
  %v2801 = vadd.f32 0.0, %v2800
  %2802 = vmatmul.f32.gmra.mxu0 %v2308
  %v2803 = vpop.f32.mrf.mxu0
  %v2804 = vadd.f32 0.0, %v2803
  %2805 = vmatmul.f32.gmra.mxu0 %v2311
  %v2806 = vpop.f32.mrf.mxu0
  %v2807 = vadd.f32 0.0, %v2806
  %2808 = vmatmul.f32.gmra.mxu0 %v2314
  %v2809 = vpop.f32.mrf.mxu0
  %v2810 = vadd.f32 0.0, %v2809
  %2811 = vmatmul.f32.gmra.mxu0 %v2317
  %v2812 = vpop.f32.mrf.mxu0
  %v2813 = vadd.f32 0.0, %v2812
  %2814 = vmatmul.f32.gmra.mxu0 %v2320
  %v2815 = vpop.f32.mrf.mxu0
  %v2816 = vadd.f32 0.0, %v2815
  %2817 = vmatmul.f32.gmra.mxu0 %v2323
  %v2818 = vpop.f32.mrf.mxu0
  %v2819 = vadd.f32 0.0, %v2818
  %2820 = vdwg.mxu0
  %2821 = vst [vmem:[#allocation2] sm:$0xff] %v2367
  %2822 = vst [vmem:[#allocation2 + $0x8] sm:$0xff] %v2426
  %2823 = vst [vmem:[#allocation2 + $0x10] sm:$0xff] %v2485
  %2824 = vst [vmem:[#allocation2 + $0x18] sm:$0xff] %v2544
  %2825 = vst [vmem:[#allocation2 + $0x20] sm:$0xff] %v2603
  %2826 = vst [vmem:[#allocation2 + $0x28] sm:$0xff] %v2662
  %2827 = vst [vmem:[#allocation2 + $0x30] sm:$0xff] %v2721
  %2828 = vst [vmem:[#allocation2 + $0x38] sm:$0xff] %v2780
  %2829 = vst [vmem:[#allocation2 + $0x40] sm:$0xff] %v2370
  %2830 = vst [vmem:[#allocation2 + $0x48] sm:$0xff] %v2429
  %2831 = vst [vmem:[#allocation2 + $0x50] sm:$0xff] %v2488
  %2832 = vst [vmem:[#allocation2 + $0x58] sm:$0xff] %v2547
  %2833 = vst [vmem:[#allocation2 + $0x60] sm:$0xff] %v2606
  %2834 = vst [vmem:[#allocation2 + $0x68] sm:$0xff] %v2665
  %2835 = vst [vmem:[#allocation2 + $0x70] sm:$0xff] %v2724
  %2836 = vst [vmem:[#allocation2 + $0x78] sm:$0xff] %v2783
  %2837 = vst [vmem:[#allocation2 + $0x80] sm:$0xff] %v2373
  %2838 = vst [vmem:[#allocation2 + $0x88] sm:$0xff] %v2432
  %2839 = vst [vmem:[#allocation2 + $0x90] sm:$0xff] %v2491
  %2840 = vst [vmem:[#allocation2 + $0x98] sm:$0xff] %v2550
  %2841 = vst [vmem:[#allocation2 + $0xa0] sm:$0xff] %v2609
  %2842 = vst [vmem:[#allocation2 + $0xa8] sm:$0xff] %v2668
  %2843 = vst [vmem:[#allocation2 + $0xb0] sm:$0xff] %v2727
  %2844 = vst [vmem:[#allocation2 + $0xb8] sm:$0xff] %v2786
  %2845 = vst [vmem:[#allocation2 + $0xc0] sm:$0xff] %v2376
  %2846 = vst [vmem:[#allocation2 + $0xc8] sm:$0xff] %v2435
  %2847 = vst [vmem:[#allocation2 + $0xd0] sm:$0xff] %v2494
  %2848 = vst [vmem:[#allocation2 + $0xd8] sm:$0xff] %v2553
  %2849 = vst [vmem:[#allocation2 + $0xe0] sm:$0xff] %v2612
  %2850 = vst [vmem:[#allocation2 + $0xe8] sm:$0xff] %v2671
  %2851 = vst [vmem:[#allocation2 + $0xf0] sm:$0xff] %v2730
  %2852 = vst [vmem:[#allocation2 + $0xf8] sm:$0xff] %v2789
  %2853 = vst [vmem:[#allocation2 + $0x100] sm:$0xff] %v2379
  %2854 = vst [vmem:[#allocation2 + $0x108] sm:$0xff] %v2438
  %2855 = vst [vmem:[#allocation2 + $0x110] sm:$0xff] %v2497
  %2856 = vst [vmem:[#allocation2 + $0x118] sm:$0xff] %v2556
  %2857 = vst [vmem:[#allocation2 + $0x120] sm:$0xff] %v2615
  %2858 = vst [vmem:[#allocation2 + $0x128] sm:$0xff] %v2674
  %2859 = vst [vmem:[#allocation2 + $0x130] sm:$0xff] %v2733
  %2860 = vst [vmem:[#allocation2 + $0x138] sm:$0xff] %v2792
  %2861 = vst [vmem:[#allocation2 + $0x140] sm:$0xff] %v2382
  %2862 = vst [vmem:[#allocation2 + $0x148] sm:$0xff] %v2441
  %2863 = vst [vmem:[#allocation2 + $0x150] sm:$0xff] %v2500
  %2864 = vst [vmem:[#allocation2 + $0x158] sm:$0xff] %v2559
  %2865 = vst [vmem:[#allocation2 + $0x160] sm:$0xff] %v2618
  %2866 = vst [vmem:[#allocation2 + $0x168] sm:$0xff] %v2677
  %2867 = vst [vmem:[#allocation2 + $0x170] sm:$0xff] %v2736
  %2868 = vst [vmem:[#allocation2 + $0x178] sm:$0xff] %v2795
  %2869 = vst [vmem:[#allocation2 + $0x180] sm:$0xff] %v2385
  %2870 = vst [vmem:[#allocation2 + $0x188] sm:$0xff] %v2444
  %2871 = vst [vmem:[#allocation2 + $0x190] sm:$0xff] %v2503
  %2872 = vst [vmem:[#allocation2 + $0x198] sm:$0xff] %v2562
  %2873 = vst [vmem:[#allocation2 + $0x1a0] sm:$0xff] %v2621
  %2874 = vst [vmem:[#allocation2 + $0x1a8] sm:$0xff] %v2680
  %2875 = vst [vmem:[#allocation2 + $0x1b0] sm:$0xff] %v2739
  %2876 = vst [vmem:[#allocation2 + $0x1b8] sm:$0xff] %v2798
  %2877 = vst [vmem:[#allocation2 + $0x1c0] sm:$0xff] %v2388
  %2878 = vst [vmem:[#allocation2 + $0x1c8] sm:$0xff] %v2447
  %2879 = vst [vmem:[#allocation2 + $0x1d0] sm:$0xff] %v2506
  %2880 = vst [vmem:[#allocation2 + $0x1d8] sm:$0xff] %v2565
  %2881 = vst [vmem:[#allocation2 + $0x1e0] sm:$0xff] %v2624
  %2882 = vst [vmem:[#allocation2 + $0x1e8] sm:$0xff] %v2683
  %2883 = vst [vmem:[#allocation2 + $0x1f0] sm:$0xff] %v2742
  %2884 = vst [vmem:[#allocation2 + $0x1f8] sm:$0xff] %v2801
  %2885 = vst [vmem:[#allocation2 + $0x200] sm:$0xff] %v2391
  %2886 = vst [vmem:[#allocation2 + $0x208] sm:$0xff] %v2450
  %2887 = vst [vmem:[#allocation2 + $0x210] sm:$0xff] %v2509
  %2888 = vst [vmem:[#allocation2 + $0x218] sm:$0xff] %v2568
  %2889 = vst [vmem:[#allocation2 + $0x220] sm:$0xff] %v2627
  %2890 = vst [vmem:[#allocation2 + $0x228] sm:$0xff] %v2686
  %2891 = vst [vmem:[#allocation2 + $0x230] sm:$0xff] %v2745
  %2892 = vst [vmem:[#allocation2 + $0x238] sm:$0xff] %v2804
  %2893 = vst [vmem:[#allocation2 + $0x240] sm:$0xff] %v2394
  %2894 = vst [vmem:[#allocation2 + $0x248] sm:$0xff] %v2453
  %2895 = vst [vmem:[#allocation2 + $0x250] sm:$0xff] %v2512
  %2896 = vst [vmem:[#allocation2 + $0x258] sm:$0xff] %v2571
  %2897 = vst [vmem:[#allocation2 + $0x260] sm:$0xff] %v2630
  %2898 = vst [vmem:[#allocation2 + $0x268] sm:$0xff] %v2689
  %2899 = vst [vmem:[#allocation2 + $0x270] sm:$0xff] %v2748
  %2900 = vst [vmem:[#allocation2 + $0x278] sm:$0xff] %v2807
  %2901 = vst [vmem:[#allocation2 + $0x280] sm:$0xff] %v2397
  %2902 = vst [vmem:[#allocation2 + $0x288] sm:$0xff] %v2456
  %2903 = vst [vmem:[#allocation2 + $0x290] sm:$0xff] %v2515
  %2904 = vst [vmem:[#allocation2 + $0x298] sm:$0xff] %v2574
  %2905 = vst [vmem:[#allocation2 + $0x2a0] sm:$0xff] %v2633
  %2906 = vst [vmem:[#allocation2 + $0x2a8] sm:$0xff] %v2692
  %2907 = vst [vmem:[#allocation2 + $0x2b0] sm:$0xff] %v2751
  %2908 = vst [vmem:[#allocation2 + $0x2b8] sm:$0xff] %v2810
  %2909 = vst [vmem:[#allocation2 + $0x2c0] sm:$0xff] %v2400
  %2910 = vst [vmem:[#allocation2 + $0x2c8] sm:$0xff] %v2459
  %2911 = vst [vmem:[#allocation2 + $0x2d0] sm:$0xff] %v2518
  %2912 = vst [vmem:[#allocation2 + $0x2d8] sm:$0xff] %v2577
  %2913 = vst [vmem:[#allocation2 + $0x2e0] sm:$0xff] %v2636
  %2914 = vst [vmem:[#allocation2 + $0x2e8] sm:$0xff] %v2695
  %2915 = vst [vmem:[#allocation2 + $0x2f0] sm:$0xff] %v2754
  %2916 = vst [vmem:[#allocation2 + $0x2f8] sm:$0xff] %v2813
  %2917 = vst [vmem:[#allocation2 + $0x300] sm:$0xff] %v2403
  %2918 = vst [vmem:[#allocation2 + $0x308] sm:$0xff] %v2462
  %2919 = vst [vmem:[#allocation2 + $0x310] sm:$0xff] %v2521
  %2920 = vst [vmem:[#allocation2 + $0x318] sm:$0xff] %v2580
  %2921 = vst [vmem:[#allocation2 + $0x320] sm:$0xff] %v2639
  %2922 = vst [vmem:[#allocation2 + $0x328] sm:$0xff] %v2698
  %2923 = vst [vmem:[#allocation2 + $0x330] sm:$0xff] %v2757
  %2924 = vst [vmem:[#allocation2 + $0x338] sm:$0xff] %v2816
  %2925 = vst [vmem:[#allocation2 + $0x340] sm:$0xff] %v2406
  %2926 = vst [vmem:[#allocation2 + $0x348] sm:$0xff] %v2465
  %2927 = vst [vmem:[#allocation2 + $0x350] sm:$0xff] %v2524
  %2928 = vst [vmem:[#allocation2 + $0x358] sm:$0xff] %v2583
  %2929 = vst [vmem:[#allocation2 + $0x360] sm:$0xff] %v2642
  %2930 = vst [vmem:[#allocation2 + $0x368] sm:$0xff] %v2701
  %2931 = vst [vmem:[#allocation2 + $0x370] sm:$0xff] %v2760
  %2932 = vst [vmem:[#allocation2 + $0x378] sm:$0xff] %v2819
  %v2933 = vld [vmem:[#allocation2] sm:$0xff]
  %v2934 = vld [vmem:[#allocation2 + $0x8] sm:$0xff]
  %v2935 = vld [vmem:[#allocation2 + $0x10] sm:$0xff]
  %v2936 = vld [vmem:[#allocation2 + $0x18] sm:$0xff]
  %v2937 = vld [vmem:[#allocation2 + $0x20] sm:$0xff]
  %v2938 = vld [vmem:[#allocation2 + $0x28] sm:$0xff]
  %v2939 = vld [vmem:[#allocation2 + $0x30] sm:$0xff]
  %v2940 = vld [vmem:[#allocation2 + $0x38] sm:$0xff]
  %v2941 = vld [vmem:[%s3] sm:$0xff]
  %v2942 = vld [vmem:[%s3 + $0x8] sm:$0xff]
  %v2943 = vld [vmem:[%s3 + $0x10] sm:$0xff]
  %v2944 = vld [vmem:[%s3 + $0x18] sm:$0xff]
  %v2945 = vunpack.c.l.bf16 %v2941
  %v2946 = vunpack.c.h.bf16 %v2941
  %v2947 = vunpack.c.l.bf16 %v2942
  %v2948 = vunpack.c.h.bf16 %v2942
  %v2949 = vunpack.c.l.bf16 %v2943
  %v2950 = vunpack.c.h.bf16 %v2943
  %v2951 = vunpack.c.l.bf16 %v2944
  %v2952 = vunpack.c.h.bf16 %v2944
  %v2953 = vmul.f32 %v2933, %v2945
  %v2954 = vmul.f32 %v2934, %v2946
  %v2955 = vmul.f32 %v2935, %v2947
  %v2956 = vmul.f32 %v2936, %v2948
  %v2957 = vmul.f32 %v2937, %v2949
  %v2958 = vmul.f32 %v2938, %v2950
  %v2959 = vmul.f32 %v2939, %v2951
  %v2960 = vmul.f32 %v2940, %v2952
  %2961 = vrot.lane.b32.xlu0 %v2953, 73
  %v2962 = vpop.permute.xlu0 %2961
  %2963 = vrot.lane.b32.xlu0 %v2954, 73
  %v2964 = vpop.permute.xlu0 %2963
  %2965 = vrot.lane.b32.xlu0 %v2955, 73
  %v2966 = vpop.permute.xlu0 %2965
  %2967 = vrot.lane.b32.xlu0 %v2956, 73
  %v2968 = vpop.permute.xlu0 %2967
  %2969 = vrot.lane.b32.xlu0 %v2957, 73
  %v2970 = vpop.permute.xlu0 %2969
  %2971 = vrot.lane.b32.xlu0 %v2958, 73
  %v2972 = vpop.permute.xlu0 %2971
  %2973 = vrot.lane.b32.xlu0 %v2959, 73
  %v2974 = vpop.permute.xlu0 %2973
  %2975 = vrot.lane.b32.xlu0 %v2960, 73
  %v2976 = vpop.permute.xlu0 %2975
  %v2977 = vsel %vm744, %v2974, %v2976
  %v2978 = vsel %vm744, %v2972, %v2974
  %v2979 = vsel %vm744, %v2970, %v2972
  %v2980 = vsel %vm744, %v2968, %v2970
  %v2981 = vsel %vm744, %v2966, %v2968
  %v2982 = vsel %vm744, %v2964, %v2966
  %v2983 = vsel %vm744, %v2962, %v2964
  %v2984 = vsel %vm744, %v2976, %v2962
  %v2985 = vadd.f32 %v2984, 0.0
  %v2986 = vadd.f32 %v2983, 0.0
  %v2987 = vadd.f32 %v2982, 0.0
  %v2988 = vadd.f32 %v2981, 0.0
  %v2989 = vadd.f32 %v2980, 0.0
  %v2990 = vadd.f32 %v2979, 0.0
  %v2991 = vadd.f32 %v2978, 0.0
  %v2992 = vadd.f32 %v2977, 0.0
  %v3001 = vrot.slane %v2953, 4
  %v3002 = vrot.slane %v2954, 4
  %v3003 = vrot.slane %v2955, 4
  %v3004 = vrot.slane %v2956, 4
  %v3005 = vrot.slane %v2957, 4
  %v3006 = vrot.slane %v2958, 4
  %v3007 = vrot.slane %v2959, 4
  %v3008 = vrot.slane %v2960, 4
  %3017 = vrot.lane.b32.xlu0 %v3001, 72
  %v3018 = vpop.permute.xlu0 %3017
  %3019 = vrot.lane.b32.xlu0 %v3002, 72
  %v3020 = vpop.permute.xlu0 %3019
  %3021 = vrot.lane.b32.xlu0 %v3003, 72
  %v3022 = vpop.permute.xlu0 %3021
  %3023 = vrot.lane.b32.xlu0 %v3004, 72
  %v3024 = vpop.permute.xlu0 %3023
  %3025 = vrot.lane.b32.xlu0 %v3005, 72
  %v3026 = vpop.permute.xlu0 %3025
  %3027 = vrot.lane.b32.xlu0 %v3006, 72
  %v3028 = vpop.permute.xlu0 %3027
  %3029 = vrot.lane.b32.xlu0 %v3007, 72
  %v3030 = vpop.permute.xlu0 %3029
  %3031 = vrot.lane.b32.xlu0 %v3008, 72
  %v3032 = vpop.permute.xlu0 %3031
  %v3033 = vsel %vm801, %v3030, %v3032
  %v3034 = vsel %vm801, %v3028, %v3030
  %v3035 = vsel %vm801, %v3026, %v3028
  %v3036 = vsel %vm801, %v3024, %v3026
  %v3037 = vsel %vm801, %v3022, %v3024
  %v3038 = vsel %vm801, %v3020, %v3022
  %v3039 = vsel %vm801, %v3018, %v3020
  %v3040 = vsel %vm801, %v3032, %v3018
  %v3041 = vadd.f32 %v2985, %v3040
  %v3042 = vadd.f32 %v2986, %v3039
  %v3043 = vadd.f32 %v2987, %v3038
  %v3044 = vadd.f32 %v2988, %v3037
  %v3045 = vadd.f32 %v2989, %v3036
  %v3046 = vadd.f32 %v2990, %v3035
  %v3047 = vadd.f32 %v2991, %v3034
  %v3048 = vadd.f32 %v2992, %v3033
  %v3049 = vld [vmem:[#allocation2 + $0x40] sm:$0xff]
  %v3050 = vld [vmem:[#allocation2 + $0x48] sm:$0xff]
  %v3051 = vld [vmem:[#allocation2 + $0x50] sm:$0xff]
  %v3052 = vld [vmem:[#allocation2 + $0x58] sm:$0xff]
  %v3053 = vld [vmem:[#allocation2 + $0x60] sm:$0xff]
  %v3054 = vld [vmem:[#allocation2 + $0x68] sm:$0xff]
  %v3055 = vld [vmem:[#allocation2 + $0x70] sm:$0xff]
  %v3056 = vld [vmem:[#allocation2 + $0x78] sm:$0xff]
  %v3057 = vld [vmem:[%s3 + $0x20] sm:$0xff]
  %v3058 = vld [vmem:[%s3 + $0x28] sm:$0xff]
  %v3059 = vld [vmem:[%s3 + $0x30] sm:$0xff]
  %v3060 = vld [vmem:[%s3 + $0x38] sm:$0xff]
  %v3061 = vunpack.c.l.bf16 %v3057
  %v3062 = vunpack.c.h.bf16 %v3057
  %v3063 = vunpack.c.l.bf16 %v3058
  %v3064 = vunpack.c.h.bf16 %v3058
  %v3065 = vunpack.c.l.bf16 %v3059
  %v3066 = vunpack.c.h.bf16 %v3059
  %v3067 = vunpack.c.l.bf16 %v3060
  %v3068 = vunpack.c.h.bf16 %v3060
  %v3069 = vmul.f32 %v3049, %v3061
  %v3070 = vmul.f32 %v3050, %v3062
  %v3071 = vmul.f32 %v3051, %v3063
  %v3072 = vmul.f32 %v3052, %v3064
  %v3073 = vmul.f32 %v3053, %v3065
  %v3074 = vmul.f32 %v3054, %v3066
  %v3075 = vmul.f32 %v3055, %v3067
  %v3076 = vmul.f32 %v3056, %v3068
  %3077 = vrot.lane.b32.xlu0 %v3069, 71
  %v3078 = vpop.permute.xlu0 %3077
  %3079 = vrot.lane.b32.xlu0 %v3070, 71
  %v3080 = vpop.permute.xlu0 %3079
  %3081 = vrot.lane.b32.xlu0 %v3071, 71
  %v3082 = vpop.permute.xlu0 %3081
  %3083 = vrot.lane.b32.xlu0 %v3072, 71
  %v3084 = vpop.permute.xlu0 %3083
  %3085 = vrot.lane.b32.xlu0 %v3073, 71
  %v3086 = vpop.permute.xlu0 %3085
  %3087 = vrot.lane.b32.xlu0 %v3074, 71
  %v3088 = vpop.permute.xlu0 %3087
  %3089 = vrot.lane.b32.xlu0 %v3075, 71
  %v3090 = vpop.permute.xlu0 %3089
  %3091 = vrot.lane.b32.xlu0 %v3076, 71
  %v3092 = vpop.permute.xlu0 %3091
  %v3093 = vsel %vm862, %v3090, %v3092
  %v3094 = vsel %vm862, %v3088, %v3090
  %v3095 = vsel %vm862, %v3086, %v3088
  %v3096 = vsel %vm862, %v3084, %v3086
  %v3097 = vsel %vm862, %v3082, %v3084
  %v3098 = vsel %vm862, %v3080, %v3082
  %v3099 = vsel %vm862, %v3078, %v3080
  %v3100 = vsel %vm862, %v3092, %v3078
  %v3101 = vadd.f32 %v3041, %v3100
  %v3102 = vadd.f32 %v3042, %v3099
  %v3103 = vadd.f32 %v3043, %v3098
  %v3104 = vadd.f32 %v3044, %v3097
  %v3105 = vadd.f32 %v3045, %v3096
  %v3106 = vadd.f32 %v3046, %v3095
  %v3107 = vadd.f32 %v3047, %v3094
  %v3108 = vadd.f32 %v3048, %v3093
  %v3117 = vrot.slane %v3069, 4
  %v3118 = vrot.slane %v3070, 4
  %v3119 = vrot.slane %v3071, 4
  %v3120 = vrot.slane %v3072, 4
  %v3121 = vrot.slane %v3073, 4
  %v3122 = vrot.slane %v3074, 4
  %v3123 = vrot.slane %v3075, 4
  %v3124 = vrot.slane %v3076, 4
  %3133 = vrot.lane.b32.xlu0 %v3117, 65
  %v3134 = vpop.permute.xlu0 %3133
  %3135 = vrot.lane.b32.xlu0 %v3118, 65
  %v3136 = vpop.permute.xlu0 %3135
  %3137 = vrot.lane.b32.xlu0 %v3119, 65
  %v3138 = vpop.permute.xlu0 %3137
  %3139 = vrot.lane.b32.xlu0 %v3120, 65
  %v3140 = vpop.permute.xlu0 %3139
  %3141 = vrot.lane.b32.xlu0 %v3121, 65
  %v3142 = vpop.permute.xlu0 %3141
  %3143 = vrot.lane.b32.xlu0 %v3122, 65
  %v3144 = vpop.permute.xlu0 %3143
  %3145 = vrot.lane.b32.xlu0 %v3123, 65
  %v3146 = vpop.permute.xlu0 %3145
  %3147 = vrot.lane.b32.xlu0 %v3124, 65
  %v3148 = vpop.permute.xlu0 %3147
  %v3149 = vsel %vm919, %v3146, %v3148
  %v3150 = vsel %vm919, %v3144, %v3146
  %v3151 = vsel %vm919, %v3142, %v3144
  %v3152 = vsel %vm919, %v3140, %v3142
  %v3153 = vsel %vm919, %v3138, %v3140
  %v3154 = vsel %vm919, %v3136, %v3138
  %v3155 = vsel %vm919, %v3134, %v3136
  %v3156 = vsel %vm919, %v3148, %v3134
  %v3157 = vadd.f32 %v3101, %v3156
  %v3158 = vadd.f32 %v3102, %v3155
  %v3159 = vadd.f32 %v3103, %v3154
  %v3160 = vadd.f32 %v3104, %v3153
  %v3161 = vadd.f32 %v3105, %v3152
  %v3162 = vadd.f32 %v3106, %v3151
  %v3163 = vadd.f32 %v3107, %v3150
  %v3164 = vadd.f32 %v3108, %v3149
  %v3165 = vld [vmem:[#allocation2 + $0x80] sm:$0xff]
  %v3166 = vld [vmem:[#allocation2 + $0x88] sm:$0xff]
  %v3167 = vld [vmem:[#allocation2 + $0x90] sm:$0xff]
  %v3168 = vld [vmem:[#allocation2 + $0x98] sm:$0xff]
  %v3169 = vld [vmem:[#allocation2 + $0xa0] sm:$0xff]
  %v3170 = vld [vmem:[#allocation2 + $0xa8] sm:$0xff]
  %v3171 = vld [vmem:[#allocation2 + $0xb0] sm:$0xff]
  %v3172 = vld [vmem:[#allocation2 + $0xb8] sm:$0xff]
  %v3173 = vld [vmem:[%s3 + $0x40] sm:$0xff]
  %v3174 = vld [vmem:[%s3 + $0x48] sm:$0xff]
  %v3175 = vld [vmem:[%s3 + $0x50] sm:$0xff]
  %v3176 = vld [vmem:[%s3 + $0x58] sm:$0xff]
  %v3177 = vunpack.c.l.bf16 %v3173
  %v3178 = vunpack.c.h.bf16 %v3173
  %v3179 = vunpack.c.l.bf16 %v3174
  %v3180 = vunpack.c.h.bf16 %v3174
  %v3181 = vunpack.c.l.bf16 %v3175
  %v3182 = vunpack.c.h.bf16 %v3175
  %v3183 = vunpack.c.l.bf16 %v3176
  %v3184 = vunpack.c.h.bf16 %v3176
  %v3185 = vmul.f32 %v3165, %v3177
  %v3186 = vmul.f32 %v3166, %v3178
  %v3187 = vmul.f32 %v3167, %v3179
  %v3188 = vmul.f32 %v3168, %v3180
  %v3189 = vmul.f32 %v3169, %v3181
  %v3190 = vmul.f32 %v3170, %v3182
  %v3191 = vmul.f32 %v3171, %v3183
  %v3192 = vmul.f32 %v3172, %v3184
  %3193 = vrot.lane.b32.xlu0 %v3185, 64
  %v3194 = vpop.permute.xlu0 %3193
  %3195 = vrot.lane.b32.xlu0 %v3186, 64
  %v3196 = vpop.permute.xlu0 %3195
  %3197 = vrot.lane.b32.xlu0 %v3187, 64
  %v3198 = vpop.permute.xlu0 %3197
  %3199 = vrot.lane.b32.xlu0 %v3188, 64
  %v3200 = vpop.permute.xlu0 %3199
  %3201 = vrot.lane.b32.xlu0 %v3189, 64
  %v3202 = vpop.permute.xlu0 %3201
  %3203 = vrot.lane.b32.xlu0 %v3190, 64
  %v3204 = vpop.permute.xlu0 %3203
  %3205 = vrot.lane.b32.xlu0 %v3191, 64
  %v3206 = vpop.permute.xlu0 %3205
  %3207 = vrot.lane.b32.xlu0 %v3192, 64
  %v3208 = vpop.permute.xlu0 %3207
  %v3209 = vsel %vm980, %v3206, %v3208
  %v3210 = vsel %vm980, %v3204, %v3206
  %v3211 = vsel %vm980, %v3202, %v3204
  %v3212 = vsel %vm980, %v3200, %v3202
  %v3213 = vsel %vm980, %v3198, %v3200
  %v3214 = vsel %vm980, %v3196, %v3198
  %v3215 = vsel %vm980, %v3194, %v3196
  %v3216 = vsel %vm980, %v3208, %v3194
  %v3217 = vadd.f32 %v3157, %v3216
  %v3218 = vadd.f32 %v3158, %v3215
  %v3219 = vadd.f32 %v3159, %v3214
  %v3220 = vadd.f32 %v3160, %v3213
  %v3221 = vadd.f32 %v3161, %v3212
  %v3222 = vadd.f32 %v3162, %v3211
  %v3223 = vadd.f32 %v3163, %v3210
  %v3224 = vadd.f32 %v3164, %v3209
  %v3233 = vrot.slane %v3185, 4
  %v3234 = vrot.slane %v3186, 4
  %v3235 = vrot.slane %v3187, 4
  %v3236 = vrot.slane %v3188, 4
  %v3237 = vrot.slane %v3189, 4
  %v3238 = vrot.slane %v3190, 4
  %v3239 = vrot.slane %v3191, 4
  %v3240 = vrot.slane %v3192, 4
  %3249 = vrot.lane.b32.xlu0 %v3233, 63
  %v3250 = vpop.permute.xlu0 %3249
  %3251 = vrot.lane.b32.xlu0 %v3234, 63
  %v3252 = vpop.permute.xlu0 %3251
  %3253 = vrot.lane.b32.xlu0 %v3235, 63
  %v3254 = vpop.permute.xlu0 %3253
  %3255 = vrot.lane.b32.xlu0 %v3236, 63
  %v3256 = vpop.permute.xlu0 %3255
  %3257 = vrot.lane.b32.xlu0 %v3237, 63
  %v3258 = vpop.permute.xlu0 %3257
  %3259 = vrot.lane.b32.xlu0 %v3238, 63
  %v3260 = vpop.permute.xlu0 %3259
  %3261 = vrot.lane.b32.xlu0 %v3239, 63
  %v3262 = vpop.permute.xlu0 %3261
  %3263 = vrot.lane.b32.xlu0 %v3240, 63
  %v3264 = vpop.permute.xlu0 %3263
  %v3265 = vsel %vm1037, %v3262, %v3264
  %v3266 = vsel %vm1037, %v3260, %v3262
  %v3267 = vsel %vm1037, %v3258, %v3260
  %v3268 = vsel %vm1037, %v3256, %v3258
  %v3269 = vsel %vm1037, %v3254, %v3256
  %v3270 = vsel %vm1037, %v3252, %v3254
  %v3271 = vsel %vm1037, %v3250, %v3252
  %v3272 = vsel %vm1037, %v3264, %v3250
  %v3273 = vadd.f32 %v3217, %v3272
  %v3274 = vadd.f32 %v3218, %v3271
  %v3275 = vadd.f32 %v3219, %v3270
  %v3276 = vadd.f32 %v3220, %v3269
  %v3277 = vadd.f32 %v3221, %v3268
  %v3278 = vadd.f32 %v3222, %v3267
  %v3279 = vadd.f32 %v3223, %v3266
  %v3280 = vadd.f32 %v3224, %v3265
  %v3281 = vld [vmem:[#allocation2 + $0xc0] sm:$0xff]
  %v3282 = vld [vmem:[#allocation2 + $0xc8] sm:$0xff]
  %v3283 = vld [vmem:[#allocation2 + $0xd0] sm:$0xff]
  %v3284 = vld [vmem:[#allocation2 + $0xd8] sm:$0xff]
  %v3285 = vld [vmem:[#allocation2 + $0xe0] sm:$0xff]
  %v3286 = vld [vmem:[#allocation2 + $0xe8] sm:$0xff]
  %v3287 = vld [vmem:[#allocation2 + $0xf0] sm:$0xff]
  %v3288 = vld [vmem:[#allocation2 + $0xf8] sm:$0xff]
  %v3289 = vld [vmem:[%s3 + $0x60] sm:$0xff]
  %v3290 = vld [vmem:[%s3 + $0x68] sm:$0xff]
  %v3291 = vld [vmem:[%s3 + $0x70] sm:$0xff]
  %v3292 = vld [vmem:[%s3 + $0x78] sm:$0xff]
  %v3293 = vunpack.c.l.bf16 %v3289
  %v3294 = vunpack.c.h.bf16 %v3289
  %v3295 = vunpack.c.l.bf16 %v3290
  %v3296 = vunpack.c.h.bf16 %v3290
  %v3297 = vunpack.c.l.bf16 %v3291
  %v3298 = vunpack.c.h.bf16 %v3291
  %v3299 = vunpack.c.l.bf16 %v3292
  %v3300 = vunpack.c.h.bf16 %v3292
  %v3301 = vmul.f32 %v3281, %v3293
  %v3302 = vmul.f32 %v3282, %v3294
  %v3303 = vmul.f32 %v3283, %v3295
  %v3304 = vmul.f32 %v3284, %v3296
  %v3305 = vmul.f32 %v3285, %v3297
  %v3306 = vmul.f32 %v3286, %v3298
  %v3307 = vmul.f32 %v3287, %v3299
  %v3308 = vmul.f32 %v3288, %v3300
  %3309 = vrot.lane.b32.xlu0 %v3301, 57
  %v3310 = vpop.permute.xlu0 %3309
  %3311 = vrot.lane.b32.xlu0 %v3302, 57
  %v3312 = vpop.permute.xlu0 %3311
  %3313 = vrot.lane.b32.xlu0 %v3303, 57
  %v3314 = vpop.permute.xlu0 %3313
  %3315 = vrot.lane.b32.xlu0 %v3304, 57
  %v3316 = vpop.permute.xlu0 %3315
  %3317 = vrot.lane.b32.xlu0 %v3305, 57
  %v3318 = vpop.permute.xlu0 %3317
  %3319 = vrot.lane.b32.xlu0 %v3306, 57
  %v3320 = vpop.permute.xlu0 %3319
  %3321 = vrot.lane.b32.xlu0 %v3307, 57
  %v3322 = vpop.permute.xlu0 %3321
  %3323 = vrot.lane.b32.xlu0 %v3308, 57
  %v3324 = vpop.permute.xlu0 %3323
  %v3325 = vsel %vm1098, %v3322, %v3324
  %v3326 = vsel %vm1098, %v3320, %v3322
  %v3327 = vsel %vm1098, %v3318, %v3320
  %v3328 = vsel %vm1098, %v3316, %v3318
  %v3329 = vsel %vm1098, %v3314, %v3316
  %v3330 = vsel %vm1098, %v3312, %v3314
  %v3331 = vsel %vm1098, %v3310, %v3312
  %v3332 = vsel %vm1098, %v3324, %v3310
  %v3333 = vadd.f32 %v3273, %v3332
  %v3334 = vadd.f32 %v3274, %v3331
  %v3335 = vadd.f32 %v3275, %v3330
  %v3336 = vadd.f32 %v3276, %v3329
  %v3337 = vadd.f32 %v3277, %v3328
  %v3338 = vadd.f32 %v3278, %v3327
  %v3339 = vadd.f32 %v3279, %v3326
  %v3340 = vadd.f32 %v3280, %v3325
  %v3349 = vrot.slane %v3301, 4
  %v3350 = vrot.slane %v3302, 4
  %v3351 = vrot.slane %v3303, 4
  %v3352 = vrot.slane %v3304, 4
  %v3353 = vrot.slane %v3305, 4
  %v3354 = vrot.slane %v3306, 4
  %v3355 = vrot.slane %v3307, 4
  %v3356 = vrot.slane %v3308, 4
  %3365 = vrot.lane.b32.xlu0 %v3349, 56
  %v3366 = vpop.permute.xlu0 %3365
  %3367 = vrot.lane.b32.xlu0 %v3350, 56
  %v3368 = vpop.permute.xlu0 %3367
  %3369 = vrot.lane.b32.xlu0 %v3351, 56
  %v3370 = vpop.permute.xlu0 %3369
  %3371 = vrot.lane.b32.xlu0 %v3352, 56
  %v3372 = vpop.permute.xlu0 %3371
  %3373 = vrot.lane.b32.xlu0 %v3353, 56
  %v3374 = vpop.permute.xlu0 %3373
  %3375 = vrot.lane.b32.xlu0 %v3354, 56
  %v3376 = vpop.permute.xlu0 %3375
  %3377 = vrot.lane.b32.xlu0 %v3355, 56
  %v3378 = vpop.permute.xlu0 %3377
  %3379 = vrot.lane.b32.xlu0 %v3356, 56
  %v3380 = vpop.permute.xlu0 %3379
  %v3381 = vsel %vm1155, %v3378, %v3380
  %v3382 = vsel %vm1155, %v3376, %v3378
  %v3383 = vsel %vm1155, %v3374, %v3376
  %v3384 = vsel %vm1155, %v3372, %v3374
  %v3385 = vsel %vm1155, %v3370, %v3372
  %v3386 = vsel %vm1155, %v3368, %v3370
  %v3387 = vsel %vm1155, %v3366, %v3368
  %v3388 = vsel %vm1155, %v3380, %v3366
  %v3389 = vadd.f32 %v3333, %v3388
  %v3390 = vadd.f32 %v3334, %v3387
  %v3391 = vadd.f32 %v3335, %v3386
  %v3392 = vadd.f32 %v3336, %v3385
  %v3393 = vadd.f32 %v3337, %v3384
  %v3394 = vadd.f32 %v3338, %v3383
  %v3395 = vadd.f32 %v3339, %v3382
  %v3396 = vadd.f32 %v3340, %v3381
  %v3397 = vld [vmem:[#allocation2 + $0x100] sm:$0xff]
  %v3398 = vld [vmem:[#allocation2 + $0x108] sm:$0xff]
  %v3399 = vld [vmem:[#allocation2 + $0x110] sm:$0xff]
  %v3400 = vld [vmem:[#allocation2 + $0x118] sm:$0xff]
  %v3401 = vld [vmem:[#allocation2 + $0x120] sm:$0xff]
  %v3402 = vld [vmem:[#allocation2 + $0x128] sm:$0xff]
  %v3403 = vld [vmem:[#allocation2 + $0x130] sm:$0xff]
  %v3404 = vld [vmem:[#allocation2 + $0x138] sm:$0xff]
  %v3405 = vld [vmem:[%s3 + $0x80] sm:$0xff]
  %v3406 = vld [vmem:[%s3 + $0x88] sm:$0xff]
  %v3407 = vld [vmem:[%s3 + $0x90] sm:$0xff]
  %v3408 = vld [vmem:[%s3 + $0x98] sm:$0xff]
  %v3409 = vunpack.c.l.bf16 %v3405
  %v3410 = vunpack.c.h.bf16 %v3405
  %v3411 = vunpack.c.l.bf16 %v3406
  %v3412 = vunpack.c.h.bf16 %v3406
  %v3413 = vunpack.c.l.bf16 %v3407
  %v3414 = vunpack.c.h.bf16 %v3407
  %v3415 = vunpack.c.l.bf16 %v3408
  %v3416 = vunpack.c.h.bf16 %v3408
  %v3417 = vmul.f32 %v3397, %v3409
  %v3418 = vmul.f32 %v3398, %v3410
  %v3419 = vmul.f32 %v3399, %v3411
  %v3420 = vmul.f32 %v3400, %v3412
  %v3421 = vmul.f32 %v3401, %v3413
  %v3422 = vmul.f32 %v3402, %v3414
  %v3423 = vmul.f32 %v3403, %v3415
  %v3424 = vmul.f32 %v3404, %v3416
  %3425 = vrot.lane.b32.xlu0 %v3417, 55
  %v3426 = vpop.permute.xlu0 %3425
  %3427 = vrot.lane.b32.xlu0 %v3418, 55
  %v3428 = vpop.permute.xlu0 %3427
  %3429 = vrot.lane.b32.xlu0 %v3419, 55
  %v3430 = vpop.permute.xlu0 %3429
  %3431 = vrot.lane.b32.xlu0 %v3420, 55
  %v3432 = vpop.permute.xlu0 %3431
  %3433 = vrot.lane.b32.xlu0 %v3421, 55
  %v3434 = vpop.permute.xlu0 %3433
  %3435 = vrot.lane.b32.xlu0 %v3422, 55
  %v3436 = vpop.permute.xlu0 %3435
  %3437 = vrot.lane.b32.xlu0 %v3423, 55
  %v3438 = vpop.permute.xlu0 %3437
  %3439 = vrot.lane.b32.xlu0 %v3424, 55
  %v3440 = vpop.permute.xlu0 %3439
  %v3441 = vsel %vm1216, %v3438, %v3440
  %v3442 = vsel %vm1216, %v3436, %v3438
  %v3443 = vsel %vm1216, %v3434, %v3436
  %v3444 = vsel %vm1216, %v3432, %v3434
  %v3445 = vsel %vm1216, %v3430, %v3432
  %v3446 = vsel %vm1216, %v3428, %v3430
  %v3447 = vsel %vm1216, %v3426, %v3428
  %v3448 = vsel %vm1216, %v3440, %v3426
  %v3449 = vadd.f32 %v3389, %v3448
  %v3450 = vadd.f32 %v3390, %v3447
  %v3451 = vadd.f32 %v3391, %v3446
  %v3452 = vadd.f32 %v3392, %v3445
  %v3453 = vadd.f32 %v3393, %v3444
  %v3454 = vadd.f32 %v3394, %v3443
  %v3455 = vadd.f32 %v3395, %v3442
  %v3456 = vadd.f32 %v3396, %v3441
  %v3465 = vrot.slane %v3417, 4
  %v3466 = vrot.slane %v3418, 4
  %v3467 = vrot.slane %v3419, 4
  %v3468 = vrot.slane %v3420, 4
  %v3469 = vrot.slane %v3421, 4
  %v3470 = vrot.slane %v3422, 4
  %v3471 = vrot.slane %v3423, 4
  %v3472 = vrot.slane %v3424, 4
  %3481 = vrot.lane.b32.xlu0 %v3465, 9
  %v3482 = vpop.permute.xlu0 %3481
  %3483 = vrot.lane.b32.xlu0 %v3466, 9
  %v3484 = vpop.permute.xlu0 %3483
  %3485 = vrot.lane.b32.xlu0 %v3467, 9
  %v3486 = vpop.permute.xlu0 %3485
  %3487 = vrot.lane.b32.xlu0 %v3468, 9
  %v3488 = vpop.permute.xlu0 %3487
  %3489 = vrot.lane.b32.xlu0 %v3469, 9
  %v3490 = vpop.permute.xlu0 %3489
  %3491 = vrot.lane.b32.xlu0 %v3470, 9
  %v3492 = vpop.permute.xlu0 %3491
  %3493 = vrot.lane.b32.xlu0 %v3471, 9
  %v3494 = vpop.permute.xlu0 %3493
  %3495 = vrot.lane.b32.xlu0 %v3472, 9
  %v3496 = vpop.permute.xlu0 %3495
  %v3497 = vsel %vm1273, %v3494, %v3496
  %v3498 = vsel %vm1273, %v3492, %v3494
  %v3499 = vsel %vm1273, %v3490, %v3492
  %v3500 = vsel %vm1273, %v3488, %v3490
  %v3501 = vsel %vm1273, %v3486, %v3488
  %v3502 = vsel %vm1273, %v3484, %v3486
  %v3503 = vsel %vm1273, %v3482, %v3484
  %v3504 = vsel %vm1273, %v3496, %v3482
  %v3505 = vadd.f32 %v3449, %v3504
  %v3506 = vadd.f32 %v3450, %v3503
  %v3507 = vadd.f32 %v3451, %v3502
  %v3508 = vadd.f32 %v3452, %v3501
  %v3509 = vadd.f32 %v3453, %v3500
  %v3510 = vadd.f32 %v3454, %v3499
  %v3511 = vadd.f32 %v3455, %v3498
  %v3512 = vadd.f32 %v3456, %v3497
  %v3513 = vld [vmem:[#allocation2 + $0x140] sm:$0xff]
  %v3514 = vld [vmem:[#allocation2 + $0x148] sm:$0xff]
  %v3515 = vld [vmem:[#allocation2 + $0x150] sm:$0xff]
  %v3516 = vld [vmem:[#allocation2 + $0x158] sm:$0xff]
  %v3517 = vld [vmem:[#allocation2 + $0x160] sm:$0xff]
  %v3518 = vld [vmem:[#allocation2 + $0x168] sm:$0xff]
  %v3519 = vld [vmem:[#allocation2 + $0x170] sm:$0xff]
  %v3520 = vld [vmem:[#allocation2 + $0x178] sm:$0xff]
  %v3521 = vld [vmem:[%s3 + $0xa0] sm:$0xff]
  %v3522 = vld [vmem:[%s3 + $0xa8] sm:$0xff]
  %v3523 = vld [vmem:[%s3 + $0xb0] sm:$0xff]
  %v3524 = vld [vmem:[%s3 + $0xb8] sm:$0xff]
  %v3525 = vunpack.c.l.bf16 %v3521
  %v3526 = vunpack.c.h.bf16 %v3521
  %v3527 = vunpack.c.l.bf16 %v3522
  %v3528 = vunpack.c.h.bf16 %v3522
  %v3529 = vunpack.c.l.bf16 %v3523
  %v3530 = vunpack.c.h.bf16 %v3523
  %v3531 = vunpack.c.l.bf16 %v3524
  %v3532 = vunpack.c.h.bf16 %v3524
  %v3533 = vmul.f32 %v3513, %v3525
  %v3534 = vmul.f32 %v3514, %v3526
  %v3535 = vmul.f32 %v3515, %v3527
  %v3536 = vmul.f32 %v3516, %v3528
  %v3537 = vmul.f32 %v3517, %v3529
  %v3538 = vmul.f32 %v3518, %v3530
  %v3539 = vmul.f32 %v3519, %v3531
  %v3540 = vmul.f32 %v3520, %v3532
  %3541 = vrot.lane.b32.xlu0 %v3533, 8
  %v3542 = vpop.permute.xlu0 %3541
  %3543 = vrot.lane.b32.xlu0 %v3534, 8
  %v3544 = vpop.permute.xlu0 %3543
  %3545 = vrot.lane.b32.xlu0 %v3535, 8
  %v3546 = vpop.permute.xlu0 %3545
  %3547 = vrot.lane.b32.xlu0 %v3536, 8
  %v3548 = vpop.permute.xlu0 %3547
  %3549 = vrot.lane.b32.xlu0 %v3537, 8
  %v3550 = vpop.permute.xlu0 %3549
  %3551 = vrot.lane.b32.xlu0 %v3538, 8
  %v3552 = vpop.permute.xlu0 %3551
  %3553 = vrot.lane.b32.xlu0 %v3539, 8
  %v3554 = vpop.permute.xlu0 %3553
  %3555 = vrot.lane.b32.xlu0 %v3540, 8
  %v3556 = vpop.permute.xlu0 %3555
  %v3557 = vsel %vm1334, %v3554, %v3556
  %v3558 = vsel %vm1334, %v3552, %v3554
  %v3559 = vsel %vm1334, %v3550, %v3552
  %v3560 = vsel %vm1334, %v3548, %v3550
  %v3561 = vsel %vm1334, %v3546, %v3548
  %v3562 = vsel %vm1334, %v3544, %v3546
  %v3563 = vsel %vm1334, %v3542, %v3544
  %v3564 = vsel %vm1334, %v3556, %v3542
  %v3565 = vadd.f32 %v3505, %v3564
  %v3566 = vadd.f32 %v3506, %v3563
  %v3567 = vadd.f32 %v3507, %v3562
  %v3568 = vadd.f32 %v3508, %v3561
  %v3569 = vadd.f32 %v3509, %v3560
  %v3570 = vadd.f32 %v3510, %v3559
  %v3571 = vadd.f32 %v3511, %v3558
  %v3572 = vadd.f32 %v3512, %v3557
  %v3581 = vrot.slane %v3533, 4
  %v3582 = vrot.slane %v3534, 4
  %v3583 = vrot.slane %v3535, 4
  %v3584 = vrot.slane %v3536, 4
  %v3585 = vrot.slane %v3537, 4
  %v3586 = vrot.slane %v3538, 4
  %v3587 = vrot.slane %v3539, 4
  %v3588 = vrot.slane %v3540, 4
  %3597 = vrot.lane.b32.xlu0 %v3581, 7
  %v3598 = vpop.permute.xlu0 %3597
  %3599 = vrot.lane.b32.xlu0 %v3582, 7
  %v3600 = vpop.permute.xlu0 %3599
  %3601 = vrot.lane.b32.xlu0 %v3583, 7
  %v3602 = vpop.permute.xlu0 %3601
  %3603 = vrot.lane.b32.xlu0 %v3584, 7
  %v3604 = vpop.permute.xlu0 %3603
  %3605 = vrot.lane.b32.xlu0 %v3585, 7
  %v3606 = vpop.permute.xlu0 %3605
  %3607 = vrot.lane.b32.xlu0 %v3586, 7
  %v3608 = vpop.permute.xlu0 %3607
  %3609 = vrot.lane.b32.xlu0 %v3587, 7
  %v3610 = vpop.permute.xlu0 %3609
  %3611 = vrot.lane.b32.xlu0 %v3588, 7
  %v3612 = vpop.permute.xlu0 %3611
  %v3613 = vsel %vm1391, %v3610, %v3612
  %v3614 = vsel %vm1391, %v3608, %v3610
  %v3615 = vsel %vm1391, %v3606, %v3608
  %v3616 = vsel %vm1391, %v3604, %v3606
  %v3617 = vsel %vm1391, %v3602, %v3604
  %v3618 = vsel %vm1391, %v3600, %v3602
  %v3619 = vsel %vm1391, %v3598, %v3600
  %v3620 = vsel %vm1391, %v3612, %v3598
  %v3621 = vadd.f32 %v3565, %v3620
  %v3622 = vadd.f32 %v3566, %v3619
  %v3623 = vadd.f32 %v3567, %v3618
  %v3624 = vadd.f32 %v3568, %v3617
  %v3625 = vadd.f32 %v3569, %v3616
  %v3626 = vadd.f32 %v3570, %v3615
  %v3627 = vadd.f32 %v3571, %v3614
  %v3628 = vadd.f32 %v3572, %v3613
  %v3629 = vld [vmem:[#allocation2 + $0x180] sm:$0xff]
  %v3630 = vld [vmem:[#allocation2 + $0x188] sm:$0xff]
  %v3631 = vld [vmem:[#allocation2 + $0x190] sm:$0xff]
  %v3632 = vld [vmem:[#allocation2 + $0x198] sm:$0xff]
  %v3633 = vld [vmem:[#allocation2 + $0x1a0] sm:$0xff]
  %v3634 = vld [vmem:[#allocation2 + $0x1a8] sm:$0xff]
  %v3635 = vld [vmem:[#allocation2 + $0x1b0] sm:$0xff]
  %v3636 = vld [vmem:[#allocation2 + $0x1b8] sm:$0xff]
  %v3637 = vld [vmem:[%s3 + $0xc0] sm:$0xff]
  %v3638 = vld [vmem:[%s3 + $0xc8] sm:$0xff]
  %v3639 = vld [vmem:[%s3 + $0xd0] sm:$0xff]
  %v3640 = vld [vmem:[%s3 + $0xd8] sm:$0xff]
  %v3641 = vunpack.c.l.bf16 %v3637
  %v3642 = vunpack.c.h.bf16 %v3637
  %v3643 = vunpack.c.l.bf16 %v3638
  %v3644 = vunpack.c.h.bf16 %v3638
  %v3645 = vunpack.c.l.bf16 %v3639
  %v3646 = vunpack.c.h.bf16 %v3639
  %v3647 = vunpack.c.l.bf16 %v3640
  %v3648 = vunpack.c.h.bf16 %v3640
  %v3649 = vmul.f32 %v3629, %v3641
  %v3650 = vmul.f32 %v3630, %v3642
  %v3651 = vmul.f32 %v3631, %v3643
  %v3652 = vmul.f32 %v3632, %v3644
  %v3653 = vmul.f32 %v3633, %v3645
  %v3654 = vmul.f32 %v3634, %v3646
  %v3655 = vmul.f32 %v3635, %v3647
  %v3656 = vmul.f32 %v3636, %v3648
  %3657 = vrot.lane.b32.xlu0 %v3649, 1
  %v3658 = vpop.permute.xlu0 %3657
  %3659 = vrot.lane.b32.xlu0 %v3650, 1
  %v3660 = vpop.permute.xlu0 %3659
  %3661 = vrot.lane.b32.xlu0 %v3651, 1
  %v3662 = vpop.permute.xlu0 %3661
  %3663 = vrot.lane.b32.xlu0 %v3652, 1
  %v3664 = vpop.permute.xlu0 %3663
  %3665 = vrot.lane.b32.xlu0 %v3653, 1
  %v3666 = vpop.permute.xlu0 %3665
  %3667 = vrot.lane.b32.xlu0 %v3654, 1
  %v3668 = vpop.permute.xlu0 %3667
  %3669 = vrot.lane.b32.xlu0 %v3655, 1
  %v3670 = vpop.permute.xlu0 %3669
  %3671 = vrot.lane.b32.xlu0 %v3656, 1
  %v3672 = vpop.permute.xlu0 %3671
  %v3673 = vsel %vm1452, %v3670, %v3672
  %v3674 = vsel %vm1452, %v3668, %v3670
  %v3675 = vsel %vm1452, %v3666, %v3668
  %v3676 = vsel %vm1452, %v3664, %v3666
  %v3677 = vsel %vm1452, %v3662, %v3664
  %v3678 = vsel %vm1452, %v3660, %v3662
  %v3679 = vsel %vm1452, %v3658, %v3660
  %v3680 = vsel %vm1452, %v3672, %v3658
  %v3681 = vadd.f32 %v3621, %v3680
  %v3682 = vadd.f32 %v3622, %v3679
  %v3683 = vadd.f32 %v3623, %v3678
  %v3684 = vadd.f32 %v3624, %v3677
  %v3685 = vadd.f32 %v3625, %v3676
  %v3686 = vadd.f32 %v3626, %v3675
  %v3687 = vadd.f32 %v3627, %v3674
  %v3688 = vadd.f32 %v3628, %v3673
  %v3697 = vrot.slane %v3649, 4
  %v3698 = vrot.slane %v3650, 4
  %v3699 = vrot.slane %v3651, 4
  %v3700 = vrot.slane %v3652, 4
  %v3701 = vrot.slane %v3653, 4
  %v3702 = vrot.slane %v3654, 4
  %v3703 = vrot.slane %v3655, 4
  %v3704 = vrot.slane %v3656, 4
  %v3713 = vadd.f32 %v3681, %v3697
  %v3714 = vadd.f32 %v3682, %v3698
  %v3715 = vadd.f32 %v3683, %v3699
  %v3716 = vadd.f32 %v3684, %v3700
  %v3717 = vadd.f32 %v3685, %v3701
  %v3718 = vadd.f32 %v3686, %v3702
  %v3719 = vadd.f32 %v3687, %v3703
  %v3720 = vadd.f32 %v3688, %v3704
  %v3721 = vld [vmem:[#allocation2 + $0x1c0] sm:$0xff]
  %v3722 = vld [vmem:[#allocation2 + $0x1c8] sm:$0xff]
  %v3723 = vld [vmem:[#allocation2 + $0x1d0] sm:$0xff]
  %v3724 = vld [vmem:[#allocation2 + $0x1d8] sm:$0xff]
  %v3725 = vld [vmem:[#allocation2 + $0x1e0] sm:$0xff]
  %v3726 = vld [vmem:[#allocation2 + $0x1e8] sm:$0xff]
  %v3727 = vld [vmem:[#allocation2 + $0x1f0] sm:$0xff]
  %v3728 = vld [vmem:[#allocation2 + $0x1f8] sm:$0xff]
  %v3729 = vld [vmem:[%s3 + $0xe0] sm:$0xff]
  %v3730 = vld [vmem:[%s3 + $0xe8] sm:$0xff]
  %v3731 = vld [vmem:[%s3 + $0xf0] sm:$0xff]
  %v3732 = vld [vmem:[%s3 + $0xf8] sm:$0xff]
  %v3733 = vunpack.c.l.bf16 %v3729
  %v3734 = vunpack.c.h.bf16 %v3729
  %v3735 = vunpack.c.l.bf16 %v3730
  %v3736 = vunpack.c.h.bf16 %v3730
  %v3737 = vunpack.c.l.bf16 %v3731
  %v3738 = vunpack.c.h.bf16 %v3731
  %v3739 = vunpack.c.l.bf16 %v3732
  %v3740 = vunpack.c.h.bf16 %v3732
  %v3741 = vmul.f32 %v3721, %v3733
  %v3742 = vmul.f32 %v3722, %v3734
  %v3743 = vmul.f32 %v3723, %v3735
  %v3744 = vmul.f32 %v3724, %v3736
  %v3745 = vmul.f32 %v3725, %v3737
  %v3746 = vmul.f32 %v3726, %v3738
  %v3747 = vmul.f32 %v3727, %v3739
  %v3748 = vmul.f32 %v3728, %v3740
  %3749 = vrot.lane.b32.xlu0 %v3741, 127
  %v3750 = vpop.permute.xlu0 %3749
  %3751 = vrot.lane.b32.xlu0 %v3742, 127
  %v3752 = vpop.permute.xlu0 %3751
  %3753 = vrot.lane.b32.xlu0 %v3743, 127
  %v3754 = vpop.permute.xlu0 %3753
  %3755 = vrot.lane.b32.xlu0 %v3744, 127
  %v3756 = vpop.permute.xlu0 %3755
  %3757 = vrot.lane.b32.xlu0 %v3745, 127
  %v3758 = vpop.permute.xlu0 %3757
  %3759 = vrot.lane.b32.xlu0 %v3746, 127
  %v3760 = vpop.permute.xlu0 %3759
  %3761 = vrot.lane.b32.xlu0 %v3747, 127
  %v3762 = vpop.permute.xlu0 %3761
  %3763 = vrot.lane.b32.xlu0 %v3748, 127
  %v3764 = vpop.permute.xlu0 %3763
  %v3765 = vsel %vm1545, %v3762, %v3764
  %v3766 = vsel %vm1545, %v3760, %v3762
  %v3767 = vsel %vm1545, %v3758, %v3760
  %v3768 = vsel %vm1545, %v3756, %v3758
  %v3769 = vsel %vm1545, %v3754, %v3756
  %v3770 = vsel %vm1545, %v3752, %v3754
  %v3771 = vsel %vm1545, %v3750, %v3752
  %v3772 = vsel %vm1545, %v3764, %v3750
  %v3773 = vadd.f32 %v3713, %v3771
  %v3774 = vadd.f32 %v3714, %v3770
  %v3775 = vadd.f32 %v3715, %v3769
  %v3776 = vadd.f32 %v3716, %v3768
  %v3777 = vadd.f32 %v3717, %v3767
  %v3778 = vadd.f32 %v3718, %v3766
  %v3779 = vadd.f32 %v3719, %v3765
  %v3780 = vadd.f32 %v3720, %v3772
  %v3789 = vrot.slane %v3741, 4
  %v3790 = vrot.slane %v3742, 4
  %v3791 = vrot.slane %v3743, 4
  %v3792 = vrot.slane %v3744, 4
  %v3793 = vrot.slane %v3745, 4
  %v3794 = vrot.slane %v3746, 4
  %v3795 = vrot.slane %v3747, 4
  %v3796 = vrot.slane %v3748, 4
  %3805 = vrot.lane.b32.xlu0 %v3789, 121
  %v3806 = vpop.permute.xlu0 %3805
  %3807 = vrot.lane.b32.xlu0 %v3790, 121
  %v3808 = vpop.permute.xlu0 %3807
  %3809 = vrot.lane.b32.xlu0 %v3791, 121
  %v3810 = vpop.permute.xlu0 %3809
  %3811 = vrot.lane.b32.xlu0 %v3792, 121
  %v3812 = vpop.permute.xlu0 %3811
  %3813 = vrot.lane.b32.xlu0 %v3793, 121
  %v3814 = vpop.permute.xlu0 %3813
  %3815 = vrot.lane.b32.xlu0 %v3794, 121
  %v3816 = vpop.permute.xlu0 %3815
  %3817 = vrot.lane.b32.xlu0 %v3795, 121
  %v3818 = vpop.permute.xlu0 %3817
  %3819 = vrot.lane.b32.xlu0 %v3796, 121
  %v3820 = vpop.permute.xlu0 %3819
  %v3821 = vsel %vm1602, %v3818, %v3820
  %v3822 = vsel %vm1602, %v3816, %v3818
  %v3823 = vsel %vm1602, %v3814, %v3816
  %v3824 = vsel %vm1602, %v3812, %v3814
  %v3825 = vsel %vm1602, %v3810, %v3812
  %v3826 = vsel %vm1602, %v3808, %v3810
  %v3827 = vsel %vm1602, %v3806, %v3808
  %v3828 = vsel %vm1602, %v3820, %v3806
  %v3829 = vadd.f32 %v3773, %v3827
  %v3830 = vadd.f32 %v3774, %v3826
  %v3831 = vadd.f32 %v3775, %v3825
  %v3832 = vadd.f32 %v3776, %v3824
  %v3833 = vadd.f32 %v3777, %v3823
  %v3834 = vadd.f32 %v3778, %v3822
  %v3835 = vadd.f32 %v3779, %v3821
  %v3836 = vadd.f32 %v3780, %v3828
  %v3837 = vld [vmem:[#allocation2 + $0x200] sm:$0xff]
  %v3838 = vld [vmem:[#allocation2 + $0x208] sm:$0xff]
  %v3839 = vld [vmem:[#allocation2 + $0x210] sm:$0xff]
  %v3840 = vld [vmem:[#allocation2 + $0x218] sm:$0xff]
  %v3841 = vld [vmem:[#allocation2 + $0x220] sm:$0xff]
  %v3842 = vld [vmem:[#allocation2 + $0x228] sm:$0xff]
  %v3843 = vld [vmem:[#allocation2 + $0x230] sm:$0xff]
  %v3844 = vld [vmem:[#allocation2 + $0x238] sm:$0xff]
  %v3845 = vld [vmem:[%s3 + $0x100] sm:$0xff]
  %v3846 = vld [vmem:[%s3 + $0x108] sm:$0xff]
  %v3847 = vld [vmem:[%s3 + $0x110] sm:$0xff]
  %v3848 = vld [vmem:[%s3 + $0x118] sm:$0xff]
  %v3849 = vunpack.c.l.bf16 %v3845
  %v3850 = vunpack.c.h.bf16 %v3845
  %v3851 = vunpack.c.l.bf16 %v3846
  %v3852 = vunpack.c.h.bf16 %v3846
  %v3853 = vunpack.c.l.bf16 %v3847
  %v3854 = vunpack.c.h.bf16 %v3847
  %v3855 = vunpack.c.l.bf16 %v3848
  %v3856 = vunpack.c.h.bf16 %v3848
  %v3857 = vmul.f32 %v3837, %v3849
  %v3858 = vmul.f32 %v3838, %v3850
  %v3859 = vmul.f32 %v3839, %v3851
  %v3860 = vmul.f32 %v3840, %v3852
  %v3861 = vmul.f32 %v3841, %v3853
  %v3862 = vmul.f32 %v3842, %v3854
  %v3863 = vmul.f32 %v3843, %v3855
  %v3864 = vmul.f32 %v3844, %v3856
  %3865 = vrot.lane.b32.xlu0 %v3857, 120
  %v3866 = vpop.permute.xlu0 %3865
  %3867 = vrot.lane.b32.xlu0 %v3858, 120
  %v3868 = vpop.permute.xlu0 %3867
  %3869 = vrot.lane.b32.xlu0 %v3859, 120
  %v3870 = vpop.permute.xlu0 %3869
  %3871 = vrot.lane.b32.xlu0 %v3860, 120
  %v3872 = vpop.permute.xlu0 %3871
  %3873 = vrot.lane.b32.xlu0 %v3861, 120
  %v3874 = vpop.permute.xlu0 %3873
  %3875 = vrot.lane.b32.xlu0 %v3862, 120
  %v3876 = vpop.permute.xlu0 %3875
  %3877 = vrot.lane.b32.xlu0 %v3863, 120
  %v3878 = vpop.permute.xlu0 %3877
  %3879 = vrot.lane.b32.xlu0 %v3864, 120
  %v3880 = vpop.permute.xlu0 %3879
  %v3881 = vsel %vm1663, %v3878, %v3880
  %v3882 = vsel %vm1663, %v3876, %v3878
  %v3883 = vsel %vm1663, %v3874, %v3876
  %v3884 = vsel %vm1663, %v3872, %v3874
  %v3885 = vsel %vm1663, %v3870, %v3872
  %v3886 = vsel %vm1663, %v3868, %v3870
  %v3887 = vsel %vm1663, %v3866, %v3868
  %v3888 = vsel %vm1663, %v3880, %v3866
  %v3889 = vadd.f32 %v3829, %v3887
  %v3890 = vadd.f32 %v3830, %v3886
  %v3891 = vadd.f32 %v3831, %v3885
  %v3892 = vadd.f32 %v3832, %v3884
  %v3893 = vadd.f32 %v3833, %v3883
  %v3894 = vadd.f32 %v3834, %v3882
  %v3895 = vadd.f32 %v3835, %v3881
  %v3896 = vadd.f32 %v3836, %v3888
  %v3905 = vrot.slane %v3857, 4
  %v3906 = vrot.slane %v3858, 4
  %v3907 = vrot.slane %v3859, 4
  %v3908 = vrot.slane %v3860, 4
  %v3909 = vrot.slane %v3861, 4
  %v3910 = vrot.slane %v3862, 4
  %v3911 = vrot.slane %v3863, 4
  %v3912 = vrot.slane %v3864, 4
  %3921 = vrot.lane.b32.xlu0 %v3905, 119
  %v3922 = vpop.permute.xlu0 %3921
  %3923 = vrot.lane.b32.xlu0 %v3906, 119
  %v3924 = vpop.permute.xlu0 %3923
  %3925 = vrot.lane.b32.xlu0 %v3907, 119
  %v3926 = vpop.permute.xlu0 %3925
  %3927 = vrot.lane.b32.xlu0 %v3908, 119
  %v3928 = vpop.permute.xlu0 %3927
  %3929 = vrot.lane.b32.xlu0 %v3909, 119
  %v3930 = vpop.permute.xlu0 %3929
  %3931 = vrot.lane.b32.xlu0 %v3910, 119
  %v3932 = vpop.permute.xlu0 %3931
  %3933 = vrot.lane.b32.xlu0 %v3911, 119
  %v3934 = vpop.permute.xlu0 %3933
  %3935 = vrot.lane.b32.xlu0 %v3912, 119
  %v3936 = vpop.permute.xlu0 %3935
  %v3937 = vsel %vm1720, %v3934, %v3936
  %v3938 = vsel %vm1720, %v3932, %v3934
  %v3939 = vsel %vm1720, %v3930, %v3932
  %v3940 = vsel %vm1720, %v3928, %v3930
  %v3941 = vsel %vm1720, %v3926, %v3928
  %v3942 = vsel %vm1720, %v3924, %v3926
  %v3943 = vsel %vm1720, %v3922, %v3924
  %v3944 = vsel %vm1720, %v3936, %v3922
  %v3945 = vadd.f32 %v3889, %v3943
  %v3946 = vadd.f32 %v3890, %v3942
  %v3947 = vadd.f32 %v3891, %v3941
  %v3948 = vadd.f32 %v3892, %v3940
  %v3949 = vadd.f32 %v3893, %v3939
  %v3950 = vadd.f32 %v3894, %v3938
  %v3951 = vadd.f32 %v3895, %v3937
  %v3952 = vadd.f32 %v3896, %v3944
  %v3953 = vld [vmem:[#allocation2 + $0x240] sm:$0xff]
  %v3954 = vld [vmem:[#allocation2 + $0x248] sm:$0xff]
  %v3955 = vld [vmem:[#allocation2 + $0x250] sm:$0xff]
  %v3956 = vld [vmem:[#allocation2 + $0x258] sm:$0xff]
  %v3957 = vld [vmem:[#allocation2 + $0x260] sm:$0xff]
  %v3958 = vld [vmem:[#allocation2 + $0x268] sm:$0xff]
  %v3959 = vld [vmem:[#allocation2 + $0x270] sm:$0xff]
  %v3960 = vld [vmem:[#allocation2 + $0x278] sm:$0xff]
  %v3961 = vld [vmem:[%s3 + $0x120] sm:$0xff]
  %v3962 = vld [vmem:[%s3 + $0x128] sm:$0xff]
  %v3963 = vld [vmem:[%s3 + $0x130] sm:$0xff]
  %v3964 = vld [vmem:[%s3 + $0x138] sm:$0xff]
  %v3965 = vunpack.c.l.bf16 %v3961
  %v3966 = vunpack.c.h.bf16 %v3961
  %v3967 = vunpack.c.l.bf16 %v3962
  %v3968 = vunpack.c.h.bf16 %v3962
  %v3969 = vunpack.c.l.bf16 %v3963
  %v3970 = vunpack.c.h.bf16 %v3963
  %v3971 = vunpack.c.l.bf16 %v3964
  %v3972 = vunpack.c.h.bf16 %v3964
  %v3973 = vmul.f32 %v3953, %v3965
  %v3974 = vmul.f32 %v3954, %v3966
  %v3975 = vmul.f32 %v3955, %v3967
  %v3976 = vmul.f32 %v3956, %v3968
  %v3977 = vmul.f32 %v3957, %v3969
  %v3978 = vmul.f32 %v3958, %v3970
  %v3979 = vmul.f32 %v3959, %v3971
  %v3980 = vmul.f32 %v3960, %v3972
  %3981 = vrot.lane.b32.xlu0 %v3973, 73
  %v3982 = vpop.permute.xlu0 %3981
  %3983 = vrot.lane.b32.xlu0 %v3974, 73
  %v3984 = vpop.permute.xlu0 %3983
  %3985 = vrot.lane.b32.xlu0 %v3975, 73
  %v3986 = vpop.permute.xlu0 %3985
  %3987 = vrot.lane.b32.xlu0 %v3976, 73
  %v3988 = vpop.permute.xlu0 %3987
  %3989 = vrot.lane.b32.xlu0 %v3977, 73
  %v3990 = vpop.permute.xlu0 %3989
  %3991 = vrot.lane.b32.xlu0 %v3978, 73
  %v3992 = vpop.permute.xlu0 %3991
  %3993 = vrot.lane.b32.xlu0 %v3979, 73
  %v3994 = vpop.permute.xlu0 %3993
  %3995 = vrot.lane.b32.xlu0 %v3980, 73
  %v3996 = vpop.permute.xlu0 %3995
  %v3997 = vsel %vm744, %v3994, %v3996
  %v3998 = vsel %vm744, %v3992, %v3994
  %v3999 = vsel %vm744, %v3990, %v3992
  %v4000 = vsel %vm744, %v3988, %v3990
  %v4001 = vsel %vm744, %v3986, %v3988
  %v4002 = vsel %vm744, %v3984, %v3986
  %v4003 = vsel %vm744, %v3982, %v3984
  %v4004 = vsel %vm744, %v3996, %v3982
  %v4005 = vadd.f32 %v3945, %v4003
  %v4006 = vadd.f32 %v3946, %v4002
  %v4007 = vadd.f32 %v3947, %v4001
  %v4008 = vadd.f32 %v3948, %v4000
  %v4009 = vadd.f32 %v3949, %v3999
  %v4010 = vadd.f32 %v3950, %v3998
  %v4011 = vadd.f32 %v3951, %v3997
  %v4012 = vadd.f32 %v3952, %v4004
  %v4021 = vrot.slane %v3973, 4
  %v4022 = vrot.slane %v3974, 4
  %v4023 = vrot.slane %v3975, 4
  %v4024 = vrot.slane %v3976, 4
  %v4025 = vrot.slane %v3977, 4
  %v4026 = vrot.slane %v3978, 4
  %v4027 = vrot.slane %v3979, 4
  %v4028 = vrot.slane %v3980, 4
  %4037 = vrot.lane.b32.xlu0 %v4021, 72
  %v4038 = vpop.permute.xlu0 %4037
  %4039 = vrot.lane.b32.xlu0 %v4022, 72
  %v4040 = vpop.permute.xlu0 %4039
  %4041 = vrot.lane.b32.xlu0 %v4023, 72
  %v4042 = vpop.permute.xlu0 %4041
  %4043 = vrot.lane.b32.xlu0 %v4024, 72
  %v4044 = vpop.permute.xlu0 %4043
  %4045 = vrot.lane.b32.xlu0 %v4025, 72
  %v4046 = vpop.permute.xlu0 %4045
  %4047 = vrot.lane.b32.xlu0 %v4026, 72
  %v4048 = vpop.permute.xlu0 %4047
  %4049 = vrot.lane.b32.xlu0 %v4027, 72
  %v4050 = vpop.permute.xlu0 %4049
  %4051 = vrot.lane.b32.xlu0 %v4028, 72
  %v4052 = vpop.permute.xlu0 %4051
  %v4053 = vsel %vm801, %v4050, %v4052
  %v4054 = vsel %vm801, %v4048, %v4050
  %v4055 = vsel %vm801, %v4046, %v4048
  %v4056 = vsel %vm801, %v4044, %v4046
  %v4057 = vsel %vm801, %v4042, %v4044
  %v4058 = vsel %vm801, %v4040, %v4042
  %v4059 = vsel %vm801, %v4038, %v4040
  %v4060 = vsel %vm801, %v4052, %v4038
  %v4061 = vadd.f32 %v4005, %v4059
  %v4062 = vadd.f32 %v4006, %v4058
  %v4063 = vadd.f32 %v4007, %v4057
  %v4064 = vadd.f32 %v4008, %v4056
  %v4065 = vadd.f32 %v4009, %v4055
  %v4066 = vadd.f32 %v4010, %v4054
  %v4067 = vadd.f32 %v4011, %v4053
  %v4068 = vadd.f32 %v4012, %v4060
  %v4069 = vld [vmem:[#allocation2 + $0x280] sm:$0xff]
  %v4070 = vld [vmem:[#allocation2 + $0x288] sm:$0xff]
  %v4071 = vld [vmem:[#allocation2 + $0x290] sm:$0xff]
  %v4072 = vld [vmem:[#allocation2 + $0x298] sm:$0xff]
  %v4073 = vld [vmem:[#allocation2 + $0x2a0] sm:$0xff]
  %v4074 = vld [vmem:[#allocation2 + $0x2a8] sm:$0xff]
  %v4075 = vld [vmem:[#allocation2 + $0x2b0] sm:$0xff]
  %v4076 = vld [vmem:[#allocation2 + $0x2b8] sm:$0xff]
  %v4077 = vld [vmem:[%s3 + $0x140] sm:$0xff]
  %v4078 = vld [vmem:[%s3 + $0x148] sm:$0xff]
  %v4079 = vld [vmem:[%s3 + $0x150] sm:$0xff]
  %v4080 = vld [vmem:[%s3 + $0x158] sm:$0xff]
  %v4081 = vunpack.c.l.bf16 %v4077
  %v4082 = vunpack.c.h.bf16 %v4077
  %v4083 = vunpack.c.l.bf16 %v4078
  %v4084 = vunpack.c.h.bf16 %v4078
  %v4085 = vunpack.c.l.bf16 %v4079
  %v4086 = vunpack.c.h.bf16 %v4079
  %v4087 = vunpack.c.l.bf16 %v4080
  %v4088 = vunpack.c.h.bf16 %v4080
  %v4089 = vmul.f32 %v4069, %v4081
  %v4090 = vmul.f32 %v4070, %v4082
  %v4091 = vmul.f32 %v4071, %v4083
  %v4092 = vmul.f32 %v4072, %v4084
  %v4093 = vmul.f32 %v4073, %v4085
  %v4094 = vmul.f32 %v4074, %v4086
  %v4095 = vmul.f32 %v4075, %v4087
  %v4096 = vmul.f32 %v4076, %v4088
  %4097 = vrot.lane.b32.xlu0 %v4089, 71
  %v4098 = vpop.permute.xlu0 %4097
  %4099 = vrot.lane.b32.xlu0 %v4090, 71
  %v4100 = vpop.permute.xlu0 %4099
  %4101 = vrot.lane.b32.xlu0 %v4091, 71
  %v4102 = vpop.permute.xlu0 %4101
  %4103 = vrot.lane.b32.xlu0 %v4092, 71
  %v4104 = vpop.permute.xlu0 %4103
  %4105 = vrot.lane.b32.xlu0 %v4093, 71
  %v4106 = vpop.permute.xlu0 %4105
  %4107 = vrot.lane.b32.xlu0 %v4094, 71
  %v4108 = vpop.permute.xlu0 %4107
  %4109 = vrot.lane.b32.xlu0 %v4095, 71
  %v4110 = vpop.permute.xlu0 %4109
  %4111 = vrot.lane.b32.xlu0 %v4096, 71
  %v4112 = vpop.permute.xlu0 %4111
  %v4113 = vsel %vm862, %v4110, %v4112
  %v4114 = vsel %vm862, %v4108, %v4110
  %v4115 = vsel %vm862, %v4106, %v4108
  %v4116 = vsel %vm862, %v4104, %v4106
  %v4117 = vsel %vm862, %v4102, %v4104
  %v4118 = vsel %vm862, %v4100, %v4102
  %v4119 = vsel %vm862, %v4098, %v4100
  %v4120 = vsel %vm862, %v4112, %v4098
  %v4121 = vadd.f32 %v4061, %v4119
  %v4122 = vadd.f32 %v4062, %v4118
  %v4123 = vadd.f32 %v4063, %v4117
  %v4124 = vadd.f32 %v4064, %v4116
  %v4125 = vadd.f32 %v4065, %v4115
  %v4126 = vadd.f32 %v4066, %v4114
  %v4127 = vadd.f32 %v4067, %v4113
  %v4128 = vadd.f32 %v4068, %v4120
  %v4137 = vrot.slane %v4089, 4
  %v4138 = vrot.slane %v4090, 4
  %v4139 = vrot.slane %v4091, 4
  %v4140 = vrot.slane %v4092, 4
  %v4141 = vrot.slane %v4093, 4
  %v4142 = vrot.slane %v4094, 4
  %v4143 = vrot.slane %v4095, 4
  %v4144 = vrot.slane %v4096, 4
  %4153 = vrot.lane.b32.xlu0 %v4137, 65
  %v4154 = vpop.permute.xlu0 %4153
  %4155 = vrot.lane.b32.xlu0 %v4138, 65
  %v4156 = vpop.permute.xlu0 %4155
  %4157 = vrot.lane.b32.xlu0 %v4139, 65
  %v4158 = vpop.permute.xlu0 %4157
  %4159 = vrot.lane.b32.xlu0 %v4140, 65
  %v4160 = vpop.permute.xlu0 %4159
  %4161 = vrot.lane.b32.xlu0 %v4141, 65
  %v4162 = vpop.permute.xlu0 %4161
  %4163 = vrot.lane.b32.xlu0 %v4142, 65
  %v4164 = vpop.permute.xlu0 %4163
  %4165 = vrot.lane.b32.xlu0 %v4143, 65
  %v4166 = vpop.permute.xlu0 %4165
  %4167 = vrot.lane.b32.xlu0 %v4144, 65
  %v4168 = vpop.permute.xlu0 %4167
  %v4169 = vsel %vm919, %v4166, %v4168
  %v4170 = vsel %vm919, %v4164, %v4166
  %v4171 = vsel %vm919, %v4162, %v4164
  %v4172 = vsel %vm919, %v4160, %v4162
  %v4173 = vsel %vm919, %v4158, %v4160
  %v4174 = vsel %vm919, %v4156, %v4158
  %v4175 = vsel %vm919, %v4154, %v4156
  %v4176 = vsel %vm919, %v4168, %v4154
  %v4177 = vadd.f32 %v4121, %v4175
  %v4178 = vadd.f32 %v4122, %v4174
  %v4179 = vadd.f32 %v4123, %v4173
  %v4180 = vadd.f32 %v4124, %v4172
  %v4181 = vadd.f32 %v4125, %v4171
  %v4182 = vadd.f32 %v4126, %v4170
  %v4183 = vadd.f32 %v4127, %v4169
  %v4184 = vadd.f32 %v4128, %v4176
  %v4185 = vld [vmem:[#allocation2 + $0x2c0] sm:$0xff]
  %v4186 = vld [vmem:[#allocation2 + $0x2c8] sm:$0xff]
  %v4187 = vld [vmem:[#allocation2 + $0x2d0] sm:$0xff]
  %v4188 = vld [vmem:[#allocation2 + $0x2d8] sm:$0xff]
  %v4189 = vld [vmem:[#allocation2 + $0x2e0] sm:$0xff]
  %v4190 = vld [vmem:[#allocation2 + $0x2e8] sm:$0xff]
  %v4191 = vld [vmem:[#allocation2 + $0x2f0] sm:$0xff]
  %v4192 = vld [vmem:[#allocation2 + $0x2f8] sm:$0xff]
  %v4193 = vld [vmem:[%s3 + $0x160] sm:$0xff]
  %v4194 = vld [vmem:[%s3 + $0x168] sm:$0xff]
  %v4195 = vld [vmem:[%s3 + $0x170] sm:$0xff]
  %v4196 = vld [vmem:[%s3 + $0x178] sm:$0xff]
  %v4197 = vunpack.c.l.bf16 %v4193
  %v4198 = vunpack.c.h.bf16 %v4193
  %v4199 = vunpack.c.l.bf16 %v4194
  %v4200 = vunpack.c.h.bf16 %v4194
  %v4201 = vunpack.c.l.bf16 %v4195
  %v4202 = vunpack.c.h.bf16 %v4195
  %v4203 = vunpack.c.l.bf16 %v4196
  %v4204 = vunpack.c.h.bf16 %v4196
  %v4205 = vmul.f32 %v4185, %v4197
  %v4206 = vmul.f32 %v4186, %v4198
  %v4207 = vmul.f32 %v4187, %v4199
  %v4208 = vmul.f32 %v4188, %v4200
  %v4209 = vmul.f32 %v4189, %v4201
  %v4210 = vmul.f32 %v4190, %v4202
  %v4211 = vmul.f32 %v4191, %v4203
  %v4212 = vmul.f32 %v4192, %v4204
  %4213 = vrot.lane.b32.xlu0 %v4205, 64
  %v4214 = vpop.permute.xlu0 %4213
  %4215 = vrot.lane.b32.xlu0 %v4206, 64
  %v4216 = vpop.permute.xlu0 %4215
  %4217 = vrot.lane.b32.xlu0 %v4207, 64
  %v4218 = vpop.permute.xlu0 %4217
  %4219 = vrot.lane.b32.xlu0 %v4208, 64
  %v4220 = vpop.permute.xlu0 %4219
  %4221 = vrot.lane.b32.xlu0 %v4209, 64
  %v4222 = vpop.permute.xlu0 %4221
  %4223 = vrot.lane.b32.xlu0 %v4210, 64
  %v4224 = vpop.permute.xlu0 %4223
  %4225 = vrot.lane.b32.xlu0 %v4211, 64
  %v4226 = vpop.permute.xlu0 %4225
  %4227 = vrot.lane.b32.xlu0 %v4212, 64
  %v4228 = vpop.permute.xlu0 %4227
  %v4229 = vsel %vm980, %v4226, %v4228
  %v4230 = vsel %vm980, %v4224, %v4226
  %v4231 = vsel %vm980, %v4222, %v4224
  %v4232 = vsel %vm980, %v4220, %v4222
  %v4233 = vsel %vm980, %v4218, %v4220
  %v4234 = vsel %vm980, %v4216, %v4218
  %v4235 = vsel %vm980, %v4214, %v4216
  %v4236 = vsel %vm980, %v4228, %v4214
  %v4237 = vadd.f32 %v4177, %v4235
  %v4238 = vadd.f32 %v4178, %v4234
  %v4239 = vadd.f32 %v4179, %v4233
  %v4240 = vadd.f32 %v4180, %v4232
  %v4241 = vadd.f32 %v4181, %v4231
  %v4242 = vadd.f32 %v4182, %v4230
  %v4243 = vadd.f32 %v4183, %v4229
  %v4244 = vadd.f32 %v4184, %v4236
  %v4253 = vrot.slane %v4205, 4
  %v4254 = vrot.slane %v4206, 4
  %v4255 = vrot.slane %v4207, 4
  %v4256 = vrot.slane %v4208, 4
  %v4257 = vrot.slane %v4209, 4
  %v4258 = vrot.slane %v4210, 4
  %v4259 = vrot.slane %v4211, 4
  %v4260 = vrot.slane %v4212, 4
  %4269 = vrot.lane.b32.xlu0 %v4253, 63
  %v4270 = vpop.permute.xlu0 %4269
  %4271 = vrot.lane.b32.xlu0 %v4254, 63
  %v4272 = vpop.permute.xlu0 %4271
  %4273 = vrot.lane.b32.xlu0 %v4255, 63
  %v4274 = vpop.permute.xlu0 %4273
  %4275 = vrot.lane.b32.xlu0 %v4256, 63
  %v4276 = vpop.permute.xlu0 %4275
  %4277 = vrot.lane.b32.xlu0 %v4257, 63
  %v4278 = vpop.permute.xlu0 %4277
  %4279 = vrot.lane.b32.xlu0 %v4258, 63
  %v4280 = vpop.permute.xlu0 %4279
  %4281 = vrot.lane.b32.xlu0 %v4259, 63
  %v4282 = vpop.permute.xlu0 %4281
  %4283 = vrot.lane.b32.xlu0 %v4260, 63
  %v4284 = vpop.permute.xlu0 %4283
  %v4285 = vsel %vm1037, %v4282, %v4284
  %v4286 = vsel %vm1037, %v4280, %v4282
  %v4287 = vsel %vm1037, %v4278, %v4280
  %v4288 = vsel %vm1037, %v4276, %v4278
  %v4289 = vsel %vm1037, %v4274, %v4276
  %v4290 = vsel %vm1037, %v4272, %v4274
  %v4291 = vsel %vm1037, %v4270, %v4272
  %v4292 = vsel %vm1037, %v4284, %v4270
  %v4293 = vadd.f32 %v4237, %v4291
  %v4294 = vadd.f32 %v4238, %v4290
  %v4295 = vadd.f32 %v4239, %v4289
  %v4296 = vadd.f32 %v4240, %v4288
  %v4297 = vadd.f32 %v4241, %v4287
  %v4298 = vadd.f32 %v4242, %v4286
  %v4299 = vadd.f32 %v4243, %v4285
  %v4300 = vadd.f32 %v4244, %v4292
  %v4301 = vld [vmem:[#allocation2 + $0x300] sm:$0xff]
  %v4302 = vld [vmem:[#allocation2 + $0x308] sm:$0xff]
  %v4303 = vld [vmem:[#allocation2 + $0x310] sm:$0xff]
  %v4304 = vld [vmem:[#allocation2 + $0x318] sm:$0xff]
  %v4305 = vld [vmem:[#allocation2 + $0x320] sm:$0xff]
  %v4306 = vld [vmem:[#allocation2 + $0x328] sm:$0xff]
  %v4307 = vld [vmem:[#allocation2 + $0x330] sm:$0xff]
  %v4308 = vld [vmem:[#allocation2 + $0x338] sm:$0xff]
  %v4309 = vld [vmem:[%s3 + $0x180] sm:$0xff]
  %v4310 = vld [vmem:[%s3 + $0x188] sm:$0xff]
  %v4311 = vld [vmem:[%s3 + $0x190] sm:$0xff]
  %v4312 = vld [vmem:[%s3 + $0x198] sm:$0xff]
  %v4313 = vunpack.c.l.bf16 %v4309
  %v4314 = vunpack.c.h.bf16 %v4309
  %v4315 = vunpack.c.l.bf16 %v4310
  %v4316 = vunpack.c.h.bf16 %v4310
  %v4317 = vunpack.c.l.bf16 %v4311
  %v4318 = vunpack.c.h.bf16 %v4311
  %v4319 = vunpack.c.l.bf16 %v4312
  %v4320 = vunpack.c.h.bf16 %v4312
  %v4321 = vmul.f32 %v4301, %v4313
  %v4322 = vmul.f32 %v4302, %v4314
  %v4323 = vmul.f32 %v4303, %v4315
  %v4324 = vmul.f32 %v4304, %v4316
  %v4325 = vmul.f32 %v4305, %v4317
  %v4326 = vmul.f32 %v4306, %v4318
  %v4327 = vmul.f32 %v4307, %v4319
  %v4328 = vmul.f32 %v4308, %v4320
  %4329 = vrot.lane.b32.xlu0 %v4321, 57
  %v4330 = vpop.permute.xlu0 %4329
  %4331 = vrot.lane.b32.xlu0 %v4322, 57
  %v4332 = vpop.permute.xlu0 %4331
  %4333 = vrot.lane.b32.xlu0 %v4323, 57
  %v4334 = vpop.permute.xlu0 %4333
  %4335 = vrot.lane.b32.xlu0 %v4324, 57
  %v4336 = vpop.permute.xlu0 %4335
  %4337 = vrot.lane.b32.xlu0 %v4325, 57
  %v4338 = vpop.permute.xlu0 %4337
  %4339 = vrot.lane.b32.xlu0 %v4326, 57
  %v4340 = vpop.permute.xlu0 %4339
  %4341 = vrot.lane.b32.xlu0 %v4327, 57
  %v4342 = vpop.permute.xlu0 %4341
  %4343 = vrot.lane.b32.xlu0 %v4328, 57
  %v4344 = vpop.permute.xlu0 %4343
  %v4345 = vsel %vm1098, %v4342, %v4344
  %v4346 = vsel %vm1098, %v4340, %v4342
  %v4347 = vsel %vm1098, %v4338, %v4340
  %v4348 = vsel %vm1098, %v4336, %v4338
  %v4349 = vsel %vm1098, %v4334, %v4336
  %v4350 = vsel %vm1098, %v4332, %v4334
  %v4351 = vsel %vm1098, %v4330, %v4332
  %v4352 = vsel %vm1098, %v4344, %v4330
  %v4353 = vadd.f32 %v4293, %v4351
  %v4354 = vadd.f32 %v4294, %v4350
  %v4355 = vadd.f32 %v4295, %v4349
  %v4356 = vadd.f32 %v4296, %v4348
  %v4357 = vadd.f32 %v4297, %v4347
  %v4358 = vadd.f32 %v4298, %v4346
  %v4359 = vadd.f32 %v4299, %v4345
  %v4360 = vadd.f32 %v4300, %v4352
  %v4369 = vrot.slane %v4321, 4
  %v4370 = vrot.slane %v4322, 4
  %v4371 = vrot.slane %v4323, 4
  %v4372 = vrot.slane %v4324, 4
  %v4373 = vrot.slane %v4325, 4
  %v4374 = vrot.slane %v4326, 4
  %v4375 = vrot.slane %v4327, 4
  %v4376 = vrot.slane %v4328, 4
  %4385 = vrot.lane.b32.xlu0 %v4369, 56
  %v4386 = vpop.permute.xlu0 %4385
  %4387 = vrot.lane.b32.xlu0 %v4370, 56
  %v4388 = vpop.permute.xlu0 %4387
  %4389 = vrot.lane.b32.xlu0 %v4371, 56
  %v4390 = vpop.permute.xlu0 %4389
  %4391 = vrot.lane.b32.xlu0 %v4372, 56
  %v4392 = vpop.permute.xlu0 %4391
  %4393 = vrot.lane.b32.xlu0 %v4373, 56
  %v4394 = vpop.permute.xlu0 %4393
  %4395 = vrot.lane.b32.xlu0 %v4374, 56
  %v4396 = vpop.permute.xlu0 %4395
  %4397 = vrot.lane.b32.xlu0 %v4375, 56
  %v4398 = vpop.permute.xlu0 %4397
  %4399 = vrot.lane.b32.xlu0 %v4376, 56
  %v4400 = vpop.permute.xlu0 %4399
  %v4401 = vsel %vm1155, %v4398, %v4400
  %v4402 = vsel %vm1155, %v4396, %v4398
  %v4403 = vsel %vm1155, %v4394, %v4396
  %v4404 = vsel %vm1155, %v4392, %v4394
  %v4405 = vsel %vm1155, %v4390, %v4392
  %v4406 = vsel %vm1155, %v4388, %v4390
  %v4407 = vsel %vm1155, %v4386, %v4388
  %v4408 = vsel %vm1155, %v4400, %v4386
  %v4409 = vadd.f32 %v4353, %v4407
  %v4410 = vadd.f32 %v4354, %v4406
  %v4411 = vadd.f32 %v4355, %v4405
  %v4412 = vadd.f32 %v4356, %v4404
  %v4413 = vadd.f32 %v4357, %v4403
  %v4414 = vadd.f32 %v4358, %v4402
  %v4415 = vadd.f32 %v4359, %v4401
  %v4416 = vadd.f32 %v4360, %v4408
  %v4417 = vld [vmem:[#allocation2 + $0x340] sm:$0xff]
  %v4418 = vld [vmem:[#allocation2 + $0x348] sm:$0xff]
  %v4419 = vld [vmem:[#allocation2 + $0x350] sm:$0xff]
  %v4420 = vld [vmem:[#allocation2 + $0x358] sm:$0xff]
  %v4421 = vld [vmem:[#allocation2 + $0x360] sm:$0xff]
  %v4422 = vld [vmem:[#allocation2 + $0x368] sm:$0xff]
  %v4423 = vld [vmem:[#allocation2 + $0x370] sm:$0xff]
  %v4424 = vld [vmem:[#allocation2 + $0x378] sm:$0xff]
  %v4425 = vld [vmem:[%s3 + $0x1a0] sm:$0xff]
  %v4426 = vld [vmem:[%s3 + $0x1a8] sm:$0xff]
  %v4427 = vld [vmem:[%s3 + $0x1b0] sm:$0xff]
  %v4428 = vld [vmem:[%s3 + $0x1b8] sm:$0xff]
  %v4429 = vunpack.c.l.bf16 %v4425
  %v4430 = vunpack.c.h.bf16 %v4425
  %v4431 = vunpack.c.l.bf16 %v4426
  %v4432 = vunpack.c.h.bf16 %v4426
  %v4433 = vunpack.c.l.bf16 %v4427
  %v4434 = vunpack.c.h.bf16 %v4427
  %v4435 = vunpack.c.l.bf16 %v4428
  %v4436 = vunpack.c.h.bf16 %v4428
  %v4437 = vmul.f32 %v4417, %v4429
  %v4438 = vmul.f32 %v4418, %v4430
  %v4439 = vmul.f32 %v4419, %v4431
  %v4440 = vmul.f32 %v4420, %v4432
  %v4441 = vmul.f32 %v4421, %v4433
  %v4442 = vmul.f32 %v4422, %v4434
  %v4443 = vmul.f32 %v4423, %v4435
  %v4444 = vmul.f32 %v4424, %v4436
  %4445 = vrot.lane.b32.xlu0 %v4437, 55
  %v4446 = vpop.permute.xlu0 %4445
  %4447 = vrot.lane.b32.xlu0 %v4438, 55
  %v4448 = vpop.permute.xlu0 %4447
  %4449 = vrot.lane.b32.xlu0 %v4439, 55
  %v4450 = vpop.permute.xlu0 %4449
  %4451 = vrot.lane.b32.xlu0 %v4440, 55
  %v4452 = vpop.permute.xlu0 %4451
  %4453 = vrot.lane.b32.xlu0 %v4441, 55
  %v4454 = vpop.permute.xlu0 %4453
  %4455 = vrot.lane.b32.xlu0 %v4442, 55
  %v4456 = vpop.permute.xlu0 %4455
  %4457 = vrot.lane.b32.xlu0 %v4443, 55
  %v4458 = vpop.permute.xlu0 %4457
  %4459 = vrot.lane.b32.xlu0 %v4444, 55
  %v4460 = vpop.permute.xlu0 %4459
  %v4461 = vsel %vm1216, %v4458, %v4460
  %v4462 = vsel %vm1216, %v4456, %v4458
  %v4463 = vsel %vm1216, %v4454, %v4456
  %v4464 = vsel %vm1216, %v4452, %v4454
  %v4465 = vsel %vm1216, %v4450, %v4452
  %v4466 = vsel %vm1216, %v4448, %v4450
  %v4467 = vsel %vm1216, %v4446, %v4448
  %v4468 = vsel %vm1216, %v4460, %v4446
  %v4469 = vadd.f32 %v4409, %v4467
  %v4470 = vadd.f32 %v4410, %v4466
  %v4471 = vadd.f32 %v4411, %v4465
  %v4472 = vadd.f32 %v4412, %v4464
  %v4473 = vadd.f32 %v4413, %v4463
  %v4474 = vadd.f32 %v4414, %v4462
  %v4475 = vadd.f32 %v4415, %v4461
  %v4476 = vadd.f32 %v4416, %v4468
  %4477 = vst [vmem:[#allocation1] ss:$2 sm:$0xff] %v17
  %s4478 = scalar_lea.vmem [#allocation1], 16
  %4479 = vst [vmem:[%s4478] ss:$2 sm:$0xff] %v18
  %s4480 = scalar_lea.vmem [#allocation1], 32
  %4481 = vst [vmem:[%s4480] ss:$2 sm:$0xff] %v19
  %s4482 = scalar_lea.vmem [#allocation1], 48
  %4483 = vst [vmem:[%s4482] ss:$2 sm:$0xff] %v20
  %v4484 = vld.sshfl [vmem:[#allocation1] sm:$0xff pattern:$0x75316420]
  %v4485 = vld.sshfl [vmem:[#allocation1 + $0x8] sm:$0xff pattern:$0x75316420]
  %v4486 = vld.sshfl [vmem:[#allocation1 + $0x10] sm:$0xff pattern:$0x75316420]
  %v4487 = vld.sshfl [vmem:[#allocation1 + $0x18] sm:$0xff pattern:$0x75316420]
  %v4488 = vld.sshfl [vmem:[#allocation1 + $0x20] sm:$0xff pattern:$0x75316420]
  %v4489 = vld.sshfl [vmem:[#allocation1 + $0x28] sm:$0xff pattern:$0x75316420]
  %v4490 = vld.sshfl [vmem:[#allocation1 + $0x30] sm:$0xff pattern:$0x75316420]
  %v4491 = vld.sshfl [vmem:[#allocation1 + $0x38] sm:$0xff pattern:$0x75316420]
  %v4500 = vadd.f32 %v4469, %v4484
  %v4501 = vadd.f32 %v4470, %v4485
  %v4502 = vadd.f32 %v4471, %v4486
  %v4503 = vadd.f32 %v4472, %v4487
  %v4504 = vadd.f32 %v4473, %v4488
  %v4505 = vadd.f32 %v4474, %v4489
  %v4506 = vadd.f32 %v4475, %v4490
  %v4507 = vadd.f32 %v4476, %v4491
  %v4508 = vmax.f32 %v4500, 0.0
  %v4509 = vmax.f32 %v4501, 0.0
  %v4510 = vmax.f32 %v4502, 0.0
  %v4511 = vmax.f32 %v4503, 0.0
  %v4512 = vmax.f32 %v4504, 0.0
  %v4513 = vmax.f32 %v4505, 0.0
  %v4514 = vmax.f32 %v4506, 0.0
  %v4515 = vmax.f32 %v4507, 0.0
  %v4524 = vrot.slane %v4509, 4
  %v4525 = vrot.slane %v4511, 4
  %v4526 = vrot.slane %v4513, 4
  %v4527 = vrot.slane %v4515, 4
  %v4528 = vsel %vm97, %v4508, %v4524
  %v4529 = vsel %vm97, %v4510, %v4525
  %v4530 = vsel %vm97, %v4512, %v4526
  %v4531 = vsel %vm97, %v4514, %v4527
  %4536 = vst [vmem:[%s4] sm:$0xff] %v4528
  %4537 = vst [vmem:[%s4 + $0x8] sm:$0xff] %v4529
  %4538 = vst [vmem:[%s4 + $0x10] sm:$0xff] %v4530
  %4539 = vst [vmem:[%s4 + $0x18] sm:$0xff] %v4531
  // Predicated region
  $region18: #{resblock2_apply.1} parent=0 // pred_check
    _
  $region19: #{resblock2_apply.1} parent=0 // pred_check_branch
    %4541 = sbr.rel (0) target = $region21
  $region20: #{resblock2_apply.1} parent=0 // pred_region
    _
  $region21: #{resblock2_apply.1} parent=0 // pred_fallthru
    _
  // Predicated region
  $region22: #{resblock2_apply.1} parent=0 // pred_check
    _
  $region23: #{resblock2_apply.1} parent=0 // pred_check_branch
    %4543 = sbr.rel (0) target = $region25
  $region24: #{resblock2_apply.1} parent=0 // pred_region
    _
  $region25: #{resblock2_apply.1} parent=0 // pred_fallthru
    _

</llo_original>
